<compile_context>
chip_gen: v7x
topology: tpu7x:2x2x1
jax: 0.10.0
libtpu: 0.0.40
codegen_flags: <defaults>
</compile_context>

<pallas_src>
import functools
import math

import jax
import jax.numpy as jnp
from jax import lax
from jax.experimental import pallas as pl
from jax.experimental.pallas import tpu as pltpu


def _round_up(x, m):
    return ((x + m - 1) // m) * m


def _pick_col_tile(hidden, cap):
    """Largest multiple of 256 (fallback 128) that divides `hidden` and is <= cap."""
    for align in (256, 128):
        if hidden % align:
            continue
        best = None
        d = align
        while d <= hidden:
            if hidden % d == 0 and d <= cap:
                best = d
            d += align
        if best is not None:
            return best
    return hidden


def _timestep_embedder_kernel(t_ref, w1_ref, b1_ref, w2_ref, b2_ref, out_ref,
                              emb_ref, *, half, log_max_period):
    # t_ref:   (TN, 1)        f32   timesteps for this row tile
    # w1_ref:  (2*half, H)    wdt   first Linear weight (in, out), resident
    # b1_ref:  (1, H)         f32   first Linear bias, resident
    # w2_ref:  (H, TC)        wdt   second Linear weight (full or column tile)
    # b2_ref:  (1, TC)        f32   second Linear bias (full or column tile)
    # out_ref: (TN, TC)             output tile
    # emb_ref: (TN, 2*half)   wdt   VMEM scratch: [cos | sin] embedding
    t = t_ref[...]                                                   # (TN, 1) f32
    k = lax.broadcasted_iota(jnp.int32, (1, half), 1).astype(jnp.float32)
    freqs = jnp.exp((-log_max_period / half) * k)                    # (1, half) EUP
    args = t * freqs                                                 # (TN, half) f32

    cdt = emb_ref.dtype
    emb_ref[:, :half] = jnp.cos(args).astype(cdt)                    # lane-aligned store
    emb_ref[:, half:] = jnp.sin(args).astype(cdt)                    # lane-aligned store

    # First Linear (single K=2*half MXU push) + SiLU.
    h = jnp.dot(emb_ref[...], w1_ref[...],
                preferred_element_type=jnp.float32) + b1_ref[...]
    h = h * jax.nn.sigmoid(h)                                        # SiLU via EUP logistic

    # Second Linear for this (row, column) tile.
    out = jnp.dot(h.astype(w2_ref.dtype), w2_ref[...],
                  preferred_element_type=jnp.float32) + b2_ref[...]
    out_ref[...] = out.astype(out_ref.dtype)


def timestep_embedder_forward(t, params, frequency_embedding_size=256,
                              max_period=10000.0, row_tile=256, col_tile=512,
                              out_dtype=jnp.float32, force_tiled=False):
    """t: (N,) float array.  params weights are (in_features, out_features).

    Returns (N, hidden) in `out_dtype`.  Weight dtype (f32 or bf16) is taken
    from params["w1"]/params["w2"]; matmul operands are cast to it,
    accumulation is f32.
    """
    assert frequency_embedding_size % 2 == 0, "odd freq-embedding size unsupported"
    freq = frequency_embedding_size
    half = freq // 2

    w1 = params["w1"]                    # (freq, H)
    w2 = params["w2"]                    # (H, H)
    hidden = w2.shape[1]
    assert w1.shape == (freq, hidden) and w2.shape == (hidden, hidden)
    n = t.shape[0]
    wdt = w1.dtype
    wsize = jnp.dtype(wdt).itemsize
    osize = jnp.dtype(out_dtype).itemsize

    b1 = params["b1"].reshape(1, hidden).astype(jnp.float32)
    b2 = params["b2"].reshape(1, hidden).astype(jnp.float32)

    # ---- row tiling: pad N to a multiple of the (8-aligned) row tile ----
    tn = min(row_tile, max(8, _round_up(n, 8)))
    n_pad = _round_up(n, tn)
    n_rows = n_pad // tn
    t2 = jnp.pad(t.astype(jnp.float32), (0, n_pad - n)).reshape(n_pad, 1)

    # ---- generation-aware VMEM budget (128 MiB v5e/v6e, 64 MiB v7x) ----
    try:
        vmem_capacity = int(pltpu.get_tpu_info().vmem_capacity_bytes)
    except Exception:
        vmem_capacity = 64 * 1024 * 1024    # conservative (v7x)

    emb_scratch = tn * freq * wsize
    resident_need = (freq * hidden * wsize + hidden * 4       # W1, b1 (single buffer)
                     + hidden * hidden * wsize + hidden * 4   # W2, b2 (single buffer)
                     + 2 * tn * 4                             # t tile, double-buffered
                     + 2 * tn * hidden * osize                # out tile, double-buffered
                     + emb_scratch)
    use_resident = ((not force_tiled and resident_need <= int(0.75 * vmem_capacity))
                    or hidden % 128 != 0)

    kernel = functools.partial(_timestep_embedder_kernel,
                               half=half, log_max_period=math.log(max_period))

    cost = pl.CostEstimate(
        flops=2 * n_pad * (freq * hidden + hidden * hidden),
        transcendentals=n_pad * (freq + hidden) + half,
        bytes_accessed=(n_pad * 4 + freq * hidden * wsize + 2 * hidden * 4
                        + hidden * hidden * wsize + n_pad * hidden * osize),
    )

    def const_spec(shape, imap):
        # Fetched once -> single pipeline buffer (halves resident-weight VMEM).
        return pl.BlockSpec(shape, imap, pipeline_mode=pl.Buffered(1))

    if use_resident:
        # ---- resident path: grid over row tiles only; W2 DMA'd exactly once ----
        grid = (n_rows,)
        in_specs = [
            pl.BlockSpec((tn, 1), lambda i: (i, 0)),              # t tile
            const_spec((freq, hidden), lambda i: (0, 0)),         # W1 (resident)
            const_spec((1, hidden), lambda i: (0, 0)),            # b1 (resident)
            const_spec((hidden, hidden), lambda i: (0, 0)),       # W2 (resident)
            const_spec((1, hidden), lambda i: (0, 0)),            # b2 (resident)
        ]
        out_specs = pl.BlockSpec((tn, hidden), lambda i: (i, 0))
        dim_sem = ("parallel",)
        need = resident_need
    else:
        # ---- tiled path: column axis OUTER (+parallel) so each W2 column tile
        # is DMA'd once for the whole call and v7x cores split the columns.
        tc = _pick_col_tile(hidden, col_tile)
        n_cols = hidden // tc
        grid = (n_cols, n_rows)
        in_specs = [
            pl.BlockSpec((tn, 1), lambda j, i: (i, 0)),           # t tile
            const_spec((freq, hidden), lambda j, i: (0, 0)),      # W1 (resident)
            const_spec((1, hidden), lambda j, i: (0, 0)),         # b1 (resident)
            pl.BlockSpec((hidden, tc), lambda j, i: (0, j)),      # W2 column tile
            pl.BlockSpec((1, tc), lambda j, i: (0, j)),           # b2 column tile
        ]
        out_specs = pl.BlockSpec((tn, tc), lambda j, i: (i, j))
        dim_sem = ("parallel", "arbitrary")
        need = (freq * hidden * wsize + hidden * 4
                + 2 * (hidden * tc * wsize + tc * 4)
                + 2 * tn * 4 + 2 * tn * tc * osize + emb_scratch)

    vmem_limit = int(min(need + (16 << 20), vmem_capacity))

    out = pl.pallas_call(
        kernel,
        out_shape=jax.ShapeDtypeStruct((n_pad, hidden), out_dtype),
        grid_spec=pltpu.PrefetchScalarGridSpec(
            num_scalar_prefetch=0,
            grid=grid,
            in_specs=in_specs,
            out_specs=out_specs,
            scratch_shapes=[pltpu.VMEM((tn, freq), wdt)],   # [cos | sin] embedding
        ),
        compiler_params=pltpu.CompilerParams(
            dimension_semantics=dim_sem,
            vmem_limit_bytes=vmem_limit,
        ),
        cost_estimate=cost,
    )(t2, w1, b1, w2, b2)

    return out[:n]


def _reference_forward(t, params, frequency_embedding_size=256, max_period=10000.0):
    """Plain-JAX (f32) reference mirroring the PyTorch module exactly."""
    half = frequency_embedding_size // 2
    freqs = jnp.exp(
        -math.log(max_period) * jnp.arange(half, dtype=jnp.float32) / half
    )
    args = t.astype(jnp.float32)[:, None] * freqs[None]
    emb = jnp.concatenate([jnp.cos(args), jnp.sin(args)], axis=-1)
    h = emb @ params["w1"].astype(jnp.float32) + params["b1"].astype(jnp.float32)
    h = h * jax.nn.sigmoid(h)
    return h @ params["w2"].astype(jnp.float32) + params["b2"].astype(jnp.float32)


def _make_params(key, freq, hidden, dtype=jnp.float32):
    k_w1, k_b1, k_w2, k_b2 = jax.random.split(key, 4)
    # Parameters stored as (in_features, out_features) — PyTorch W pre-transposed.
    return {
        "w1": (jax.random.normal(k_w1, (freq, hidden), jnp.float32) * 0.02).astype(dtype),
        "b1": jax.random.normal(k_b1, (hidden,), jnp.float32) * 0.02,
        "w2": (jax.random.normal(k_w2, (hidden, hidden), jnp.float32) * 0.02).astype(dtype),
        "b2": jax.random.normal(k_b2, (hidden,), jnp.float32) * 0.02,
    }


if __name__ == "__main__":
    FREQ = 256
    N = 200           # deliberately not a multiple of the row tile
    HIDDEN = 128      # small, lane-dense hidden size

    key = jax.random.PRNGKey(0)
    k_t, k_p1, k_p2 = jax.random.split(key, 3)
    t = jax.random.uniform(k_t, (N,), jnp.float32, minval=0.0, maxval=1000.0)

    # --- 1) resident-W2 path, f32 weights: tight check against the reference ---
    params_f32 = _make_params(k_p1, FREQ, HIDDEN, jnp.float32)
    ref = _reference_forward(t, params_f32, FREQ)
    out_f32 = jax.block_until_ready(timestep_embedder_forward(t, params_f32, FREQ))
    assert out_f32.shape == (N, HIDDEN)
    assert jnp.allclose(out_f32, ref, atol=1e-4, rtol=1e-4), "f32 resident mismatch"

    # --- 2) resident-W2 path, bf16 weights (recommended default): looser check ---
    params_bf16 = {"w1": params_f32["w1"].astype(jnp.bfloat16), "b1": params_f32["b1"],
                   "w2": params_f32["w2"].astype(jnp.bfloat16), "b2": params_f32["b2"]}
    out_bf16 = jax.block_until_ready(timestep_embedder_forward(t, params_bf16, FREQ))
    assert out_bf16.shape == (N, HIDDEN)
    assert jnp.allclose(out_bf16, ref, atol=2e-2, rtol=2e-2), "bf16 resident mismatch"

    # --- 3) column-tiled path (forced, column axis outer), f32 weights ---
    HIDDEN2 = 256
    params2 = _make_params(k_p2, FREQ, HIDDEN2, jnp.float32)
    ref2 = _reference_forward(t, params2, FREQ)
    out_tiled = jax.block_until_ready(
        timestep_embedder_forward(t, params2, FREQ, col_tile=128, force_tiled=True))
    assert out_tiled.shape == (N, HIDDEN2)
    assert jnp.allclose(out_tiled, ref2, atol=1e-4, rtol=1e-4), "tiled-path mismatch"

    print("KERNEL_OK")
</pallas_src>

<mosaic_0001>
module attributes {stable_mosaic.version = 11 : i64} {
  func.func @_timestep_embedder_kernel(%arg0: i32, %arg1: memref<200x1xf32, #tpu.memory_space<vmem>>, %arg2: memref<256x128xf32, #tpu.memory_space<vmem>>, %arg3: memref<1x128xf32, #tpu.memory_space<vmem>>, %arg4: memref<128x128xf32, #tpu.memory_space<vmem>>, %arg5: memref<1x128xf32, #tpu.memory_space<vmem>>, %arg6: memref<200x128xf32, #tpu.memory_space<vmem>>, %arg7: memref<200x256xf32, #tpu.memory_space<vmem>>) attributes {dimension_semantics = [#tpu.dimension_semantics<parallel>], iteration_bounds = array<i64: 1>, scalar_prefetch = 0 : i64, scratch_operands = 1 : i64, tpu.core_type = #tpu.core_type<tc>, window_params = [{transform_indices = @transform_0, window_bounds = array<i64: 200, 1>}, {pipeline_mode = #tpu.pipeline_mode<synchronous>, transform_indices = @transform_1, window_bounds = array<i64: 256, 128>}, {pipeline_mode = #tpu.pipeline_mode<synchronous>, transform_indices = @transform_2, window_bounds = array<i64: 1, 128>}, {pipeline_mode = #tpu.pipeline_mode<synchronous>, transform_indices = @transform_3, window_bounds = array<i64: 128, 128>}, {pipeline_mode = #tpu.pipeline_mode<synchronous>, transform_indices = @transform_4, window_bounds = array<i64: 1, 128>}, {transform_indices = @transform_5, window_bounds = array<i64: 200, 128>}]} {
    %c0 = arith.constant 0 : index
    %c0_0 = arith.constant 0 : index
    %0 = vector.load %arg1[%c0, %c0_0] : memref<200x1xf32, #tpu.memory_space<vmem>>, vector<200x1xf32>
    %1 = tpu.iota {dimensions = array<i32: 1>} : vector<1x128xi32>
    %2 = arith.sitofp %1 : vector<1x128xi32> to vector<1x128xf32>
    %cst = arith.constant -0.0719557852 : f32
    %3 = vector.broadcast %cst : f32 to vector<1x128xf32>
    %4 = arith.mulf %3, %2 : vector<1x128xf32>
    %5 = math.exp %4 : vector<1x128xf32>
    %6 = vector.broadcast %0 : vector<200x1xf32> to vector<200x128xf32>
    %7 = vector.broadcast %5 : vector<1x128xf32> to vector<200x128xf32>
    %8 = arith.mulf %6, %7 : vector<200x128xf32>
    %9 = math.cos %8 : vector<200x128xf32>
    %c0_1 = arith.constant 0 : index
    %c0_2 = arith.constant 0 : index
    %10 = vector.load %arg7[%c0_1, %c0_2] : memref<200x256xf32, #tpu.memory_space<vmem>>, vector<200x128xf32>
    tpu.vector_store %arg7[%c0_1, %c0_2], %9 {strides = array<i32>} : memref<200x256xf32, #tpu.memory_space<vmem>>, vector<200x128xf32>,
    %11 = math.sin %8 : vector<200x128xf32>
    %c0_3 = arith.constant 0 : index
    %c128 = arith.constant 128 : index
    %12 = vector.load %arg7[%c0_3, %c128] : memref<200x256xf32, #tpu.memory_space<vmem>>, vector<200x128xf32>
    tpu.vector_store %arg7[%c0_3, %c128], %11 {strides = array<i32>} : memref<200x256xf32, #tpu.memory_space<vmem>>, vector<200x128xf32>,
    %c0_4 = arith.constant 0 : index
    %c0_5 = arith.constant 0 : index
    %13 = vector.load %arg7[%c0_4, %c0_5] : memref<200x256xf32, #tpu.memory_space<vmem>>, vector<200x256xf32>
    %c0_6 = arith.constant 0 : index
    %c0_7 = arith.constant 0 : index
    %14 = vector.load %arg2[%c0_6, %c0_7] : memref<256x128xf32, #tpu.memory_space<vmem>>, vector<256x128xf32>
    %cst_8 = arith.constant dense<0.000000e+00> : vector<200x128xf32>
    %15 = tpu.matmul %13, %14, %cst_8 {dimension_numbers = #tpu.dot_dimension_numbers<[1], [0], [0], [1], [0, 0, 1, 1], [], []>} : vector<200x256xf32>, vector<256x128xf32>, vector<200x128xf32> -> vector<200x128xf32>
    %c0_9 = arith.constant 0 : index
    %c0_10 = arith.constant 0 : index
    %16 = vector.load %arg3[%c0_9, %c0_10] : memref<1x128xf32, #tpu.memory_space<vmem>>, vector<1x128xf32>
    %17 = vector.broadcast %16 : vector<1x128xf32> to vector<200x128xf32>
    %18 = arith.addf %15, %17 : vector<200x128xf32>
    %19 = arith.negf %18 : vector<200x128xf32>
    %20 = math.exp %19 : vector<200x128xf32>
    %cst_11 = arith.constant 1.000000e+00 : f32
    %21 = vector.broadcast %cst_11 : f32 to vector<200x128xf32>
    %22 = arith.addf %21, %20 : vector<200x128xf32>
    %23 = arith.divf %21, %22 : vector<200x128xf32>
    %24 = arith.mulf %18, %23 : vector<200x128xf32>
    %c0_12 = arith.constant 0 : index
    %c0_13 = arith.constant 0 : index
    %25 = vector.load %arg4[%c0_12, %c0_13] : memref<128x128xf32, #tpu.memory_space<vmem>>, vector<128x128xf32>
    %cst_14 = arith.constant dense<0.000000e+00> : vector<200x128xf32>
    %26 = tpu.matmul %24, %25, %cst_14 {dimension_numbers = #tpu.dot_dimension_numbers<[1], [0], [0], [1], [0, 0, 1, 1], [], []>} : vector<200x128xf32>, vector<128x128xf32>, vector<200x128xf32> -> vector<200x128xf32>
    %c0_15 = arith.constant 0 : index
    %c0_16 = arith.constant 0 : index
    %27 = vector.load %arg5[%c0_15, %c0_16] : memref<1x128xf32, #tpu.memory_space<vmem>>, vector<1x128xf32>
    %28 = vector.broadcast %27 : vector<1x128xf32> to vector<200x128xf32>
    %29 = arith.addf %26, %28 : vector<200x128xf32>
    %c0_17 = arith.constant 0 : index
    %c0_18 = arith.constant 0 : index
    %30 = vector.load %arg6[%c0_17, %c0_18] : memref<200x128xf32, #tpu.memory_space<vmem>>, vector<200x128xf32>
    tpu.vector_store %arg6[%c0_17, %c0_18], %29 {strides = array<i32>} : memref<200x128xf32, #tpu.memory_space<vmem>>, vector<200x128xf32>,
    return
  }
  func.func @transform_0(%arg0: i32) -> (i32, i32) {
    %c0_i32 = arith.constant 0 : i32
    %c0_i32_0 = arith.constant 0 : i32
    return %arg0, %c0_i32 : i32, i32
  }
  func.func @transform_1(%arg0: i32) -> (i32, i32) {
    %c0_i32 = arith.constant 0 : i32
    %c0_i32_0 = arith.constant 0 : i32
    %c0_i32_1 = arith.constant 0 : i32
    return %c0_i32, %c0_i32_0 : i32, i32
  }
  func.func @transform_2(%arg0: i32) -> (i32, i32) {
    %c0_i32 = arith.constant 0 : i32
    %c0_i32_0 = arith.constant 0 : i32
    %c0_i32_1 = arith.constant 0 : i32
    return %c0_i32, %c0_i32_0 : i32, i32
  }
  func.func @transform_3(%arg0: i32) -> (i32, i32) {
    %c0_i32 = arith.constant 0 : i32
    %c0_i32_0 = arith.constant 0 : i32
    %c0_i32_1 = arith.constant 0 : i32
    return %c0_i32, %c0_i32_0 : i32, i32
  }
  func.func @transform_4(%arg0: i32) -> (i32, i32) {
    %c0_i32 = arith.constant 0 : i32
    %c0_i32_0 = arith.constant 0 : i32
    %c0_i32_1 = arith.constant 0 : i32
    return %c0_i32, %c0_i32_0 : i32, i32
  }
  func.func @transform_5(%arg0: i32) -> (i32, i32) {
    %c0_i32 = arith.constant 0 : i32
    %c0_i32_0 = arith.constant 0 : i32
    return %arg0, %c0_i32 : i32, i32
  }
}

</mosaic_0001>

<llo_original>
// kernel: tpu_custom_call.1
$region0: #{tpu_custom_call.1}
  #allocation0 [shape = 'u32[]', space=smem, size = 0x4, offset = 0x4, fixed_abs, tag = 'smem constant byte address 0x4 - core index']
  #allocation1 [shape = 'u32[144,128]{1,0:T(1,128)}', space=vmem, size = 0x12000, scoped, tag = 'internal scratch']
  #allocation2 [shape = 'f32[200,256]{1,0:T(8,128)}', space=vmem, size = 0x32000, scoped, tag = 'scratch operand']
  %s0 = inlined_call_operand.vmem [shape: f32[200,1], index: 0, kind: input, shape index: {}]
  %s1 = inlined_call_operand.hbm [shape: f32[256,128], index: 1, kind: input, shape index: {}]
  %s2 = inlined_call_operand.vmem [shape: f32[1,128], index: 2, kind: input, shape index: {}]
  %s3 = inlined_call_operand.vmem [shape: f32[128,128], index: 3, kind: input, shape index: {}]
  %s4 = inlined_call_operand.vmem [shape: f32[1,128], index: 4, kind: input, shape index: {}]
  %s5 = inlined_call_operand.hbm [shape: f32[200,128], index: 5, kind: output, shape index: {}]
  %s6 = sld [smem:[#allocation0]]
  $region34: #{tpu_custom_call.1} parent=0
    _
  %s8 = ssub.s32 1, %s6
  %s9 = scalar_select 0, %s8, %s6
  $region1: #{tpu_custom_call.1} parent=0
    #allocation3 [shape = 'u8[131072]{0}', space=vmem, size = 0x20000, scoped, tag = 'input window, operand 1, single buffered']
    #allocation4 [shape = 's32[1]{0}', space=sflag, size = 0x4, scoped, tag = 'scoped memory for tpu_custom_call.1']
    #allocation5 [shape = 's32[1]{0}', space=sflag, size = 0x4, scoped, tag = 'scoped memory for tpu_custom_call.1']
    #allocation6 [shape = 'u8[102400]{0}', space=vmem, size = 0x19000, scoped, tag = 'output window, operand 0, single buffered']
    %10 = vsyncpa [#allocation4], 0
    %11 = vsyncpa [#allocation5], 0
    // Predicated region
    $region2: #{tpu_custom_call.1} parent=1 // pred_check
      _
    $region3: #{tpu_custom_call.1} parent=1 // pred_check_branch
      %13 = sbr.rel (0) target = $region5
    $region4: #{tpu_custom_call.1} parent=1 // pred_region
      _
    $region5: #{tpu_custom_call.1} parent=1 // pred_fallthru
      _
    // Predicated region
    $region6: #{tpu_custom_call.1} parent=1 // pred_check
      _
    $region7: #{tpu_custom_call.1} parent=1 // pred_check_branch
      %15 = sbr.rel (0) target = $region9
    $region8: #{tpu_custom_call.1} parent=1 // pred_region
      %s17 = ssub.s32 4096, 4096
      %18 = vsyncadd [#allocation4], %s17
      %s19 = sshll.u32 [#allocation3], 4
      %s20 = int_to_ptr.vmem [resolvable:$true] %s19
      %25 = dma.hbm_to_vmem [thread:$0]  %s1, 4096, %s20, [#allocation4], 128, 128, 8
    $region9: #{tpu_custom_call.1} parent=1 // pred_fallthru
      _
    // Predicated region
    $region10: #{tpu_custom_call.1} parent=1 // pred_check
      _
    $region11: #{tpu_custom_call.1} parent=1 // pred_check_branch
      %27 = sbr.rel (0) target = $region13
    $region12: #{tpu_custom_call.1} parent=1 // pred_region
      _
    $region13: #{tpu_custom_call.1} parent=1 // pred_fallthru
      _
    // Predicated region
    $region14: #{tpu_custom_call.1} parent=1 // pred_check
      _
    $region15: #{tpu_custom_call.1} parent=1 // pred_check_branch
      %29 = sbr.rel (0) target = $region17
    $region16: #{tpu_custom_call.1} parent=1 // pred_region
      _
    $region17: #{tpu_custom_call.1} parent=1 // pred_fallthru
      _
    // Predicated region
    $region18: #{tpu_custom_call.1} parent=1 // pred_check
      _
    $region19: #{tpu_custom_call.1} parent=1 // pred_check_branch
      %31 = sbr.rel (0) target = $region21
    $region20: #{tpu_custom_call.1} parent=1 // pred_region
      _
    $region21: #{tpu_custom_call.1} parent=1 // pred_fallthru
      _
    // Predicated region
    $region22: #{tpu_custom_call.1} parent=1 // pred_check
      _
    $region23: #{tpu_custom_call.1} parent=1 // pred_check_branch
      %33 = sbr.rel (0) target = $region25
    $region24: #{tpu_custom_call.1} parent=1 // pred_region
      %34 = dma.done [#allocation4], 4096
    $region25: #{tpu_custom_call.1} parent=1 // pred_fallthru
      _
    %v35 = vld [vmem:[%s0] sm:$0xff]
    %v36 = vld [vmem:[%s0 + $0x8] sm:$0xff]
    %v37 = vld [vmem:[%s0 + $0x10] sm:$0xff]
    %v38 = vld [vmem:[%s0 + $0x18] sm:$0xff]
    %v39 = vld [vmem:[%s0 + $0x20] sm:$0xff]
    %v40 = vld [vmem:[%s0 + $0x28] sm:$0xff]
    %v41 = vld [vmem:[%s0 + $0x30] sm:$0xff]
    %v42 = vld [vmem:[%s0 + $0x38] sm:$0xff]
    %v43 = vld [vmem:[%s0 + $0x40] sm:$0xff]
    %v44 = vld [vmem:[%s0 + $0x48] sm:$0xff]
    %v45 = vld [vmem:[%s0 + $0x50] sm:$0xff]
    %v46 = vld [vmem:[%s0 + $0x58] sm:$0xff]
    %v47 = vld [vmem:[%s0 + $0x60] sm:$0xff]
    %v48 = vld [vmem:[%s0 + $0x68] sm:$0xff]
    %v49 = vld [vmem:[%s0 + $0x70] sm:$0xff]
    %v50 = vld [vmem:[%s0 + $0x78] sm:$0xff]
    %v51 = vld [vmem:[%s0 + $0x80] sm:$0xff]
    %v52 = vld [vmem:[%s0 + $0x88] sm:$0xff]
    %v53 = vld [vmem:[%s0 + $0x90] sm:$0xff]
    %v54 = vld [vmem:[%s0 + $0x98] sm:$0xff]
    %v55 = vld [vmem:[%s0 + $0xa0] sm:$0xff]
    %v56 = vld [vmem:[%s0 + $0xa8] sm:$0xff]
    %v57 = vld [vmem:[%s0 + $0xb0] sm:$0xff]
    %v58 = vld [vmem:[%s0 + $0xb8] sm:$0xff]
    %v59 = vld [vmem:[%s0 + $0xc0] sm:$0xff]
    %v60 = vlaneseq
    %v61 = vand.u32 %v60, 127
    %v62 = vcvt.s32.f32 %v61
    %v63 = vmul.f32 %v62, -0.071955785
    %v64 = vmul.f32 %v63, 1.442695
    %v65 = vpow.pop %v64
    %67 = vset.pattern.permute.xlu0 0
    %68 = vperm.xlu0 %67, %v35
    %v69 = vpop.permute.xlu0 %68
    %72 = vset.pattern.permute.xlu0 0
    %73 = vperm.xlu0 %72, %v36
    %v74 = vpop.permute.xlu0 %73
    %77 = vset.pattern.permute.xlu0 0
    %78 = vperm.xlu0 %77, %v37
    %v79 = vpop.permute.xlu0 %78
    %82 = vset.pattern.permute.xlu0 0
    %83 = vperm.xlu0 %82, %v38
    %v84 = vpop.permute.xlu0 %83
    %87 = vset.pattern.permute.xlu0 0
    %88 = vperm.xlu0 %87, %v39
    %v89 = vpop.permute.xlu0 %88
    %92 = vset.pattern.permute.xlu0 0
    %93 = vperm.xlu0 %92, %v40
    %v94 = vpop.permute.xlu0 %93
    %97 = vset.pattern.permute.xlu0 0
    %98 = vperm.xlu0 %97, %v41
    %v99 = vpop.permute.xlu0 %98
    %102 = vset.pattern.permute.xlu0 0
    %103 = vperm.xlu0 %102, %v42
    %v104 = vpop.permute.xlu0 %103
    %107 = vset.pattern.permute.xlu0 0
    %108 = vperm.xlu0 %107, %v43
    %v109 = vpop.permute.xlu0 %108
    %112 = vset.pattern.permute.xlu0 0
    %113 = vperm.xlu0 %112, %v44
    %v114 = vpop.permute.xlu0 %113
    %117 = vset.pattern.permute.xlu0 0
    %118 = vperm.xlu0 %117, %v45
    %v119 = vpop.permute.xlu0 %118
    %122 = vset.pattern.permute.xlu0 0
    %123 = vperm.xlu0 %122, %v46
    %v124 = vpop.permute.xlu0 %123
    %127 = vset.pattern.permute.xlu0 0
    %128 = vperm.xlu0 %127, %v47
    %v129 = vpop.permute.xlu0 %128
    %132 = vset.pattern.permute.xlu0 0
    %133 = vperm.xlu0 %132, %v48
    %v134 = vpop.permute.xlu0 %133
    %137 = vset.pattern.permute.xlu0 0
    %138 = vperm.xlu0 %137, %v49
    %v139 = vpop.permute.xlu0 %138
    %142 = vset.pattern.permute.xlu0 0
    %143 = vperm.xlu0 %142, %v50
    %v144 = vpop.permute.xlu0 %143
    %147 = vset.pattern.permute.xlu0 0
    %148 = vperm.xlu0 %147, %v51
    %v149 = vpop.permute.xlu0 %148
    %152 = vset.pattern.permute.xlu0 0
    %153 = vperm.xlu0 %152, %v52
    %v154 = vpop.permute.xlu0 %153
    %157 = vset.pattern.permute.xlu0 0
    %158 = vperm.xlu0 %157, %v53
    %v159 = vpop.permute.xlu0 %158
    %162 = vset.pattern.permute.xlu0 0
    %163 = vperm.xlu0 %162, %v54
    %v164 = vpop.permute.xlu0 %163
    %167 = vset.pattern.permute.xlu0 0
    %168 = vperm.xlu0 %167, %v55
    %v169 = vpop.permute.xlu0 %168
    %172 = vset.pattern.permute.xlu0 0
    %173 = vperm.xlu0 %172, %v56
    %v174 = vpop.permute.xlu0 %173
    %177 = vset.pattern.permute.xlu0 0
    %178 = vperm.xlu0 %177, %v57
    %v179 = vpop.permute.xlu0 %178
    %182 = vset.pattern.permute.xlu0 0
    %183 = vperm.xlu0 %182, %v58
    %v184 = vpop.permute.xlu0 %183
    %187 = vset.pattern.permute.xlu0 0
    %188 = vperm.xlu0 %187, %v59
    %v189 = vpop.permute.xlu0 %188
    %v191 = vmul.f32 %v69, %v65
    %v192 = vmul.f32 %v74, %v65
    %v193 = vmul.f32 %v79, %v65
    %v194 = vmul.f32 %v84, %v65
    %v195 = vmul.f32 %v89, %v65
    %v196 = vmul.f32 %v94, %v65
    %v197 = vmul.f32 %v99, %v65
    %v198 = vmul.f32 %v104, %v65
    %v199 = vmul.f32 %v109, %v65
    %v200 = vmul.f32 %v114, %v65
    %v201 = vmul.f32 %v119, %v65
    %v202 = vmul.f32 %v124, %v65
    %v203 = vmul.f32 %v129, %v65
    %v204 = vmul.f32 %v134, %v65
    %v205 = vmul.f32 %v139, %v65
    %v206 = vmul.f32 %v144, %v65
    %v207 = vmul.f32 %v149, %v65
    %v208 = vmul.f32 %v154, %v65
    %v209 = vmul.f32 %v159, %v65
    %v210 = vmul.f32 %v164, %v65
    %v211 = vmul.f32 %v169, %v65
    %v212 = vmul.f32 %v174, %v65
    %v213 = vmul.f32 %v179, %v65
    %v214 = vmul.f32 %v184, %v65
    %v215 = vmul.f32 %v189, %v65
    %v216 = vand.u32 2147483647, %v191
    %vm217 = vcmp.le.f32.partialorder %v216, 0.7853982
    %vm218 = vcmp.lt.s32.totalorder %v191, 0
    %v219 = vand.u32 %v191, 2139095040
    %v220 = vshrl.u32 %v219, 23
    %v221 = vsub.s32 %v220, 127
    %v222 = vand.u32 2147483647, %v191
    %v223 = vand.u32 %v222, 8388607
    %v224 = vor.u32 %v223, 8388608
    %v225 = vsub.s32 0, %v224
    %v226 = vadd.s32 %v221, 1
    %vm227 = vcmp.gt.s32.totalorder %v226, 0
    %v228 = vsel %vm227, %v226, 0
    %v229 = vshrl.u32 %v228, 5
    %v230 = vand.u32 %v228, 31
    %v231 = vsub.s32 32, %v230
    %v232 = vshrl.u32 683565275, %v231
    %v233 = vshll.u32 683565275, %v230
    %v234 = vshrl.u32 2475754826, %v231
    %v235 = vor.u32 %v233, %v234
    %v236 = vshll.u32 2475754826, %v230
    %v237 = vshrl.u32 2131351028, %v231
    %v238 = vor.u32 %v236, %v237
    %v239 = vshll.u32 2131351028, %v230
    %v240 = vshrl.u32 2102212464, %v231
    %v241 = vor.u32 %v239, %v240
    %v242 = vshll.u32 2102212464, %v230
    %v243 = vshrl.u32 920167782, %v231
    %v244 = vor.u32 %v242, %v243
    %v245 = vshll.u32 920167782, %v230
    %v246 = vshrl.u32 1326507024, %v231
    %v247 = vor.u32 %v245, %v246
    %vm248 = vcmp.lt.s32.totalorder %v229, 1
    %vm249 = vcmp.lt.s32.totalorder %v229, 2
    %vm250 = vcmp.lt.s32.totalorder %v229, 3
    %vm251 = vcmp.lt.s32.totalorder %v229, 4
    %v252 = vsel %vm248, %v232, %v235
    %v253 = vsel %vm251, %v241, 2102212464
    %v254 = vsel %vm250, %v238, %v253
    %v255 = vsel %vm249, %v252, %v254
    %v256 = vsel %vm248, %v235, %v238
    %v257 = vsel %vm251, %v244, 920167782
    %v258 = vsel %vm250, %v241, %v257
    %v259 = vsel %vm249, %v256, %v258
    %v260 = vsel %vm248, %v238, %v241
    %v261 = vsel %vm251, %v247, 1326507024
    %v262 = vsel %vm250, %v244, %v261
    %v263 = vsel %vm249, %v260, %v262
    %v264 = vshll.u32 %v224, 8
    %v265 = vmul.u32.u64.compose %v264, %v263
    %v266 = vextract.low.u32 %v265
    %v267 = vextract.high.u32 %v265
    %v268 = vmul.u32.u64.compose %v264, %v259
    %v269 = vextract.low.u32 %v268
    %v270 = vextract.high.u32 %v268
    %v271 = vmul.u32 %v264, %v255
    %v272 = vadd.s32 %v267, %v269
    %vm273 = vc.u32 %v267, %v269
    %v274 = vadd.s32 %v270, 1
    %v275 = vsel %vm273, %v274, %v270
    %v276 = vadd.s32 %v271, %v275
    %v277 = vadd.s32 %v276, 536870912
    %v278 = vshrl.u32 %v277, 30
    %v279 = vshll.u32 %v278, 30
    %v280 = vsub.s32 %v276, %v279
    %vm281 = vcmp.lt.s32.totalorder %v280, 0
    %v282 = vsub.s32 0, %v280
    %v283 = vsel %vm281, %v282, %v280
    %v284 = vclz %v283
    %v285 = vsub.s32 %v284, 2
    %vm286 = vcmp.gt.s32.totalorder 0, %v285
    %v287 = vsel %vm286, 0, %v285
    %v288 = vsub.s32 32, %v287
    %v289 = vshll.u32 %v280, %v287
    %v290 = vshrl.u32 %v272, %v288
    %v291 = vor.u32 %v289, %v290
    %v292 = vsub.s32 4294967266, %v287
    %v293 = vadd.s32 %v292, 127
    %v294 = vshll.u32 %v293, 23
    %v295 = vor.u32 4788187, %v294
    %v296 = vand.u32 2147483647, %v295
    %v298 = vcvt.s32.f32 %v291
    %v299 = vmul.f32 %v298, %v296
    %v300 = vxor.u32 %v299, 2147483648
    %v301 = vsel %vm218, %v300, %v299
    %v302 = vsub.s32 4, %v278
    %v303 = vsel %vm218, %v302, %v278
    %v304 = vsel %vm217, %v191, %v301
    %v305 = vsel %vm217, 0, %v303
    %v306 = vcosq.f32.pop %v304
    %v307 = vsinq.f32.pop %v304
    %vm308 = vweird.f32 %v191
    %v309 = vand.u32 %v305, 3
    %vm310 = vcmp.lt.s32.totalorder %v309, 2
    %vm311 = vcmp.eq.s32.totalorder %v309, 0
    %v312 = vxor.u32 %v307, 2147483648
    %v313 = vsel %vm311, %v306, %v312
    %vm314 = vcmp.eq.s32.totalorder %v309, 2
    %v315 = vxor.u32 %v306, 2147483648
    %v316 = vsel %vm314, %v315, %v307
    %v317 = vsel %vm310, %v313, %v316
    %v318 = vsel %vm308, nan, %v317
    %v319 = vand.u32 2147483647, %v192
    %vm320 = vcmp.le.f32.partialorder %v319, 0.7853982
    %vm321 = vcmp.lt.s32.totalorder %v192, 0
    %v322 = vand.u32 %v192, 2139095040
    %v323 = vshrl.u32 %v322, 23
    %v324 = vsub.s32 %v323, 127
    %v325 = vand.u32 2147483647, %v192
    %v326 = vand.u32 %v325, 8388607
    %v327 = vor.u32 %v326, 8388608
    %v328 = vsub.s32 0, %v327
    %v329 = vadd.s32 %v324, 1
    %vm330 = vcmp.gt.s32.totalorder %v329, 0
    %v331 = vsel %vm330, %v329, 0
    %v332 = vshrl.u32 %v331, 5
    %v333 = vand.u32 %v331, 31
    %v334 = vsub.s32 32, %v333
    %v335 = vshrl.u32 683565275, %v334
    %v336 = vshll.u32 683565275, %v333
    %v337 = vshrl.u32 2475754826, %v334
    %v338 = vor.u32 %v336, %v337
    %v339 = vshll.u32 2475754826, %v333
    %v340 = vshrl.u32 2131351028, %v334
    %v341 = vor.u32 %v339, %v340
    %v342 = vshll.u32 2131351028, %v333
    %v343 = vshrl.u32 2102212464, %v334
    %v344 = vor.u32 %v342, %v343
    %v345 = vshll.u32 2102212464, %v333
    %v346 = vshrl.u32 920167782, %v334
    %v347 = vor.u32 %v345, %v346
    %v348 = vshll.u32 920167782, %v333
    %v349 = vshrl.u32 1326507024, %v334
    %v350 = vor.u32 %v348, %v349
    %vm351 = vcmp.lt.s32.totalorder %v332, 1
    %vm352 = vcmp.lt.s32.totalorder %v332, 2
    %vm353 = vcmp.lt.s32.totalorder %v332, 3
    %vm354 = vcmp.lt.s32.totalorder %v332, 4
    %v355 = vsel %vm351, %v335, %v338
    %v356 = vsel %vm354, %v344, 2102212464
    %v357 = vsel %vm353, %v341, %v356
    %v358 = vsel %vm352, %v355, %v357
    %v359 = vsel %vm351, %v338, %v341
    %v360 = vsel %vm354, %v347, 920167782
    %v361 = vsel %vm353, %v344, %v360
    %v362 = vsel %vm352, %v359, %v361
    %v363 = vsel %vm351, %v341, %v344
    %v364 = vsel %vm354, %v350, 1326507024
    %v365 = vsel %vm353, %v347, %v364
    %v366 = vsel %vm352, %v363, %v365
    %v367 = vshll.u32 %v327, 8
    %v368 = vmul.u32.u64.compose %v367, %v366
    %v369 = vextract.low.u32 %v368
    %v370 = vextract.high.u32 %v368
    %v371 = vmul.u32.u64.compose %v367, %v362
    %v372 = vextract.low.u32 %v371
    %v373 = vextract.high.u32 %v371
    %v374 = vmul.u32 %v367, %v358
    %v375 = vadd.s32 %v370, %v372
    %vm376 = vc.u32 %v370, %v372
    %v377 = vadd.s32 %v373, 1
    %v378 = vsel %vm376, %v377, %v373
    %v379 = vadd.s32 %v374, %v378
    %v380 = vadd.s32 %v379, 536870912
    %v381 = vshrl.u32 %v380, 30
    %v382 = vshll.u32 %v381, 30
    %v383 = vsub.s32 %v379, %v382
    %vm384 = vcmp.lt.s32.totalorder %v383, 0
    %v385 = vsub.s32 0, %v383
    %v386 = vsel %vm384, %v385, %v383
    %v387 = vclz %v386
    %v388 = vsub.s32 %v387, 2
    %vm389 = vcmp.gt.s32.totalorder 0, %v388
    %v390 = vsel %vm389, 0, %v388
    %v391 = vsub.s32 32, %v390
    %v392 = vshll.u32 %v383, %v390
    %v393 = vshrl.u32 %v375, %v391
    %v394 = vor.u32 %v392, %v393
    %v395 = vsub.s32 4294967266, %v390
    %v396 = vadd.s32 %v395, 127
    %v397 = vshll.u32 %v396, 23
    %v398 = vor.u32 4788187, %v397
    %v399 = vand.u32 2147483647, %v398
    %v401 = vcvt.s32.f32 %v394
    %v402 = vmul.f32 %v401, %v399
    %v403 = vxor.u32 %v402, 2147483648
    %v404 = vsel %vm321, %v403, %v402
    %v405 = vsub.s32 4, %v381
    %v406 = vsel %vm321, %v405, %v381
    %v407 = vsel %vm320, %v192, %v404
    %v408 = vsel %vm320, 0, %v406
    %v409 = vcosq.f32.pop %v407
    %v410 = vsinq.f32.pop %v407
    %vm411 = vweird.f32 %v192
    %v412 = vand.u32 %v408, 3
    %vm413 = vcmp.lt.s32.totalorder %v412, 2
    %vm414 = vcmp.eq.s32.totalorder %v412, 0
    %v415 = vxor.u32 %v410, 2147483648
    %v416 = vsel %vm414, %v409, %v415
    %vm417 = vcmp.eq.s32.totalorder %v412, 2
    %v418 = vxor.u32 %v409, 2147483648
    %v419 = vsel %vm417, %v418, %v410
    %v420 = vsel %vm413, %v416, %v419
    %v421 = vsel %vm411, nan, %v420
    %v422 = vand.u32 2147483647, %v193
    %vm423 = vcmp.le.f32.partialorder %v422, 0.7853982
    %vm424 = vcmp.lt.s32.totalorder %v193, 0
    %v425 = vand.u32 %v193, 2139095040
    %v426 = vshrl.u32 %v425, 23
    %v427 = vsub.s32 %v426, 127
    %v428 = vand.u32 2147483647, %v193
    %v429 = vand.u32 %v428, 8388607
    %v430 = vor.u32 %v429, 8388608
    %v431 = vsub.s32 0, %v430
    %v432 = vadd.s32 %v427, 1
    %vm433 = vcmp.gt.s32.totalorder %v432, 0
    %v434 = vsel %vm433, %v432, 0
    %v435 = vshrl.u32 %v434, 5
    %v436 = vand.u32 %v434, 31
    %v437 = vsub.s32 32, %v436
    %v438 = vshrl.u32 683565275, %v437
    %v439 = vshll.u32 683565275, %v436
    %v440 = vshrl.u32 2475754826, %v437
    %v441 = vor.u32 %v439, %v440
    %v442 = vshll.u32 2475754826, %v436
    %v443 = vshrl.u32 2131351028, %v437
    %v444 = vor.u32 %v442, %v443
    %v445 = vshll.u32 2131351028, %v436
    %v446 = vshrl.u32 2102212464, %v437
    %v447 = vor.u32 %v445, %v446
    %v448 = vshll.u32 2102212464, %v436
    %v449 = vshrl.u32 920167782, %v437
    %v450 = vor.u32 %v448, %v449
    %v451 = vshll.u32 920167782, %v436
    %v452 = vshrl.u32 1326507024, %v437
    %v453 = vor.u32 %v451, %v452
    %vm454 = vcmp.lt.s32.totalorder %v435, 1
    %vm455 = vcmp.lt.s32.totalorder %v435, 2
    %vm456 = vcmp.lt.s32.totalorder %v435, 3
    %vm457 = vcmp.lt.s32.totalorder %v435, 4
    %v458 = vsel %vm454, %v438, %v441
    %v459 = vsel %vm457, %v447, 2102212464
    %v460 = vsel %vm456, %v444, %v459
    %v461 = vsel %vm455, %v458, %v460
    %v462 = vsel %vm454, %v441, %v444
    %v463 = vsel %vm457, %v450, 920167782
    %v464 = vsel %vm456, %v447, %v463
    %v465 = vsel %vm455, %v462, %v464
    %v466 = vsel %vm454, %v444, %v447
    %v467 = vsel %vm457, %v453, 1326507024
    %v468 = vsel %vm456, %v450, %v467
    %v469 = vsel %vm455, %v466, %v468
    %v470 = vshll.u32 %v430, 8
    %v471 = vmul.u32.u64.compose %v470, %v469
    %v472 = vextract.low.u32 %v471
    %v473 = vextract.high.u32 %v471
    %v474 = vmul.u32.u64.compose %v470, %v465
    %v475 = vextract.low.u32 %v474
    %v476 = vextract.high.u32 %v474
    %v477 = vmul.u32 %v470, %v461
    %v478 = vadd.s32 %v473, %v475
    %vm479 = vc.u32 %v473, %v475
    %v480 = vadd.s32 %v476, 1
    %v481 = vsel %vm479, %v480, %v476
    %v482 = vadd.s32 %v477, %v481
    %v483 = vadd.s32 %v482, 536870912
    %v484 = vshrl.u32 %v483, 30
    %v485 = vshll.u32 %v484, 30
    %v486 = vsub.s32 %v482, %v485
    %vm487 = vcmp.lt.s32.totalorder %v486, 0
    %v488 = vsub.s32 0, %v486
    %v489 = vsel %vm487, %v488, %v486
    %v490 = vclz %v489
    %v491 = vsub.s32 %v490, 2
    %vm492 = vcmp.gt.s32.totalorder 0, %v491
    %v493 = vsel %vm492, 0, %v491
    %v494 = vsub.s32 32, %v493
    %v495 = vshll.u32 %v486, %v493
    %v496 = vshrl.u32 %v478, %v494
    %v497 = vor.u32 %v495, %v496
    %v498 = vsub.s32 4294967266, %v493
    %v499 = vadd.s32 %v498, 127
    %v500 = vshll.u32 %v499, 23
    %v501 = vor.u32 4788187, %v500
    %v502 = vand.u32 2147483647, %v501
    %v504 = vcvt.s32.f32 %v497
    %v505 = vmul.f32 %v504, %v502
    %v506 = vxor.u32 %v505, 2147483648
    %v507 = vsel %vm424, %v506, %v505
    %v508 = vsub.s32 4, %v484
    %v509 = vsel %vm424, %v508, %v484
    %v510 = vsel %vm423, %v193, %v507
    %v511 = vsel %vm423, 0, %v509
    %v512 = vcosq.f32.pop %v510
    %v513 = vsinq.f32.pop %v510
    %vm514 = vweird.f32 %v193
    %v515 = vand.u32 %v511, 3
    %vm516 = vcmp.lt.s32.totalorder %v515, 2
    %vm517 = vcmp.eq.s32.totalorder %v515, 0
    %v518 = vxor.u32 %v513, 2147483648
    %v519 = vsel %vm517, %v512, %v518
    %vm520 = vcmp.eq.s32.totalorder %v515, 2
    %v521 = vxor.u32 %v512, 2147483648
    %v522 = vsel %vm520, %v521, %v513
    %v523 = vsel %vm516, %v519, %v522
    %v524 = vsel %vm514, nan, %v523
    %v525 = vand.u32 2147483647, %v194
    %vm526 = vcmp.le.f32.partialorder %v525, 0.7853982
    %vm527 = vcmp.lt.s32.totalorder %v194, 0
    %v528 = vand.u32 %v194, 2139095040
    %v529 = vshrl.u32 %v528, 23
    %v530 = vsub.s32 %v529, 127
    %v531 = vand.u32 2147483647, %v194
    %v532 = vand.u32 %v531, 8388607
    %v533 = vor.u32 %v532, 8388608
    %v534 = vsub.s32 0, %v533
    %v535 = vadd.s32 %v530, 1
    %vm536 = vcmp.gt.s32.totalorder %v535, 0
    %v537 = vsel %vm536, %v535, 0
    %v538 = vshrl.u32 %v537, 5
    %v539 = vand.u32 %v537, 31
    %v540 = vsub.s32 32, %v539
    %v541 = vshrl.u32 683565275, %v540
    %v542 = vshll.u32 683565275, %v539
    %v543 = vshrl.u32 2475754826, %v540
    %v544 = vor.u32 %v542, %v543
    %v545 = vshll.u32 2475754826, %v539
    %v546 = vshrl.u32 2131351028, %v540
    %v547 = vor.u32 %v545, %v546
    %v548 = vshll.u32 2131351028, %v539
    %v549 = vshrl.u32 2102212464, %v540
    %v550 = vor.u32 %v548, %v549
    %v551 = vshll.u32 2102212464, %v539
    %v552 = vshrl.u32 920167782, %v540
    %v553 = vor.u32 %v551, %v552
    %v554 = vshll.u32 920167782, %v539
    %v555 = vshrl.u32 1326507024, %v540
    %v556 = vor.u32 %v554, %v555
    %vm557 = vcmp.lt.s32.totalorder %v538, 1
    %vm558 = vcmp.lt.s32.totalorder %v538, 2
    %vm559 = vcmp.lt.s32.totalorder %v538, 3
    %vm560 = vcmp.lt.s32.totalorder %v538, 4
    %v561 = vsel %vm557, %v541, %v544
    %v562 = vsel %vm560, %v550, 2102212464
    %v563 = vsel %vm559, %v547, %v562
    %v564 = vsel %vm558, %v561, %v563
    %v565 = vsel %vm557, %v544, %v547
    %v566 = vsel %vm560, %v553, 920167782
    %v567 = vsel %vm559, %v550, %v566
    %v568 = vsel %vm558, %v565, %v567
    %v569 = vsel %vm557, %v547, %v550
    %v570 = vsel %vm560, %v556, 1326507024
    %v571 = vsel %vm559, %v553, %v570
    %v572 = vsel %vm558, %v569, %v571
    %v573 = vshll.u32 %v533, 8
    %v574 = vmul.u32.u64.compose %v573, %v572
    %v575 = vextract.low.u32 %v574
    %v576 = vextract.high.u32 %v574
    %v577 = vmul.u32.u64.compose %v573, %v568
    %v578 = vextract.low.u32 %v577
    %v579 = vextract.high.u32 %v577
    %v580 = vmul.u32 %v573, %v564
    %v581 = vadd.s32 %v576, %v578
    %vm582 = vc.u32 %v576, %v578
    %v583 = vadd.s32 %v579, 1
    %v584 = vsel %vm582, %v583, %v579
    %v585 = vadd.s32 %v580, %v584
    %v586 = vadd.s32 %v585, 536870912
    %v587 = vshrl.u32 %v586, 30
    %v588 = vshll.u32 %v587, 30
    %v589 = vsub.s32 %v585, %v588
    %vm590 = vcmp.lt.s32.totalorder %v589, 0
    %v591 = vsub.s32 0, %v589
    %v592 = vsel %vm590, %v591, %v589
    %v593 = vclz %v592
    %v594 = vsub.s32 %v593, 2
    %vm595 = vcmp.gt.s32.totalorder 0, %v594
    %v596 = vsel %vm595, 0, %v594
    %v597 = vsub.s32 32, %v596
    %v598 = vshll.u32 %v589, %v596
    %v599 = vshrl.u32 %v581, %v597
    %v600 = vor.u32 %v598, %v599
    %v601 = vsub.s32 4294967266, %v596
    %v602 = vadd.s32 %v601, 127
    %v603 = vshll.u32 %v602, 23
    %v604 = vor.u32 4788187, %v603
    %v605 = vand.u32 2147483647, %v604
    %v607 = vcvt.s32.f32 %v600
    %v608 = vmul.f32 %v607, %v605
    %v609 = vxor.u32 %v608, 2147483648
    %v610 = vsel %vm527, %v609, %v608
    %v611 = vsub.s32 4, %v587
    %v612 = vsel %vm527, %v611, %v587
    %v613 = vsel %vm526, %v194, %v610
    %v614 = vsel %vm526, 0, %v612
    %v615 = vcosq.f32.pop %v613
    %v616 = vsinq.f32.pop %v613
    %vm617 = vweird.f32 %v194
    %v618 = vand.u32 %v614, 3
    %vm619 = vcmp.lt.s32.totalorder %v618, 2
    %vm620 = vcmp.eq.s32.totalorder %v618, 0
    %v621 = vxor.u32 %v616, 2147483648
    %v622 = vsel %vm620, %v615, %v621
    %vm623 = vcmp.eq.s32.totalorder %v618, 2
    %v624 = vxor.u32 %v615, 2147483648
    %v625 = vsel %vm623, %v624, %v616
    %v626 = vsel %vm619, %v622, %v625
    %v627 = vsel %vm617, nan, %v626
    %v628 = vand.u32 2147483647, %v195
    %vm629 = vcmp.le.f32.partialorder %v628, 0.7853982
    %vm630 = vcmp.lt.s32.totalorder %v195, 0
    %v631 = vand.u32 %v195, 2139095040
    %v632 = vshrl.u32 %v631, 23
    %v633 = vsub.s32 %v632, 127
    %v634 = vand.u32 2147483647, %v195
    %v635 = vand.u32 %v634, 8388607
    %v636 = vor.u32 %v635, 8388608
    %v637 = vsub.s32 0, %v636
    %v638 = vadd.s32 %v633, 1
    %vm639 = vcmp.gt.s32.totalorder %v638, 0
    %v640 = vsel %vm639, %v638, 0
    %v641 = vshrl.u32 %v640, 5
    %v642 = vand.u32 %v640, 31
    %v643 = vsub.s32 32, %v642
    %v644 = vshrl.u32 683565275, %v643
    %v645 = vshll.u32 683565275, %v642
    %v646 = vshrl.u32 2475754826, %v643
    %v647 = vor.u32 %v645, %v646
    %v648 = vshll.u32 2475754826, %v642
    %v649 = vshrl.u32 2131351028, %v643
    %v650 = vor.u32 %v648, %v649
    %v651 = vshll.u32 2131351028, %v642
    %v652 = vshrl.u32 2102212464, %v643
    %v653 = vor.u32 %v651, %v652
    %v654 = vshll.u32 2102212464, %v642
    %v655 = vshrl.u32 920167782, %v643
    %v656 = vor.u32 %v654, %v655
    %v657 = vshll.u32 920167782, %v642
    %v658 = vshrl.u32 1326507024, %v643
    %v659 = vor.u32 %v657, %v658
    %vm660 = vcmp.lt.s32.totalorder %v641, 1
    %vm661 = vcmp.lt.s32.totalorder %v641, 2
    %vm662 = vcmp.lt.s32.totalorder %v641, 3
    %vm663 = vcmp.lt.s32.totalorder %v641, 4
    %v664 = vsel %vm660, %v644, %v647
    %v665 = vsel %vm663, %v653, 2102212464
    %v666 = vsel %vm662, %v650, %v665
    %v667 = vsel %vm661, %v664, %v666
    %v668 = vsel %vm660, %v647, %v650
    %v669 = vsel %vm663, %v656, 920167782
    %v670 = vsel %vm662, %v653, %v669
    %v671 = vsel %vm661, %v668, %v670
    %v672 = vsel %vm660, %v650, %v653
    %v673 = vsel %vm663, %v659, 1326507024
    %v674 = vsel %vm662, %v656, %v673
    %v675 = vsel %vm661, %v672, %v674
    %v676 = vshll.u32 %v636, 8
    %v677 = vmul.u32.u64.compose %v676, %v675
    %v678 = vextract.low.u32 %v677
    %v679 = vextract.high.u32 %v677
    %v680 = vmul.u32.u64.compose %v676, %v671
    %v681 = vextract.low.u32 %v680
    %v682 = vextract.high.u32 %v680
    %v683 = vmul.u32 %v676, %v667
    %v684 = vadd.s32 %v679, %v681
    %vm685 = vc.u32 %v679, %v681
    %v686 = vadd.s32 %v682, 1
    %v687 = vsel %vm685, %v686, %v682
    %v688 = vadd.s32 %v683, %v687
    %v689 = vadd.s32 %v688, 536870912
    %v690 = vshrl.u32 %v689, 30
    %v691 = vshll.u32 %v690, 30
    %v692 = vsub.s32 %v688, %v691
    %vm693 = vcmp.lt.s32.totalorder %v692, 0
    %v694 = vsub.s32 0, %v692
    %v695 = vsel %vm693, %v694, %v692
    %v696 = vclz %v695
    %v697 = vsub.s32 %v696, 2
    %vm698 = vcmp.gt.s32.totalorder 0, %v697
    %v699 = vsel %vm698, 0, %v697
    %v700 = vsub.s32 32, %v699
    %v701 = vshll.u32 %v692, %v699
    %v702 = vshrl.u32 %v684, %v700
    %v703 = vor.u32 %v701, %v702
    %v704 = vsub.s32 4294967266, %v699
    %v705 = vadd.s32 %v704, 127
    %v706 = vshll.u32 %v705, 23
    %v707 = vor.u32 4788187, %v706
    %v708 = vand.u32 2147483647, %v707
    %v710 = vcvt.s32.f32 %v703
    %v711 = vmul.f32 %v710, %v708
    %v712 = vxor.u32 %v711, 2147483648
    %v713 = vsel %vm630, %v712, %v711
    %v714 = vsub.s32 4, %v690
    %v715 = vsel %vm630, %v714, %v690
    %v716 = vsel %vm629, %v195, %v713
    %v717 = vsel %vm629, 0, %v715
    %v718 = vcosq.f32.pop %v716
    %v719 = vsinq.f32.pop %v716
    %vm720 = vweird.f32 %v195
    %v721 = vand.u32 %v717, 3
    %vm722 = vcmp.lt.s32.totalorder %v721, 2
    %vm723 = vcmp.eq.s32.totalorder %v721, 0
    %v724 = vxor.u32 %v719, 2147483648
    %v725 = vsel %vm723, %v718, %v724
    %vm726 = vcmp.eq.s32.totalorder %v721, 2
    %v727 = vxor.u32 %v718, 2147483648
    %v728 = vsel %vm726, %v727, %v719
    %v729 = vsel %vm722, %v725, %v728
    %v730 = vsel %vm720, nan, %v729
    %v731 = vand.u32 2147483647, %v196
    %vm732 = vcmp.le.f32.partialorder %v731, 0.7853982
    %vm733 = vcmp.lt.s32.totalorder %v196, 0
    %v734 = vand.u32 %v196, 2139095040
    %v735 = vshrl.u32 %v734, 23
    %v736 = vsub.s32 %v735, 127
    %v737 = vand.u32 2147483647, %v196
    %v738 = vand.u32 %v737, 8388607
    %v739 = vor.u32 %v738, 8388608
    %v740 = vsub.s32 0, %v739
    %v741 = vadd.s32 %v736, 1
    %vm742 = vcmp.gt.s32.totalorder %v741, 0
    %v743 = vsel %vm742, %v741, 0
    %v744 = vshrl.u32 %v743, 5
    %v745 = vand.u32 %v743, 31
    %v746 = vsub.s32 32, %v745
    %v747 = vshrl.u32 683565275, %v746
    %v748 = vshll.u32 683565275, %v745
    %v749 = vshrl.u32 2475754826, %v746
    %v750 = vor.u32 %v748, %v749
    %v751 = vshll.u32 2475754826, %v745
    %v752 = vshrl.u32 2131351028, %v746
    %v753 = vor.u32 %v751, %v752
    %v754 = vshll.u32 2131351028, %v745
    %v755 = vshrl.u32 2102212464, %v746
    %v756 = vor.u32 %v754, %v755
    %v757 = vshll.u32 2102212464, %v745
    %v758 = vshrl.u32 920167782, %v746
    %v759 = vor.u32 %v757, %v758
    %v760 = vshll.u32 920167782, %v745
    %v761 = vshrl.u32 1326507024, %v746
    %v762 = vor.u32 %v760, %v761
    %vm763 = vcmp.lt.s32.totalorder %v744, 1
    %vm764 = vcmp.lt.s32.totalorder %v744, 2
    %vm765 = vcmp.lt.s32.totalorder %v744, 3
    %vm766 = vcmp.lt.s32.totalorder %v744, 4
    %v767 = vsel %vm763, %v747, %v750
    %v768 = vsel %vm766, %v756, 2102212464
    %v769 = vsel %vm765, %v753, %v768
    %v770 = vsel %vm764, %v767, %v769
    %v771 = vsel %vm763, %v750, %v753
    %v772 = vsel %vm766, %v759, 920167782
    %v773 = vsel %vm765, %v756, %v772
    %v774 = vsel %vm764, %v771, %v773
    %v775 = vsel %vm763, %v753, %v756
    %v776 = vsel %vm766, %v762, 1326507024
    %v777 = vsel %vm765, %v759, %v776
    %v778 = vsel %vm764, %v775, %v777
    %v779 = vshll.u32 %v739, 8
    %v780 = vmul.u32.u64.compose %v779, %v778
    %v781 = vextract.low.u32 %v780
    %v782 = vextract.high.u32 %v780
    %v783 = vmul.u32.u64.compose %v779, %v774
    %v784 = vextract.low.u32 %v783
    %v785 = vextract.high.u32 %v783
    %v786 = vmul.u32 %v779, %v770
    %v787 = vadd.s32 %v782, %v784
    %vm788 = vc.u32 %v782, %v784
    %v789 = vadd.s32 %v785, 1
    %v790 = vsel %vm788, %v789, %v785
    %v791 = vadd.s32 %v786, %v790
    %v792 = vadd.s32 %v791, 536870912
    %v793 = vshrl.u32 %v792, 30
    %v794 = vshll.u32 %v793, 30
    %v795 = vsub.s32 %v791, %v794
    %vm796 = vcmp.lt.s32.totalorder %v795, 0
    %v797 = vsub.s32 0, %v795
    %v798 = vsel %vm796, %v797, %v795
    %v799 = vclz %v798
    %v800 = vsub.s32 %v799, 2
    %vm801 = vcmp.gt.s32.totalorder 0, %v800
    %v802 = vsel %vm801, 0, %v800
    %v803 = vsub.s32 32, %v802
    %v804 = vshll.u32 %v795, %v802
    %v805 = vshrl.u32 %v787, %v803
    %v806 = vor.u32 %v804, %v805
    %v807 = vsub.s32 4294967266, %v802
    %v808 = vadd.s32 %v807, 127
    %v809 = vshll.u32 %v808, 23
    %v810 = vor.u32 4788187, %v809
    %v811 = vand.u32 2147483647, %v810
    %v813 = vcvt.s32.f32 %v806
    %v814 = vmul.f32 %v813, %v811
    %v815 = vxor.u32 %v814, 2147483648
    %v816 = vsel %vm733, %v815, %v814
    %v817 = vsub.s32 4, %v793
    %v818 = vsel %vm733, %v817, %v793
    %v819 = vsel %vm732, %v196, %v816
    %v820 = vsel %vm732, 0, %v818
    %v821 = vcosq.f32.pop %v819
    %v822 = vsinq.f32.pop %v819
    %vm823 = vweird.f32 %v196
    %v824 = vand.u32 %v820, 3
    %vm825 = vcmp.lt.s32.totalorder %v824, 2
    %vm826 = vcmp.eq.s32.totalorder %v824, 0
    %v827 = vxor.u32 %v822, 2147483648
    %v828 = vsel %vm826, %v821, %v827
    %vm829 = vcmp.eq.s32.totalorder %v824, 2
    %v830 = vxor.u32 %v821, 2147483648
    %v831 = vsel %vm829, %v830, %v822
    %v832 = vsel %vm825, %v828, %v831
    %v833 = vsel %vm823, nan, %v832
    %v834 = vand.u32 2147483647, %v197
    %vm835 = vcmp.le.f32.partialorder %v834, 0.7853982
    %vm836 = vcmp.lt.s32.totalorder %v197, 0
    %v837 = vand.u32 %v197, 2139095040
    %v838 = vshrl.u32 %v837, 23
    %v839 = vsub.s32 %v838, 127
    %v840 = vand.u32 2147483647, %v197
    %v841 = vand.u32 %v840, 8388607
    %v842 = vor.u32 %v841, 8388608
    %v843 = vsub.s32 0, %v842
    %v844 = vadd.s32 %v839, 1
    %vm845 = vcmp.gt.s32.totalorder %v844, 0
    %v846 = vsel %vm845, %v844, 0
    %v847 = vshrl.u32 %v846, 5
    %v848 = vand.u32 %v846, 31
    %v849 = vsub.s32 32, %v848
    %v850 = vshrl.u32 683565275, %v849
    %v851 = vshll.u32 683565275, %v848
    %v852 = vshrl.u32 2475754826, %v849
    %v853 = vor.u32 %v851, %v852
    %v854 = vshll.u32 2475754826, %v848
    %v855 = vshrl.u32 2131351028, %v849
    %v856 = vor.u32 %v854, %v855
    %v857 = vshll.u32 2131351028, %v848
    %v858 = vshrl.u32 2102212464, %v849
    %v859 = vor.u32 %v857, %v858
    %v860 = vshll.u32 2102212464, %v848
    %v861 = vshrl.u32 920167782, %v849
    %v862 = vor.u32 %v860, %v861
    %v863 = vshll.u32 920167782, %v848
    %v864 = vshrl.u32 1326507024, %v849
    %v865 = vor.u32 %v863, %v864
    %vm866 = vcmp.lt.s32.totalorder %v847, 1
    %vm867 = vcmp.lt.s32.totalorder %v847, 2
    %vm868 = vcmp.lt.s32.totalorder %v847, 3
    %vm869 = vcmp.lt.s32.totalorder %v847, 4
    %v870 = vsel %vm866, %v850, %v853
    %v871 = vsel %vm869, %v859, 2102212464
    %v872 = vsel %vm868, %v856, %v871
    %v873 = vsel %vm867, %v870, %v872
    %v874 = vsel %vm866, %v853, %v856
    %v875 = vsel %vm869, %v862, 920167782
    %v876 = vsel %vm868, %v859, %v875
    %v877 = vsel %vm867, %v874, %v876
    %v878 = vsel %vm866, %v856, %v859
    %v879 = vsel %vm869, %v865, 1326507024
    %v880 = vsel %vm868, %v862, %v879
    %v881 = vsel %vm867, %v878, %v880
    %v882 = vshll.u32 %v842, 8
    %v883 = vmul.u32.u64.compose %v882, %v881
    %v884 = vextract.low.u32 %v883
    %v885 = vextract.high.u32 %v883
    %v886 = vmul.u32.u64.compose %v882, %v877
    %v887 = vextract.low.u32 %v886
    %v888 = vextract.high.u32 %v886
    %v889 = vmul.u32 %v882, %v873
    %v890 = vadd.s32 %v885, %v887
    %vm891 = vc.u32 %v885, %v887
    %v892 = vadd.s32 %v888, 1
    %v893 = vsel %vm891, %v892, %v888
    %v894 = vadd.s32 %v889, %v893
    %v895 = vadd.s32 %v894, 536870912
    %v896 = vshrl.u32 %v895, 30
    %v897 = vshll.u32 %v896, 30
    %v898 = vsub.s32 %v894, %v897
    %vm899 = vcmp.lt.s32.totalorder %v898, 0
    %v900 = vsub.s32 0, %v898
    %v901 = vsel %vm899, %v900, %v898
    %v902 = vclz %v901
    %v903 = vsub.s32 %v902, 2
    %vm904 = vcmp.gt.s32.totalorder 0, %v903
    %v905 = vsel %vm904, 0, %v903
    %v906 = vsub.s32 32, %v905
    %v907 = vshll.u32 %v898, %v905
    %v908 = vshrl.u32 %v890, %v906
    %v909 = vor.u32 %v907, %v908
    %v910 = vsub.s32 4294967266, %v905
    %v911 = vadd.s32 %v910, 127
    %v912 = vshll.u32 %v911, 23
    %v913 = vor.u32 4788187, %v912
    %v914 = vand.u32 2147483647, %v913
    %v916 = vcvt.s32.f32 %v909
    %v917 = vmul.f32 %v916, %v914
    %v918 = vxor.u32 %v917, 2147483648
    %v919 = vsel %vm836, %v918, %v917
    %v920 = vsub.s32 4, %v896
    %v921 = vsel %vm836, %v920, %v896
    %v922 = vsel %vm835, %v197, %v919
    %v923 = vsel %vm835, 0, %v921
    %v924 = vcosq.f32.pop %v922
    %v925 = vsinq.f32.pop %v922
    %vm926 = vweird.f32 %v197
    %v927 = vand.u32 %v923, 3
    %vm928 = vcmp.lt.s32.totalorder %v927, 2
    %vm929 = vcmp.eq.s32.totalorder %v927, 0
    %v930 = vxor.u32 %v925, 2147483648
    %v931 = vsel %vm929, %v924, %v930
    %vm932 = vcmp.eq.s32.totalorder %v927, 2
    %v933 = vxor.u32 %v924, 2147483648
    %v934 = vsel %vm932, %v933, %v925
    %v935 = vsel %vm928, %v931, %v934
    %v936 = vsel %vm926, nan, %v935
    %v937 = vand.u32 2147483647, %v198
    %vm938 = vcmp.le.f32.partialorder %v937, 0.7853982
    %vm939 = vcmp.lt.s32.totalorder %v198, 0
    %v940 = vand.u32 %v198, 2139095040
    %v941 = vshrl.u32 %v940, 23
    %v942 = vsub.s32 %v941, 127
    %v943 = vand.u32 2147483647, %v198
    %v944 = vand.u32 %v943, 8388607
    %v945 = vor.u32 %v944, 8388608
    %v946 = vsub.s32 0, %v945
    %v947 = vadd.s32 %v942, 1
    %vm948 = vcmp.gt.s32.totalorder %v947, 0
    %v949 = vsel %vm948, %v947, 0
    %v950 = vshrl.u32 %v949, 5
    %v951 = vand.u32 %v949, 31
    %v952 = vsub.s32 32, %v951
    %v953 = vshrl.u32 683565275, %v952
    %v954 = vshll.u32 683565275, %v951
    %v955 = vshrl.u32 2475754826, %v952
    %v956 = vor.u32 %v954, %v955
    %v957 = vshll.u32 2475754826, %v951
    %v958 = vshrl.u32 2131351028, %v952
    %v959 = vor.u32 %v957, %v958
    %v960 = vshll.u32 2131351028, %v951
    %v961 = vshrl.u32 2102212464, %v952
    %v962 = vor.u32 %v960, %v961
    %v963 = vshll.u32 2102212464, %v951
    %v964 = vshrl.u32 920167782, %v952
    %v965 = vor.u32 %v963, %v964
    %v966 = vshll.u32 920167782, %v951
    %v967 = vshrl.u32 1326507024, %v952
    %v968 = vor.u32 %v966, %v967
    %vm969 = vcmp.lt.s32.totalorder %v950, 1
    %vm970 = vcmp.lt.s32.totalorder %v950, 2
    %vm971 = vcmp.lt.s32.totalorder %v950, 3
    %vm972 = vcmp.lt.s32.totalorder %v950, 4
    %v973 = vsel %vm969, %v953, %v956
    %v974 = vsel %vm972, %v962, 2102212464
    %v975 = vsel %vm971, %v959, %v974
    %v976 = vsel %vm970, %v973, %v975
    %v977 = vsel %vm969, %v956, %v959
    %v978 = vsel %vm972, %v965, 920167782
    %v979 = vsel %vm971, %v962, %v978
    %v980 = vsel %vm970, %v977, %v979
    %v981 = vsel %vm969, %v959, %v962
    %v982 = vsel %vm972, %v968, 1326507024
    %v983 = vsel %vm971, %v965, %v982
    %v984 = vsel %vm970, %v981, %v983
    %v985 = vshll.u32 %v945, 8
    %v986 = vmul.u32.u64.compose %v985, %v984
    %v987 = vextract.low.u32 %v986
    %v988 = vextract.high.u32 %v986
    %v989 = vmul.u32.u64.compose %v985, %v980
    %v990 = vextract.low.u32 %v989
    %v991 = vextract.high.u32 %v989
    %v992 = vmul.u32 %v985, %v976
    %v993 = vadd.s32 %v988, %v990
    %vm994 = vc.u32 %v988, %v990
    %v995 = vadd.s32 %v991, 1
    %v996 = vsel %vm994, %v995, %v991
    %v997 = vadd.s32 %v992, %v996
    %v998 = vadd.s32 %v997, 536870912
    %v999 = vshrl.u32 %v998, 30
    %v1000 = vshll.u32 %v999, 30
    %v1001 = vsub.s32 %v997, %v1000
    %vm1002 = vcmp.lt.s32.totalorder %v1001, 0
    %v1003 = vsub.s32 0, %v1001
    %v1004 = vsel %vm1002, %v1003, %v1001
    %v1005 = vclz %v1004
    %v1006 = vsub.s32 %v1005, 2
    %vm1007 = vcmp.gt.s32.totalorder 0, %v1006
    %v1008 = vsel %vm1007, 0, %v1006
    %v1009 = vsub.s32 32, %v1008
    %v1010 = vshll.u32 %v1001, %v1008
    %v1011 = vshrl.u32 %v993, %v1009
    %v1012 = vor.u32 %v1010, %v1011
    %v1013 = vsub.s32 4294967266, %v1008
    %v1014 = vadd.s32 %v1013, 127
    %v1015 = vshll.u32 %v1014, 23
    %v1016 = vor.u32 4788187, %v1015
    %v1017 = vand.u32 2147483647, %v1016
    %v1019 = vcvt.s32.f32 %v1012
    %v1020 = vmul.f32 %v1019, %v1017
    %v1021 = vxor.u32 %v1020, 2147483648
    %v1022 = vsel %vm939, %v1021, %v1020
    %v1023 = vsub.s32 4, %v999
    %v1024 = vsel %vm939, %v1023, %v999
    %v1025 = vsel %vm938, %v198, %v1022
    %v1026 = vsel %vm938, 0, %v1024
    %v1027 = vcosq.f32.pop %v1025
    %v1028 = vsinq.f32.pop %v1025
    %vm1029 = vweird.f32 %v198
    %v1030 = vand.u32 %v1026, 3
    %vm1031 = vcmp.lt.s32.totalorder %v1030, 2
    %vm1032 = vcmp.eq.s32.totalorder %v1030, 0
    %v1033 = vxor.u32 %v1028, 2147483648
    %v1034 = vsel %vm1032, %v1027, %v1033
    %vm1035 = vcmp.eq.s32.totalorder %v1030, 2
    %v1036 = vxor.u32 %v1027, 2147483648
    %v1037 = vsel %vm1035, %v1036, %v1028
    %v1038 = vsel %vm1031, %v1034, %v1037
    %v1039 = vsel %vm1029, nan, %v1038
    %v1040 = vand.u32 2147483647, %v199
    %vm1041 = vcmp.le.f32.partialorder %v1040, 0.7853982
    %vm1042 = vcmp.lt.s32.totalorder %v199, 0
    %v1043 = vand.u32 %v199, 2139095040
    %v1044 = vshrl.u32 %v1043, 23
    %v1045 = vsub.s32 %v1044, 127
    %v1046 = vand.u32 2147483647, %v199
    %v1047 = vand.u32 %v1046, 8388607
    %v1048 = vor.u32 %v1047, 8388608
    %v1049 = vsub.s32 0, %v1048
    %v1050 = vadd.s32 %v1045, 1
    %vm1051 = vcmp.gt.s32.totalorder %v1050, 0
    %v1052 = vsel %vm1051, %v1050, 0
    %v1053 = vshrl.u32 %v1052, 5
    %v1054 = vand.u32 %v1052, 31
    %v1055 = vsub.s32 32, %v1054
    %v1056 = vshrl.u32 683565275, %v1055
    %v1057 = vshll.u32 683565275, %v1054
    %v1058 = vshrl.u32 2475754826, %v1055
    %v1059 = vor.u32 %v1057, %v1058
    %v1060 = vshll.u32 2475754826, %v1054
    %v1061 = vshrl.u32 2131351028, %v1055
    %v1062 = vor.u32 %v1060, %v1061
    %v1063 = vshll.u32 2131351028, %v1054
    %v1064 = vshrl.u32 2102212464, %v1055
    %v1065 = vor.u32 %v1063, %v1064
    %v1066 = vshll.u32 2102212464, %v1054
    %v1067 = vshrl.u32 920167782, %v1055
    %v1068 = vor.u32 %v1066, %v1067
    %v1069 = vshll.u32 920167782, %v1054
    %v1070 = vshrl.u32 1326507024, %v1055
    %v1071 = vor.u32 %v1069, %v1070
    %vm1072 = vcmp.lt.s32.totalorder %v1053, 1
    %vm1073 = vcmp.lt.s32.totalorder %v1053, 2
    %vm1074 = vcmp.lt.s32.totalorder %v1053, 3
    %vm1075 = vcmp.lt.s32.totalorder %v1053, 4
    %v1076 = vsel %vm1072, %v1056, %v1059
    %v1077 = vsel %vm1075, %v1065, 2102212464
    %v1078 = vsel %vm1074, %v1062, %v1077
    %v1079 = vsel %vm1073, %v1076, %v1078
    %v1080 = vsel %vm1072, %v1059, %v1062
    %v1081 = vsel %vm1075, %v1068, 920167782
    %v1082 = vsel %vm1074, %v1065, %v1081
    %v1083 = vsel %vm1073, %v1080, %v1082
    %v1084 = vsel %vm1072, %v1062, %v1065
    %v1085 = vsel %vm1075, %v1071, 1326507024
    %v1086 = vsel %vm1074, %v1068, %v1085
    %v1087 = vsel %vm1073, %v1084, %v1086
    %v1088 = vshll.u32 %v1048, 8
    %v1089 = vmul.u32.u64.compose %v1088, %v1087
    %v1090 = vextract.low.u32 %v1089
    %v1091 = vextract.high.u32 %v1089
    %v1092 = vmul.u32.u64.compose %v1088, %v1083
    %v1093 = vextract.low.u32 %v1092
    %v1094 = vextract.high.u32 %v1092
    %v1095 = vmul.u32 %v1088, %v1079
    %v1096 = vadd.s32 %v1091, %v1093
    %vm1097 = vc.u32 %v1091, %v1093
    %v1098 = vadd.s32 %v1094, 1
    %v1099 = vsel %vm1097, %v1098, %v1094
    %v1100 = vadd.s32 %v1095, %v1099
    %v1101 = vadd.s32 %v1100, 536870912
    %v1102 = vshrl.u32 %v1101, 30
    %v1103 = vshll.u32 %v1102, 30
    %v1104 = vsub.s32 %v1100, %v1103
    %vm1105 = vcmp.lt.s32.totalorder %v1104, 0
    %v1106 = vsub.s32 0, %v1104
    %v1107 = vsel %vm1105, %v1106, %v1104
    %v1108 = vclz %v1107
    %v1109 = vsub.s32 %v1108, 2
    %vm1110 = vcmp.gt.s32.totalorder 0, %v1109
    %v1111 = vsel %vm1110, 0, %v1109
    %v1112 = vsub.s32 32, %v1111
    %v1113 = vshll.u32 %v1104, %v1111
    %v1114 = vshrl.u32 %v1096, %v1112
    %v1115 = vor.u32 %v1113, %v1114
    %v1116 = vsub.s32 4294967266, %v1111
    %v1117 = vadd.s32 %v1116, 127
    %v1118 = vshll.u32 %v1117, 23
    %v1119 = vor.u32 4788187, %v1118
    %v1120 = vand.u32 2147483647, %v1119
    %v1122 = vcvt.s32.f32 %v1115
    %v1123 = vmul.f32 %v1122, %v1120
    %v1124 = vxor.u32 %v1123, 2147483648
    %v1125 = vsel %vm1042, %v1124, %v1123
    %v1126 = vsub.s32 4, %v1102
    %v1127 = vsel %vm1042, %v1126, %v1102
    %v1128 = vsel %vm1041, %v199, %v1125
    %v1129 = vsel %vm1041, 0, %v1127
    %v1130 = vcosq.f32.pop %v1128
    %v1131 = vsinq.f32.pop %v1128
    %vm1132 = vweird.f32 %v199
    %v1133 = vand.u32 %v1129, 3
    %vm1134 = vcmp.lt.s32.totalorder %v1133, 2
    %vm1135 = vcmp.eq.s32.totalorder %v1133, 0
    %v1136 = vxor.u32 %v1131, 2147483648
    %v1137 = vsel %vm1135, %v1130, %v1136
    %vm1138 = vcmp.eq.s32.totalorder %v1133, 2
    %v1139 = vxor.u32 %v1130, 2147483648
    %v1140 = vsel %vm1138, %v1139, %v1131
    %v1141 = vsel %vm1134, %v1137, %v1140
    %v1142 = vsel %vm1132, nan, %v1141
    %v1143 = vand.u32 2147483647, %v200
    %vm1144 = vcmp.le.f32.partialorder %v1143, 0.7853982
    %vm1145 = vcmp.lt.s32.totalorder %v200, 0
    %v1146 = vand.u32 %v200, 2139095040
    %v1147 = vshrl.u32 %v1146, 23
    %v1148 = vsub.s32 %v1147, 127
    %v1149 = vand.u32 2147483647, %v200
    %v1150 = vand.u32 %v1149, 8388607
    %v1151 = vor.u32 %v1150, 8388608
    %v1152 = vsub.s32 0, %v1151
    %v1153 = vadd.s32 %v1148, 1
    %vm1154 = vcmp.gt.s32.totalorder %v1153, 0
    %v1155 = vsel %vm1154, %v1153, 0
    %v1156 = vshrl.u32 %v1155, 5
    %v1157 = vand.u32 %v1155, 31
    %v1158 = vsub.s32 32, %v1157
    %v1159 = vshrl.u32 683565275, %v1158
    %v1160 = vshll.u32 683565275, %v1157
    %v1161 = vshrl.u32 2475754826, %v1158
    %v1162 = vor.u32 %v1160, %v1161
    %v1163 = vshll.u32 2475754826, %v1157
    %v1164 = vshrl.u32 2131351028, %v1158
    %v1165 = vor.u32 %v1163, %v1164
    %v1166 = vshll.u32 2131351028, %v1157
    %v1167 = vshrl.u32 2102212464, %v1158
    %v1168 = vor.u32 %v1166, %v1167
    %v1169 = vshll.u32 2102212464, %v1157
    %v1170 = vshrl.u32 920167782, %v1158
    %v1171 = vor.u32 %v1169, %v1170
    %v1172 = vshll.u32 920167782, %v1157
    %v1173 = vshrl.u32 1326507024, %v1158
    %v1174 = vor.u32 %v1172, %v1173
    %vm1175 = vcmp.lt.s32.totalorder %v1156, 1
    %vm1176 = vcmp.lt.s32.totalorder %v1156, 2
    %vm1177 = vcmp.lt.s32.totalorder %v1156, 3
    %vm1178 = vcmp.lt.s32.totalorder %v1156, 4
    %v1179 = vsel %vm1175, %v1159, %v1162
    %v1180 = vsel %vm1178, %v1168, 2102212464
    %v1181 = vsel %vm1177, %v1165, %v1180
    %v1182 = vsel %vm1176, %v1179, %v1181
    %v1183 = vsel %vm1175, %v1162, %v1165
    %v1184 = vsel %vm1178, %v1171, 920167782
    %v1185 = vsel %vm1177, %v1168, %v1184
    %v1186 = vsel %vm1176, %v1183, %v1185
    %v1187 = vsel %vm1175, %v1165, %v1168
    %v1188 = vsel %vm1178, %v1174, 1326507024
    %v1189 = vsel %vm1177, %v1171, %v1188
    %v1190 = vsel %vm1176, %v1187, %v1189
    %v1191 = vshll.u32 %v1151, 8
    %v1192 = vmul.u32.u64.compose %v1191, %v1190
    %v1193 = vextract.low.u32 %v1192
    %v1194 = vextract.high.u32 %v1192
    %v1195 = vmul.u32.u64.compose %v1191, %v1186
    %v1196 = vextract.low.u32 %v1195
    %v1197 = vextract.high.u32 %v1195
    %v1198 = vmul.u32 %v1191, %v1182
    %v1199 = vadd.s32 %v1194, %v1196
    %vm1200 = vc.u32 %v1194, %v1196
    %v1201 = vadd.s32 %v1197, 1
    %v1202 = vsel %vm1200, %v1201, %v1197
    %v1203 = vadd.s32 %v1198, %v1202
    %v1204 = vadd.s32 %v1203, 536870912
    %v1205 = vshrl.u32 %v1204, 30
    %v1206 = vshll.u32 %v1205, 30
    %v1207 = vsub.s32 %v1203, %v1206
    %vm1208 = vcmp.lt.s32.totalorder %v1207, 0
    %v1209 = vsub.s32 0, %v1207
    %v1210 = vsel %vm1208, %v1209, %v1207
    %v1211 = vclz %v1210
    %v1212 = vsub.s32 %v1211, 2
    %vm1213 = vcmp.gt.s32.totalorder 0, %v1212
    %v1214 = vsel %vm1213, 0, %v1212
    %v1215 = vsub.s32 32, %v1214
    %v1216 = vshll.u32 %v1207, %v1214
    %v1217 = vshrl.u32 %v1199, %v1215
    %v1218 = vor.u32 %v1216, %v1217
    %v1219 = vsub.s32 4294967266, %v1214
    %v1220 = vadd.s32 %v1219, 127
    %v1221 = vshll.u32 %v1220, 23
    %v1222 = vor.u32 4788187, %v1221
    %v1223 = vand.u32 2147483647, %v1222
    %v1225 = vcvt.s32.f32 %v1218
    %v1226 = vmul.f32 %v1225, %v1223
    %v1227 = vxor.u32 %v1226, 2147483648
    %v1228 = vsel %vm1145, %v1227, %v1226
    %v1229 = vsub.s32 4, %v1205
    %v1230 = vsel %vm1145, %v1229, %v1205
    %v1231 = vsel %vm1144, %v200, %v1228
    %v1232 = vsel %vm1144, 0, %v1230
    %v1233 = vcosq.f32.pop %v1231
    %v1234 = vsinq.f32.pop %v1231
    %vm1235 = vweird.f32 %v200
    %v1236 = vand.u32 %v1232, 3
    %vm1237 = vcmp.lt.s32.totalorder %v1236, 2
    %vm1238 = vcmp.eq.s32.totalorder %v1236, 0
    %v1239 = vxor.u32 %v1234, 2147483648
    %v1240 = vsel %vm1238, %v1233, %v1239
    %vm1241 = vcmp.eq.s32.totalorder %v1236, 2
    %v1242 = vxor.u32 %v1233, 2147483648
    %v1243 = vsel %vm1241, %v1242, %v1234
    %v1244 = vsel %vm1237, %v1240, %v1243
    %v1245 = vsel %vm1235, nan, %v1244
    %v1246 = vand.u32 2147483647, %v201
    %vm1247 = vcmp.le.f32.partialorder %v1246, 0.7853982
    %vm1248 = vcmp.lt.s32.totalorder %v201, 0
    %v1249 = vand.u32 %v201, 2139095040
    %v1250 = vshrl.u32 %v1249, 23
    %v1251 = vsub.s32 %v1250, 127
    %v1252 = vand.u32 2147483647, %v201
    %v1253 = vand.u32 %v1252, 8388607
    %v1254 = vor.u32 %v1253, 8388608
    %v1255 = vsub.s32 0, %v1254
    %v1256 = vadd.s32 %v1251, 1
    %vm1257 = vcmp.gt.s32.totalorder %v1256, 0
    %v1258 = vsel %vm1257, %v1256, 0
    %v1259 = vshrl.u32 %v1258, 5
    %v1260 = vand.u32 %v1258, 31
    %v1261 = vsub.s32 32, %v1260
    %v1262 = vshrl.u32 683565275, %v1261
    %v1263 = vshll.u32 683565275, %v1260
    %v1264 = vshrl.u32 2475754826, %v1261
    %v1265 = vor.u32 %v1263, %v1264
    %v1266 = vshll.u32 2475754826, %v1260
    %v1267 = vshrl.u32 2131351028, %v1261
    %v1268 = vor.u32 %v1266, %v1267
    %v1269 = vshll.u32 2131351028, %v1260
    %v1270 = vshrl.u32 2102212464, %v1261
    %v1271 = vor.u32 %v1269, %v1270
    %v1272 = vshll.u32 2102212464, %v1260
    %v1273 = vshrl.u32 920167782, %v1261
    %v1274 = vor.u32 %v1272, %v1273
    %v1275 = vshll.u32 920167782, %v1260
    %v1276 = vshrl.u32 1326507024, %v1261
    %v1277 = vor.u32 %v1275, %v1276
    %vm1278 = vcmp.lt.s32.totalorder %v1259, 1
    %vm1279 = vcmp.lt.s32.totalorder %v1259, 2
    %vm1280 = vcmp.lt.s32.totalorder %v1259, 3
    %vm1281 = vcmp.lt.s32.totalorder %v1259, 4
    %v1282 = vsel %vm1278, %v1262, %v1265
    %v1283 = vsel %vm1281, %v1271, 2102212464
    %v1284 = vsel %vm1280, %v1268, %v1283
    %v1285 = vsel %vm1279, %v1282, %v1284
    %v1286 = vsel %vm1278, %v1265, %v1268
    %v1287 = vsel %vm1281, %v1274, 920167782
    %v1288 = vsel %vm1280, %v1271, %v1287
    %v1289 = vsel %vm1279, %v1286, %v1288
    %v1290 = vsel %vm1278, %v1268, %v1271
    %v1291 = vsel %vm1281, %v1277, 1326507024
    %v1292 = vsel %vm1280, %v1274, %v1291
    %v1293 = vsel %vm1279, %v1290, %v1292
    %v1294 = vshll.u32 %v1254, 8
    %v1295 = vmul.u32.u64.compose %v1294, %v1293
    %v1296 = vextract.low.u32 %v1295
    %v1297 = vextract.high.u32 %v1295
    %v1298 = vmul.u32.u64.compose %v1294, %v1289
    %v1299 = vextract.low.u32 %v1298
    %v1300 = vextract.high.u32 %v1298
    %v1301 = vmul.u32 %v1294, %v1285
    %v1302 = vadd.s32 %v1297, %v1299
    %vm1303 = vc.u32 %v1297, %v1299
    %v1304 = vadd.s32 %v1300, 1
    %v1305 = vsel %vm1303, %v1304, %v1300
    %v1306 = vadd.s32 %v1301, %v1305
    %v1307 = vadd.s32 %v1306, 536870912
    %v1308 = vshrl.u32 %v1307, 30
    %v1309 = vshll.u32 %v1308, 30
    %v1310 = vsub.s32 %v1306, %v1309
    %vm1311 = vcmp.lt.s32.totalorder %v1310, 0
    %v1312 = vsub.s32 0, %v1310
    %v1313 = vsel %vm1311, %v1312, %v1310
    %v1314 = vclz %v1313
    %v1315 = vsub.s32 %v1314, 2
    %vm1316 = vcmp.gt.s32.totalorder 0, %v1315
    %v1317 = vsel %vm1316, 0, %v1315
    %v1318 = vsub.s32 32, %v1317
    %v1319 = vshll.u32 %v1310, %v1317
    %v1320 = vshrl.u32 %v1302, %v1318
    %v1321 = vor.u32 %v1319, %v1320
    %v1322 = vsub.s32 4294967266, %v1317
    %v1323 = vadd.s32 %v1322, 127
    %v1324 = vshll.u32 %v1323, 23
    %v1325 = vor.u32 4788187, %v1324
    %v1326 = vand.u32 2147483647, %v1325
    %v1328 = vcvt.s32.f32 %v1321
    %v1329 = vmul.f32 %v1328, %v1326
    %v1330 = vxor.u32 %v1329, 2147483648
    %v1331 = vsel %vm1248, %v1330, %v1329
    %v1332 = vsub.s32 4, %v1308
    %v1333 = vsel %vm1248, %v1332, %v1308
    %v1334 = vsel %vm1247, %v201, %v1331
    %v1335 = vsel %vm1247, 0, %v1333
    %v1336 = vcosq.f32.pop %v1334
    %v1337 = vsinq.f32.pop %v1334
    %vm1338 = vweird.f32 %v201
    %v1339 = vand.u32 %v1335, 3
    %vm1340 = vcmp.lt.s32.totalorder %v1339, 2
    %vm1341 = vcmp.eq.s32.totalorder %v1339, 0
    %v1342 = vxor.u32 %v1337, 2147483648
    %v1343 = vsel %vm1341, %v1336, %v1342
    %vm1344 = vcmp.eq.s32.totalorder %v1339, 2
    %v1345 = vxor.u32 %v1336, 2147483648
    %v1346 = vsel %vm1344, %v1345, %v1337
    %v1347 = vsel %vm1340, %v1343, %v1346
    %v1348 = vsel %vm1338, nan, %v1347
    %v1349 = vand.u32 2147483647, %v202
    %vm1350 = vcmp.le.f32.partialorder %v1349, 0.7853982
    %vm1351 = vcmp.lt.s32.totalorder %v202, 0
    %v1352 = vand.u32 %v202, 2139095040
    %v1353 = vshrl.u32 %v1352, 23
    %v1354 = vsub.s32 %v1353, 127
    %v1355 = vand.u32 2147483647, %v202
    %v1356 = vand.u32 %v1355, 8388607
    %v1357 = vor.u32 %v1356, 8388608
    %v1358 = vsub.s32 0, %v1357
    %v1359 = vadd.s32 %v1354, 1
    %vm1360 = vcmp.gt.s32.totalorder %v1359, 0
    %v1361 = vsel %vm1360, %v1359, 0
    %v1362 = vshrl.u32 %v1361, 5
    %v1363 = vand.u32 %v1361, 31
    %v1364 = vsub.s32 32, %v1363
    %v1365 = vshrl.u32 683565275, %v1364
    %v1366 = vshll.u32 683565275, %v1363
    %v1367 = vshrl.u32 2475754826, %v1364
    %v1368 = vor.u32 %v1366, %v1367
    %v1369 = vshll.u32 2475754826, %v1363
    %v1370 = vshrl.u32 2131351028, %v1364
    %v1371 = vor.u32 %v1369, %v1370
    %v1372 = vshll.u32 2131351028, %v1363
    %v1373 = vshrl.u32 2102212464, %v1364
    %v1374 = vor.u32 %v1372, %v1373
    %v1375 = vshll.u32 2102212464, %v1363
    %v1376 = vshrl.u32 920167782, %v1364
    %v1377 = vor.u32 %v1375, %v1376
    %v1378 = vshll.u32 920167782, %v1363
    %v1379 = vshrl.u32 1326507024, %v1364
    %v1380 = vor.u32 %v1378, %v1379
    %vm1381 = vcmp.lt.s32.totalorder %v1362, 1
    %vm1382 = vcmp.lt.s32.totalorder %v1362, 2
    %vm1383 = vcmp.lt.s32.totalorder %v1362, 3
    %vm1384 = vcmp.lt.s32.totalorder %v1362, 4
    %v1385 = vsel %vm1381, %v1365, %v1368
    %v1386 = vsel %vm1384, %v1374, 2102212464
    %v1387 = vsel %vm1383, %v1371, %v1386
    %v1388 = vsel %vm1382, %v1385, %v1387
    %v1389 = vsel %vm1381, %v1368, %v1371
    %v1390 = vsel %vm1384, %v1377, 920167782
    %v1391 = vsel %vm1383, %v1374, %v1390
    %v1392 = vsel %vm1382, %v1389, %v1391
    %v1393 = vsel %vm1381, %v1371, %v1374
    %v1394 = vsel %vm1384, %v1380, 1326507024
    %v1395 = vsel %vm1383, %v1377, %v1394
    %v1396 = vsel %vm1382, %v1393, %v1395
    %v1397 = vshll.u32 %v1357, 8
    %v1398 = vmul.u32.u64.compose %v1397, %v1396
    %v1399 = vextract.low.u32 %v1398
    %v1400 = vextract.high.u32 %v1398
    %v1401 = vmul.u32.u64.compose %v1397, %v1392
    %v1402 = vextract.low.u32 %v1401
    %v1403 = vextract.high.u32 %v1401
    %v1404 = vmul.u32 %v1397, %v1388
    %v1405 = vadd.s32 %v1400, %v1402
    %vm1406 = vc.u32 %v1400, %v1402
    %v1407 = vadd.s32 %v1403, 1
    %v1408 = vsel %vm1406, %v1407, %v1403
    %v1409 = vadd.s32 %v1404, %v1408
    %v1410 = vadd.s32 %v1409, 536870912
    %v1411 = vshrl.u32 %v1410, 30
    %v1412 = vshll.u32 %v1411, 30
    %v1413 = vsub.s32 %v1409, %v1412
    %vm1414 = vcmp.lt.s32.totalorder %v1413, 0
    %v1415 = vsub.s32 0, %v1413
    %v1416 = vsel %vm1414, %v1415, %v1413
    %v1417 = vclz %v1416
    %v1418 = vsub.s32 %v1417, 2
    %vm1419 = vcmp.gt.s32.totalorder 0, %v1418
    %v1420 = vsel %vm1419, 0, %v1418
    %v1421 = vsub.s32 32, %v1420
    %v1422 = vshll.u32 %v1413, %v1420
    %v1423 = vshrl.u32 %v1405, %v1421
    %v1424 = vor.u32 %v1422, %v1423
    %v1425 = vsub.s32 4294967266, %v1420
    %v1426 = vadd.s32 %v1425, 127
    %v1427 = vshll.u32 %v1426, 23
    %v1428 = vor.u32 4788187, %v1427
    %v1429 = vand.u32 2147483647, %v1428
    %v1431 = vcvt.s32.f32 %v1424
    %v1432 = vmul.f32 %v1431, %v1429
    %v1433 = vxor.u32 %v1432, 2147483648
    %v1434 = vsel %vm1351, %v1433, %v1432
    %v1435 = vsub.s32 4, %v1411
    %v1436 = vsel %vm1351, %v1435, %v1411
    %v1437 = vsel %vm1350, %v202, %v1434
    %v1438 = vsel %vm1350, 0, %v1436
    %v1439 = vcosq.f32.pop %v1437
    %v1440 = vsinq.f32.pop %v1437
    %vm1441 = vweird.f32 %v202
    %v1442 = vand.u32 %v1438, 3
    %vm1443 = vcmp.lt.s32.totalorder %v1442, 2
    %vm1444 = vcmp.eq.s32.totalorder %v1442, 0
    %v1445 = vxor.u32 %v1440, 2147483648
    %v1446 = vsel %vm1444, %v1439, %v1445
    %vm1447 = vcmp.eq.s32.totalorder %v1442, 2
    %v1448 = vxor.u32 %v1439, 2147483648
    %v1449 = vsel %vm1447, %v1448, %v1440
    %v1450 = vsel %vm1443, %v1446, %v1449
    %v1451 = vsel %vm1441, nan, %v1450
    %v1452 = vand.u32 2147483647, %v203
    %vm1453 = vcmp.le.f32.partialorder %v1452, 0.7853982
    %vm1454 = vcmp.lt.s32.totalorder %v203, 0
    %v1455 = vand.u32 %v203, 2139095040
    %v1456 = vshrl.u32 %v1455, 23
    %v1457 = vsub.s32 %v1456, 127
    %v1458 = vand.u32 2147483647, %v203
    %v1459 = vand.u32 %v1458, 8388607
    %v1460 = vor.u32 %v1459, 8388608
    %v1461 = vsub.s32 0, %v1460
    %v1462 = vadd.s32 %v1457, 1
    %vm1463 = vcmp.gt.s32.totalorder %v1462, 0
    %v1464 = vsel %vm1463, %v1462, 0
    %v1465 = vshrl.u32 %v1464, 5
    %v1466 = vand.u32 %v1464, 31
    %v1467 = vsub.s32 32, %v1466
    %v1468 = vshrl.u32 683565275, %v1467
    %v1469 = vshll.u32 683565275, %v1466
    %v1470 = vshrl.u32 2475754826, %v1467
    %v1471 = vor.u32 %v1469, %v1470
    %v1472 = vshll.u32 2475754826, %v1466
    %v1473 = vshrl.u32 2131351028, %v1467
    %v1474 = vor.u32 %v1472, %v1473
    %v1475 = vshll.u32 2131351028, %v1466
    %v1476 = vshrl.u32 2102212464, %v1467
    %v1477 = vor.u32 %v1475, %v1476
    %v1478 = vshll.u32 2102212464, %v1466
    %v1479 = vshrl.u32 920167782, %v1467
    %v1480 = vor.u32 %v1478, %v1479
    %v1481 = vshll.u32 920167782, %v1466
    %v1482 = vshrl.u32 1326507024, %v1467
    %v1483 = vor.u32 %v1481, %v1482
    %vm1484 = vcmp.lt.s32.totalorder %v1465, 1
    %vm1485 = vcmp.lt.s32.totalorder %v1465, 2
    %vm1486 = vcmp.lt.s32.totalorder %v1465, 3
    %vm1487 = vcmp.lt.s32.totalorder %v1465, 4
    %v1488 = vsel %vm1484, %v1468, %v1471
    %v1489 = vsel %vm1487, %v1477, 2102212464
    %v1490 = vsel %vm1486, %v1474, %v1489
    %v1491 = vsel %vm1485, %v1488, %v1490
    %v1492 = vsel %vm1484, %v1471, %v1474
    %v1493 = vsel %vm1487, %v1480, 920167782
    %v1494 = vsel %vm1486, %v1477, %v1493
    %v1495 = vsel %vm1485, %v1492, %v1494
    %v1496 = vsel %vm1484, %v1474, %v1477
    %v1497 = vsel %vm1487, %v1483, 1326507024
    %v1498 = vsel %vm1486, %v1480, %v1497
    %v1499 = vsel %vm1485, %v1496, %v1498
    %v1500 = vshll.u32 %v1460, 8
    %v1501 = vmul.u32.u64.compose %v1500, %v1499
    %v1502 = vextract.low.u32 %v1501
    %v1503 = vextract.high.u32 %v1501
    %v1504 = vmul.u32.u64.compose %v1500, %v1495
    %v1505 = vextract.low.u32 %v1504
    %v1506 = vextract.high.u32 %v1504
    %v1507 = vmul.u32 %v1500, %v1491
    %v1508 = vadd.s32 %v1503, %v1505
    %vm1509 = vc.u32 %v1503, %v1505
    %v1510 = vadd.s32 %v1506, 1
    %v1511 = vsel %vm1509, %v1510, %v1506
    %v1512 = vadd.s32 %v1507, %v1511
    %v1513 = vadd.s32 %v1512, 536870912
    %v1514 = vshrl.u32 %v1513, 30
    %v1515 = vshll.u32 %v1514, 30
    %v1516 = vsub.s32 %v1512, %v1515
    %vm1517 = vcmp.lt.s32.totalorder %v1516, 0
    %v1518 = vsub.s32 0, %v1516
    %v1519 = vsel %vm1517, %v1518, %v1516
    %v1520 = vclz %v1519
    %v1521 = vsub.s32 %v1520, 2
    %vm1522 = vcmp.gt.s32.totalorder 0, %v1521
    %v1523 = vsel %vm1522, 0, %v1521
    %v1524 = vsub.s32 32, %v1523
    %v1525 = vshll.u32 %v1516, %v1523
    %v1526 = vshrl.u32 %v1508, %v1524
    %v1527 = vor.u32 %v1525, %v1526
    %v1528 = vsub.s32 4294967266, %v1523
    %v1529 = vadd.s32 %v1528, 127
    %v1530 = vshll.u32 %v1529, 23
    %v1531 = vor.u32 4788187, %v1530
    %v1532 = vand.u32 2147483647, %v1531
    %v1534 = vcvt.s32.f32 %v1527
    %v1535 = vmul.f32 %v1534, %v1532
    %v1536 = vxor.u32 %v1535, 2147483648
    %v1537 = vsel %vm1454, %v1536, %v1535
    %v1538 = vsub.s32 4, %v1514
    %v1539 = vsel %vm1454, %v1538, %v1514
    %v1540 = vsel %vm1453, %v203, %v1537
    %v1541 = vsel %vm1453, 0, %v1539
    %v1542 = vcosq.f32.pop %v1540
    %v1543 = vsinq.f32.pop %v1540
    %vm1544 = vweird.f32 %v203
    %v1545 = vand.u32 %v1541, 3
    %vm1546 = vcmp.lt.s32.totalorder %v1545, 2
    %vm1547 = vcmp.eq.s32.totalorder %v1545, 0
    %v1548 = vxor.u32 %v1543, 2147483648
    %v1549 = vsel %vm1547, %v1542, %v1548
    %vm1550 = vcmp.eq.s32.totalorder %v1545, 2
    %v1551 = vxor.u32 %v1542, 2147483648
    %v1552 = vsel %vm1550, %v1551, %v1543
    %v1553 = vsel %vm1546, %v1549, %v1552
    %v1554 = vsel %vm1544, nan, %v1553
    %v1555 = vand.u32 2147483647, %v204
    %vm1556 = vcmp.le.f32.partialorder %v1555, 0.7853982
    %vm1557 = vcmp.lt.s32.totalorder %v204, 0
    %v1558 = vand.u32 %v204, 2139095040
    %v1559 = vshrl.u32 %v1558, 23
    %v1560 = vsub.s32 %v1559, 127
    %v1561 = vand.u32 2147483647, %v204
    %v1562 = vand.u32 %v1561, 8388607
    %v1563 = vor.u32 %v1562, 8388608
    %v1564 = vsub.s32 0, %v1563
    %v1565 = vadd.s32 %v1560, 1
    %vm1566 = vcmp.gt.s32.totalorder %v1565, 0
    %v1567 = vsel %vm1566, %v1565, 0
    %v1568 = vshrl.u32 %v1567, 5
    %v1569 = vand.u32 %v1567, 31
    %v1570 = vsub.s32 32, %v1569
    %v1571 = vshrl.u32 683565275, %v1570
    %v1572 = vshll.u32 683565275, %v1569
    %v1573 = vshrl.u32 2475754826, %v1570
    %v1574 = vor.u32 %v1572, %v1573
    %v1575 = vshll.u32 2475754826, %v1569
    %v1576 = vshrl.u32 2131351028, %v1570
    %v1577 = vor.u32 %v1575, %v1576
    %v1578 = vshll.u32 2131351028, %v1569
    %v1579 = vshrl.u32 2102212464, %v1570
    %v1580 = vor.u32 %v1578, %v1579
    %v1581 = vshll.u32 2102212464, %v1569
    %v1582 = vshrl.u32 920167782, %v1570
    %v1583 = vor.u32 %v1581, %v1582
    %v1584 = vshll.u32 920167782, %v1569
    %v1585 = vshrl.u32 1326507024, %v1570
    %v1586 = vor.u32 %v1584, %v1585
    %vm1587 = vcmp.lt.s32.totalorder %v1568, 1
    %vm1588 = vcmp.lt.s32.totalorder %v1568, 2
    %vm1589 = vcmp.lt.s32.totalorder %v1568, 3
    %vm1590 = vcmp.lt.s32.totalorder %v1568, 4
    %v1591 = vsel %vm1587, %v1571, %v1574
    %v1592 = vsel %vm1590, %v1580, 2102212464
    %v1593 = vsel %vm1589, %v1577, %v1592
    %v1594 = vsel %vm1588, %v1591, %v1593
    %v1595 = vsel %vm1587, %v1574, %v1577
    %v1596 = vsel %vm1590, %v1583, 920167782
    %v1597 = vsel %vm1589, %v1580, %v1596
    %v1598 = vsel %vm1588, %v1595, %v1597
    %v1599 = vsel %vm1587, %v1577, %v1580
    %v1600 = vsel %vm1590, %v1586, 1326507024
    %v1601 = vsel %vm1589, %v1583, %v1600
    %v1602 = vsel %vm1588, %v1599, %v1601
    %v1603 = vshll.u32 %v1563, 8
    %v1604 = vmul.u32.u64.compose %v1603, %v1602
    %v1605 = vextract.low.u32 %v1604
    %v1606 = vextract.high.u32 %v1604
    %v1607 = vmul.u32.u64.compose %v1603, %v1598
    %v1608 = vextract.low.u32 %v1607
    %v1609 = vextract.high.u32 %v1607
    %v1610 = vmul.u32 %v1603, %v1594
    %v1611 = vadd.s32 %v1606, %v1608
    %vm1612 = vc.u32 %v1606, %v1608
    %v1613 = vadd.s32 %v1609, 1
    %v1614 = vsel %vm1612, %v1613, %v1609
    %v1615 = vadd.s32 %v1610, %v1614
    %v1616 = vadd.s32 %v1615, 536870912
    %v1617 = vshrl.u32 %v1616, 30
    %v1618 = vshll.u32 %v1617, 30
    %v1619 = vsub.s32 %v1615, %v1618
    %vm1620 = vcmp.lt.s32.totalorder %v1619, 0
    %v1621 = vsub.s32 0, %v1619
    %v1622 = vsel %vm1620, %v1621, %v1619
    %v1623 = vclz %v1622
    %v1624 = vsub.s32 %v1623, 2
    %vm1625 = vcmp.gt.s32.totalorder 0, %v1624
    %v1626 = vsel %vm1625, 0, %v1624
    %v1627 = vsub.s32 32, %v1626
    %v1628 = vshll.u32 %v1619, %v1626
    %v1629 = vshrl.u32 %v1611, %v1627
    %v1630 = vor.u32 %v1628, %v1629
    %v1631 = vsub.s32 4294967266, %v1626
    %v1632 = vadd.s32 %v1631, 127
    %v1633 = vshll.u32 %v1632, 23
    %v1634 = vor.u32 4788187, %v1633
    %v1635 = vand.u32 2147483647, %v1634
    %v1637 = vcvt.s32.f32 %v1630
    %v1638 = vmul.f32 %v1637, %v1635
    %v1639 = vxor.u32 %v1638, 2147483648
    %v1640 = vsel %vm1557, %v1639, %v1638
    %v1641 = vsub.s32 4, %v1617
    %v1642 = vsel %vm1557, %v1641, %v1617
    %v1643 = vsel %vm1556, %v204, %v1640
    %v1644 = vsel %vm1556, 0, %v1642
    %v1645 = vcosq.f32.pop %v1643
    %v1646 = vsinq.f32.pop %v1643
    %vm1647 = vweird.f32 %v204
    %v1648 = vand.u32 %v1644, 3
    %vm1649 = vcmp.lt.s32.totalorder %v1648, 2
    %vm1650 = vcmp.eq.s32.totalorder %v1648, 0
    %v1651 = vxor.u32 %v1646, 2147483648
    %v1652 = vsel %vm1650, %v1645, %v1651
    %vm1653 = vcmp.eq.s32.totalorder %v1648, 2
    %v1654 = vxor.u32 %v1645, 2147483648
    %v1655 = vsel %vm1653, %v1654, %v1646
    %v1656 = vsel %vm1649, %v1652, %v1655
    %v1657 = vsel %vm1647, nan, %v1656
    %v1658 = vand.u32 2147483647, %v205
    %vm1659 = vcmp.le.f32.partialorder %v1658, 0.7853982
    %vm1660 = vcmp.lt.s32.totalorder %v205, 0
    %v1661 = vand.u32 %v205, 2139095040
    %v1662 = vshrl.u32 %v1661, 23
    %v1663 = vsub.s32 %v1662, 127
    %v1664 = vand.u32 2147483647, %v205
    %v1665 = vand.u32 %v1664, 8388607
    %v1666 = vor.u32 %v1665, 8388608
    %v1667 = vsub.s32 0, %v1666
    %v1668 = vadd.s32 %v1663, 1
    %vm1669 = vcmp.gt.s32.totalorder %v1668, 0
    %v1670 = vsel %vm1669, %v1668, 0
    %v1671 = vshrl.u32 %v1670, 5
    %v1672 = vand.u32 %v1670, 31
    %v1673 = vsub.s32 32, %v1672
    %v1674 = vshrl.u32 683565275, %v1673
    %v1675 = vshll.u32 683565275, %v1672
    %v1676 = vshrl.u32 2475754826, %v1673
    %v1677 = vor.u32 %v1675, %v1676
    %v1678 = vshll.u32 2475754826, %v1672
    %v1679 = vshrl.u32 2131351028, %v1673
    %v1680 = vor.u32 %v1678, %v1679
    %v1681 = vshll.u32 2131351028, %v1672
    %v1682 = vshrl.u32 2102212464, %v1673
    %v1683 = vor.u32 %v1681, %v1682
    %v1684 = vshll.u32 2102212464, %v1672
    %v1685 = vshrl.u32 920167782, %v1673
    %v1686 = vor.u32 %v1684, %v1685
    %v1687 = vshll.u32 920167782, %v1672
    %v1688 = vshrl.u32 1326507024, %v1673
    %v1689 = vor.u32 %v1687, %v1688
    %vm1690 = vcmp.lt.s32.totalorder %v1671, 1
    %vm1691 = vcmp.lt.s32.totalorder %v1671, 2
    %vm1692 = vcmp.lt.s32.totalorder %v1671, 3
    %vm1693 = vcmp.lt.s32.totalorder %v1671, 4
    %v1694 = vsel %vm1690, %v1674, %v1677
    %v1695 = vsel %vm1693, %v1683, 2102212464
    %v1696 = vsel %vm1692, %v1680, %v1695
    %v1697 = vsel %vm1691, %v1694, %v1696
    %v1698 = vsel %vm1690, %v1677, %v1680
    %v1699 = vsel %vm1693, %v1686, 920167782
    %v1700 = vsel %vm1692, %v1683, %v1699
    %v1701 = vsel %vm1691, %v1698, %v1700
    %v1702 = vsel %vm1690, %v1680, %v1683
    %v1703 = vsel %vm1693, %v1689, 1326507024
    %v1704 = vsel %vm1692, %v1686, %v1703
    %v1705 = vsel %vm1691, %v1702, %v1704
    %v1706 = vshll.u32 %v1666, 8
    %v1707 = vmul.u32.u64.compose %v1706, %v1705
    %v1708 = vextract.low.u32 %v1707
    %v1709 = vextract.high.u32 %v1707
    %v1710 = vmul.u32.u64.compose %v1706, %v1701
    %v1711 = vextract.low.u32 %v1710
    %v1712 = vextract.high.u32 %v1710
    %v1713 = vmul.u32 %v1706, %v1697
    %v1714 = vadd.s32 %v1709, %v1711
    %vm1715 = vc.u32 %v1709, %v1711
    %v1716 = vadd.s32 %v1712, 1
    %v1717 = vsel %vm1715, %v1716, %v1712
    %v1718 = vadd.s32 %v1713, %v1717
    %v1719 = vadd.s32 %v1718, 536870912
    %v1720 = vshrl.u32 %v1719, 30
    %v1721 = vshll.u32 %v1720, 30
    %v1722 = vsub.s32 %v1718, %v1721
    %vm1723 = vcmp.lt.s32.totalorder %v1722, 0
    %v1724 = vsub.s32 0, %v1722
    %v1725 = vsel %vm1723, %v1724, %v1722
    %v1726 = vclz %v1725
    %v1727 = vsub.s32 %v1726, 2
    %vm1728 = vcmp.gt.s32.totalorder 0, %v1727
    %v1729 = vsel %vm1728, 0, %v1727
    %v1730 = vsub.s32 32, %v1729
    %v1731 = vshll.u32 %v1722, %v1729
    %v1732 = vshrl.u32 %v1714, %v1730
    %v1733 = vor.u32 %v1731, %v1732
    %v1734 = vsub.s32 4294967266, %v1729
    %v1735 = vadd.s32 %v1734, 127
    %v1736 = vshll.u32 %v1735, 23
    %v1737 = vor.u32 4788187, %v1736
    %v1738 = vand.u32 2147483647, %v1737
    %v1740 = vcvt.s32.f32 %v1733
    %v1741 = vmul.f32 %v1740, %v1738
    %v1742 = vxor.u32 %v1741, 2147483648
    %v1743 = vsel %vm1660, %v1742, %v1741
    %v1744 = vsub.s32 4, %v1720
    %v1745 = vsel %vm1660, %v1744, %v1720
    %v1746 = vsel %vm1659, %v205, %v1743
    %v1747 = vsel %vm1659, 0, %v1745
    %v1748 = vcosq.f32.pop %v1746
    %v1749 = vsinq.f32.pop %v1746
    %vm1750 = vweird.f32 %v205
    %v1751 = vand.u32 %v1747, 3
    %vm1752 = vcmp.lt.s32.totalorder %v1751, 2
    %vm1753 = vcmp.eq.s32.totalorder %v1751, 0
    %v1754 = vxor.u32 %v1749, 2147483648
    %v1755 = vsel %vm1753, %v1748, %v1754
    %vm1756 = vcmp.eq.s32.totalorder %v1751, 2
    %v1757 = vxor.u32 %v1748, 2147483648
    %v1758 = vsel %vm1756, %v1757, %v1749
    %v1759 = vsel %vm1752, %v1755, %v1758
    %v1760 = vsel %vm1750, nan, %v1759
    %v1761 = vand.u32 2147483647, %v206
    %vm1762 = vcmp.le.f32.partialorder %v1761, 0.7853982
    %vm1763 = vcmp.lt.s32.totalorder %v206, 0
    %v1764 = vand.u32 %v206, 2139095040
    %v1765 = vshrl.u32 %v1764, 23
    %v1766 = vsub.s32 %v1765, 127
    %v1767 = vand.u32 2147483647, %v206
    %v1768 = vand.u32 %v1767, 8388607
    %v1769 = vor.u32 %v1768, 8388608
    %v1770 = vsub.s32 0, %v1769
    %v1771 = vadd.s32 %v1766, 1
    %vm1772 = vcmp.gt.s32.totalorder %v1771, 0
    %v1773 = vsel %vm1772, %v1771, 0
    %v1774 = vshrl.u32 %v1773, 5
    %v1775 = vand.u32 %v1773, 31
    %v1776 = vsub.s32 32, %v1775
    %v1777 = vshrl.u32 683565275, %v1776
    %v1778 = vshll.u32 683565275, %v1775
    %v1779 = vshrl.u32 2475754826, %v1776
    %v1780 = vor.u32 %v1778, %v1779
    %v1781 = vshll.u32 2475754826, %v1775
    %v1782 = vshrl.u32 2131351028, %v1776
    %v1783 = vor.u32 %v1781, %v1782
    %v1784 = vshll.u32 2131351028, %v1775
    %v1785 = vshrl.u32 2102212464, %v1776
    %v1786 = vor.u32 %v1784, %v1785
    %v1787 = vshll.u32 2102212464, %v1775
    %v1788 = vshrl.u32 920167782, %v1776
    %v1789 = vor.u32 %v1787, %v1788
    %v1790 = vshll.u32 920167782, %v1775
    %v1791 = vshrl.u32 1326507024, %v1776
    %v1792 = vor.u32 %v1790, %v1791
    %vm1793 = vcmp.lt.s32.totalorder %v1774, 1
    %vm1794 = vcmp.lt.s32.totalorder %v1774, 2
    %vm1795 = vcmp.lt.s32.totalorder %v1774, 3
    %vm1796 = vcmp.lt.s32.totalorder %v1774, 4
    %v1797 = vsel %vm1793, %v1777, %v1780
    %v1798 = vsel %vm1796, %v1786, 2102212464
    %v1799 = vsel %vm1795, %v1783, %v1798
    %v1800 = vsel %vm1794, %v1797, %v1799
    %v1801 = vsel %vm1793, %v1780, %v1783
    %v1802 = vsel %vm1796, %v1789, 920167782
    %v1803 = vsel %vm1795, %v1786, %v1802
    %v1804 = vsel %vm1794, %v1801, %v1803
    %v1805 = vsel %vm1793, %v1783, %v1786
    %v1806 = vsel %vm1796, %v1792, 1326507024
    %v1807 = vsel %vm1795, %v1789, %v1806
    %v1808 = vsel %vm1794, %v1805, %v1807
    %v1809 = vshll.u32 %v1769, 8
    %v1810 = vmul.u32.u64.compose %v1809, %v1808
    %v1811 = vextract.low.u32 %v1810
    %v1812 = vextract.high.u32 %v1810
    %v1813 = vmul.u32.u64.compose %v1809, %v1804
    %v1814 = vextract.low.u32 %v1813
    %v1815 = vextract.high.u32 %v1813
    %v1816 = vmul.u32 %v1809, %v1800
    %v1817 = vadd.s32 %v1812, %v1814
    %vm1818 = vc.u32 %v1812, %v1814
    %v1819 = vadd.s32 %v1815, 1
    %v1820 = vsel %vm1818, %v1819, %v1815
    %v1821 = vadd.s32 %v1816, %v1820
    %v1822 = vadd.s32 %v1821, 536870912
    %v1823 = vshrl.u32 %v1822, 30
    %v1824 = vshll.u32 %v1823, 30
    %v1825 = vsub.s32 %v1821, %v1824
    %vm1826 = vcmp.lt.s32.totalorder %v1825, 0
    %v1827 = vsub.s32 0, %v1825
    %v1828 = vsel %vm1826, %v1827, %v1825
    %v1829 = vclz %v1828
    %v1830 = vsub.s32 %v1829, 2
    %vm1831 = vcmp.gt.s32.totalorder 0, %v1830
    %v1832 = vsel %vm1831, 0, %v1830
    %v1833 = vsub.s32 32, %v1832
    %v1834 = vshll.u32 %v1825, %v1832
    %v1835 = vshrl.u32 %v1817, %v1833
    %v1836 = vor.u32 %v1834, %v1835
    %v1837 = vsub.s32 4294967266, %v1832
    %v1838 = vadd.s32 %v1837, 127
    %v1839 = vshll.u32 %v1838, 23
    %v1840 = vor.u32 4788187, %v1839
    %v1841 = vand.u32 2147483647, %v1840
    %v1843 = vcvt.s32.f32 %v1836
    %v1844 = vmul.f32 %v1843, %v1841
    %v1845 = vxor.u32 %v1844, 2147483648
    %v1846 = vsel %vm1763, %v1845, %v1844
    %v1847 = vsub.s32 4, %v1823
    %v1848 = vsel %vm1763, %v1847, %v1823
    %v1849 = vsel %vm1762, %v206, %v1846
    %v1850 = vsel %vm1762, 0, %v1848
    %v1851 = vcosq.f32.pop %v1849
    %v1852 = vsinq.f32.pop %v1849
    %vm1853 = vweird.f32 %v206
    %v1854 = vand.u32 %v1850, 3
    %vm1855 = vcmp.lt.s32.totalorder %v1854, 2
    %vm1856 = vcmp.eq.s32.totalorder %v1854, 0
    %v1857 = vxor.u32 %v1852, 2147483648
    %v1858 = vsel %vm1856, %v1851, %v1857
    %vm1859 = vcmp.eq.s32.totalorder %v1854, 2
    %v1860 = vxor.u32 %v1851, 2147483648
    %v1861 = vsel %vm1859, %v1860, %v1852
    %v1862 = vsel %vm1855, %v1858, %v1861
    %v1863 = vsel %vm1853, nan, %v1862
    %v1864 = vand.u32 2147483647, %v207
    %vm1865 = vcmp.le.f32.partialorder %v1864, 0.7853982
    %vm1866 = vcmp.lt.s32.totalorder %v207, 0
    %v1867 = vand.u32 %v207, 2139095040
    %v1868 = vshrl.u32 %v1867, 23
    %v1869 = vsub.s32 %v1868, 127
    %v1870 = vand.u32 2147483647, %v207
    %v1871 = vand.u32 %v1870, 8388607
    %v1872 = vor.u32 %v1871, 8388608
    %v1873 = vsub.s32 0, %v1872
    %v1874 = vadd.s32 %v1869, 1
    %vm1875 = vcmp.gt.s32.totalorder %v1874, 0
    %v1876 = vsel %vm1875, %v1874, 0
    %v1877 = vshrl.u32 %v1876, 5
    %v1878 = vand.u32 %v1876, 31
    %v1879 = vsub.s32 32, %v1878
    %v1880 = vshrl.u32 683565275, %v1879
    %v1881 = vshll.u32 683565275, %v1878
    %v1882 = vshrl.u32 2475754826, %v1879
    %v1883 = vor.u32 %v1881, %v1882
    %v1884 = vshll.u32 2475754826, %v1878
    %v1885 = vshrl.u32 2131351028, %v1879
    %v1886 = vor.u32 %v1884, %v1885
    %v1887 = vshll.u32 2131351028, %v1878
    %v1888 = vshrl.u32 2102212464, %v1879
    %v1889 = vor.u32 %v1887, %v1888
    %v1890 = vshll.u32 2102212464, %v1878
    %v1891 = vshrl.u32 920167782, %v1879
    %v1892 = vor.u32 %v1890, %v1891
    %v1893 = vshll.u32 920167782, %v1878
    %v1894 = vshrl.u32 1326507024, %v1879
    %v1895 = vor.u32 %v1893, %v1894
    %vm1896 = vcmp.lt.s32.totalorder %v1877, 1
    %vm1897 = vcmp.lt.s32.totalorder %v1877, 2
    %vm1898 = vcmp.lt.s32.totalorder %v1877, 3
    %vm1899 = vcmp.lt.s32.totalorder %v1877, 4
    %v1900 = vsel %vm1896, %v1880, %v1883
    %v1901 = vsel %vm1899, %v1889, 2102212464
    %v1902 = vsel %vm1898, %v1886, %v1901
    %v1903 = vsel %vm1897, %v1900, %v1902
    %v1904 = vsel %vm1896, %v1883, %v1886
    %v1905 = vsel %vm1899, %v1892, 920167782
    %v1906 = vsel %vm1898, %v1889, %v1905
    %v1907 = vsel %vm1897, %v1904, %v1906
    %v1908 = vsel %vm1896, %v1886, %v1889
    %v1909 = vsel %vm1899, %v1895, 1326507024
    %v1910 = vsel %vm1898, %v1892, %v1909
    %v1911 = vsel %vm1897, %v1908, %v1910
    %v1912 = vshll.u32 %v1872, 8
    %v1913 = vmul.u32.u64.compose %v1912, %v1911
    %v1914 = vextract.low.u32 %v1913
    %v1915 = vextract.high.u32 %v1913
    %v1916 = vmul.u32.u64.compose %v1912, %v1907
    %v1917 = vextract.low.u32 %v1916
    %v1918 = vextract.high.u32 %v1916
    %v1919 = vmul.u32 %v1912, %v1903
    %v1920 = vadd.s32 %v1915, %v1917
    %vm1921 = vc.u32 %v1915, %v1917
    %v1922 = vadd.s32 %v1918, 1
    %v1923 = vsel %vm1921, %v1922, %v1918
    %v1924 = vadd.s32 %v1919, %v1923
    %v1925 = vadd.s32 %v1924, 536870912
    %v1926 = vshrl.u32 %v1925, 30
    %v1927 = vshll.u32 %v1926, 30
    %v1928 = vsub.s32 %v1924, %v1927
    %vm1929 = vcmp.lt.s32.totalorder %v1928, 0
    %v1930 = vsub.s32 0, %v1928
    %v1931 = vsel %vm1929, %v1930, %v1928
    %v1932 = vclz %v1931
    %v1933 = vsub.s32 %v1932, 2
    %vm1934 = vcmp.gt.s32.totalorder 0, %v1933
    %v1935 = vsel %vm1934, 0, %v1933
    %v1936 = vsub.s32 32, %v1935
    %v1937 = vshll.u32 %v1928, %v1935
    %v1938 = vshrl.u32 %v1920, %v1936
    %v1939 = vor.u32 %v1937, %v1938
    %v1940 = vsub.s32 4294967266, %v1935
    %v1941 = vadd.s32 %v1940, 127
    %v1942 = vshll.u32 %v1941, 23
    %v1943 = vor.u32 4788187, %v1942
    %v1944 = vand.u32 2147483647, %v1943
    %v1946 = vcvt.s32.f32 %v1939
    %v1947 = vmul.f32 %v1946, %v1944
    %v1948 = vxor.u32 %v1947, 2147483648
    %v1949 = vsel %vm1866, %v1948, %v1947
    %v1950 = vsub.s32 4, %v1926
    %v1951 = vsel %vm1866, %v1950, %v1926
    %v1952 = vsel %vm1865, %v207, %v1949
    %v1953 = vsel %vm1865, 0, %v1951
    %v1954 = vcosq.f32.pop %v1952
    %v1955 = vsinq.f32.pop %v1952
    %vm1956 = vweird.f32 %v207
    %v1957 = vand.u32 %v1953, 3
    %vm1958 = vcmp.lt.s32.totalorder %v1957, 2
    %vm1959 = vcmp.eq.s32.totalorder %v1957, 0
    %v1960 = vxor.u32 %v1955, 2147483648
    %v1961 = vsel %vm1959, %v1954, %v1960
    %vm1962 = vcmp.eq.s32.totalorder %v1957, 2
    %v1963 = vxor.u32 %v1954, 2147483648
    %v1964 = vsel %vm1962, %v1963, %v1955
    %v1965 = vsel %vm1958, %v1961, %v1964
    %v1966 = vsel %vm1956, nan, %v1965
    %v1967 = vand.u32 2147483647, %v208
    %vm1968 = vcmp.le.f32.partialorder %v1967, 0.7853982
    %vm1969 = vcmp.lt.s32.totalorder %v208, 0
    %v1970 = vand.u32 %v208, 2139095040
    %v1971 = vshrl.u32 %v1970, 23
    %v1972 = vsub.s32 %v1971, 127
    %v1973 = vand.u32 2147483647, %v208
    %v1974 = vand.u32 %v1973, 8388607
    %v1975 = vor.u32 %v1974, 8388608
    %v1976 = vsub.s32 0, %v1975
    %v1977 = vadd.s32 %v1972, 1
    %vm1978 = vcmp.gt.s32.totalorder %v1977, 0
    %v1979 = vsel %vm1978, %v1977, 0
    %v1980 = vshrl.u32 %v1979, 5
    %v1981 = vand.u32 %v1979, 31
    %v1982 = vsub.s32 32, %v1981
    %v1983 = vshrl.u32 683565275, %v1982
    %v1984 = vshll.u32 683565275, %v1981
    %v1985 = vshrl.u32 2475754826, %v1982
    %v1986 = vor.u32 %v1984, %v1985
    %v1987 = vshll.u32 2475754826, %v1981
    %v1988 = vshrl.u32 2131351028, %v1982
    %v1989 = vor.u32 %v1987, %v1988
    %v1990 = vshll.u32 2131351028, %v1981
    %v1991 = vshrl.u32 2102212464, %v1982
    %v1992 = vor.u32 %v1990, %v1991
    %v1993 = vshll.u32 2102212464, %v1981
    %v1994 = vshrl.u32 920167782, %v1982
    %v1995 = vor.u32 %v1993, %v1994
    %v1996 = vshll.u32 920167782, %v1981
    %v1997 = vshrl.u32 1326507024, %v1982
    %v1998 = vor.u32 %v1996, %v1997
    %vm1999 = vcmp.lt.s32.totalorder %v1980, 1
    %vm2000 = vcmp.lt.s32.totalorder %v1980, 2
    %vm2001 = vcmp.lt.s32.totalorder %v1980, 3
    %vm2002 = vcmp.lt.s32.totalorder %v1980, 4
    %v2003 = vsel %vm1999, %v1983, %v1986
    %v2004 = vsel %vm2002, %v1992, 2102212464
    %v2005 = vsel %vm2001, %v1989, %v2004
    %v2006 = vsel %vm2000, %v2003, %v2005
    %v2007 = vsel %vm1999, %v1986, %v1989
    %v2008 = vsel %vm2002, %v1995, 920167782
    %v2009 = vsel %vm2001, %v1992, %v2008
    %v2010 = vsel %vm2000, %v2007, %v2009
    %v2011 = vsel %vm1999, %v1989, %v1992
    %v2012 = vsel %vm2002, %v1998, 1326507024
    %v2013 = vsel %vm2001, %v1995, %v2012
    %v2014 = vsel %vm2000, %v2011, %v2013
    %v2015 = vshll.u32 %v1975, 8
    %v2016 = vmul.u32.u64.compose %v2015, %v2014
    %v2017 = vextract.low.u32 %v2016
    %v2018 = vextract.high.u32 %v2016
    %v2019 = vmul.u32.u64.compose %v2015, %v2010
    %v2020 = vextract.low.u32 %v2019
    %v2021 = vextract.high.u32 %v2019
    %v2022 = vmul.u32 %v2015, %v2006
    %v2023 = vadd.s32 %v2018, %v2020
    %vm2024 = vc.u32 %v2018, %v2020
    %v2025 = vadd.s32 %v2021, 1
    %v2026 = vsel %vm2024, %v2025, %v2021
    %v2027 = vadd.s32 %v2022, %v2026
    %v2028 = vadd.s32 %v2027, 536870912
    %v2029 = vshrl.u32 %v2028, 30
    %v2030 = vshll.u32 %v2029, 30
    %v2031 = vsub.s32 %v2027, %v2030
    %vm2032 = vcmp.lt.s32.totalorder %v2031, 0
    %v2033 = vsub.s32 0, %v2031
    %v2034 = vsel %vm2032, %v2033, %v2031
    %v2035 = vclz %v2034
    %v2036 = vsub.s32 %v2035, 2
    %vm2037 = vcmp.gt.s32.totalorder 0, %v2036
    %v2038 = vsel %vm2037, 0, %v2036
    %v2039 = vsub.s32 32, %v2038
    %v2040 = vshll.u32 %v2031, %v2038
    %v2041 = vshrl.u32 %v2023, %v2039
    %v2042 = vor.u32 %v2040, %v2041
    %v2043 = vsub.s32 4294967266, %v2038
    %v2044 = vadd.s32 %v2043, 127
    %v2045 = vshll.u32 %v2044, 23
    %v2046 = vor.u32 4788187, %v2045
    %v2047 = vand.u32 2147483647, %v2046
    %v2049 = vcvt.s32.f32 %v2042
    %v2050 = vmul.f32 %v2049, %v2047
    %v2051 = vxor.u32 %v2050, 2147483648
    %v2052 = vsel %vm1969, %v2051, %v2050
    %v2053 = vsub.s32 4, %v2029
    %v2054 = vsel %vm1969, %v2053, %v2029
    %v2055 = vsel %vm1968, %v208, %v2052
    %v2056 = vsel %vm1968, 0, %v2054
    %v2057 = vcosq.f32.pop %v2055
    %v2058 = vsinq.f32.pop %v2055
    %vm2059 = vweird.f32 %v208
    %v2060 = vand.u32 %v2056, 3
    %vm2061 = vcmp.lt.s32.totalorder %v2060, 2
    %vm2062 = vcmp.eq.s32.totalorder %v2060, 0
    %v2063 = vxor.u32 %v2058, 2147483648
    %v2064 = vsel %vm2062, %v2057, %v2063
    %vm2065 = vcmp.eq.s32.totalorder %v2060, 2
    %v2066 = vxor.u32 %v2057, 2147483648
    %v2067 = vsel %vm2065, %v2066, %v2058
    %v2068 = vsel %vm2061, %v2064, %v2067
    %v2069 = vsel %vm2059, nan, %v2068
    %v2070 = vand.u32 2147483647, %v209
    %vm2071 = vcmp.le.f32.partialorder %v2070, 0.7853982
    %vm2072 = vcmp.lt.s32.totalorder %v209, 0
    %v2073 = vand.u32 %v209, 2139095040
    %v2074 = vshrl.u32 %v2073, 23
    %v2075 = vsub.s32 %v2074, 127
    %v2076 = vand.u32 2147483647, %v209
    %v2077 = vand.u32 %v2076, 8388607
    %v2078 = vor.u32 %v2077, 8388608
    %v2079 = vsub.s32 0, %v2078
    %v2080 = vadd.s32 %v2075, 1
    %vm2081 = vcmp.gt.s32.totalorder %v2080, 0
    %v2082 = vsel %vm2081, %v2080, 0
    %v2083 = vshrl.u32 %v2082, 5
    %v2084 = vand.u32 %v2082, 31
    %v2085 = vsub.s32 32, %v2084
    %v2086 = vshrl.u32 683565275, %v2085
    %v2087 = vshll.u32 683565275, %v2084
    %v2088 = vshrl.u32 2475754826, %v2085
    %v2089 = vor.u32 %v2087, %v2088
    %v2090 = vshll.u32 2475754826, %v2084
    %v2091 = vshrl.u32 2131351028, %v2085
    %v2092 = vor.u32 %v2090, %v2091
    %v2093 = vshll.u32 2131351028, %v2084
    %v2094 = vshrl.u32 2102212464, %v2085
    %v2095 = vor.u32 %v2093, %v2094
    %v2096 = vshll.u32 2102212464, %v2084
    %v2097 = vshrl.u32 920167782, %v2085
    %v2098 = vor.u32 %v2096, %v2097
    %v2099 = vshll.u32 920167782, %v2084
    %v2100 = vshrl.u32 1326507024, %v2085
    %v2101 = vor.u32 %v2099, %v2100
    %vm2102 = vcmp.lt.s32.totalorder %v2083, 1
    %vm2103 = vcmp.lt.s32.totalorder %v2083, 2
    %vm2104 = vcmp.lt.s32.totalorder %v2083, 3
    %vm2105 = vcmp.lt.s32.totalorder %v2083, 4
    %v2106 = vsel %vm2102, %v2086, %v2089
    %v2107 = vsel %vm2105, %v2095, 2102212464
    %v2108 = vsel %vm2104, %v2092, %v2107
    %v2109 = vsel %vm2103, %v2106, %v2108
    %v2110 = vsel %vm2102, %v2089, %v2092
    %v2111 = vsel %vm2105, %v2098, 920167782
    %v2112 = vsel %vm2104, %v2095, %v2111
    %v2113 = vsel %vm2103, %v2110, %v2112
    %v2114 = vsel %vm2102, %v2092, %v2095
    %v2115 = vsel %vm2105, %v2101, 1326507024
    %v2116 = vsel %vm2104, %v2098, %v2115
    %v2117 = vsel %vm2103, %v2114, %v2116
    %v2118 = vshll.u32 %v2078, 8
    %v2119 = vmul.u32.u64.compose %v2118, %v2117
    %v2120 = vextract.low.u32 %v2119
    %v2121 = vextract.high.u32 %v2119
    %v2122 = vmul.u32.u64.compose %v2118, %v2113
    %v2123 = vextract.low.u32 %v2122
    %v2124 = vextract.high.u32 %v2122
    %v2125 = vmul.u32 %v2118, %v2109
    %v2126 = vadd.s32 %v2121, %v2123
    %vm2127 = vc.u32 %v2121, %v2123
    %v2128 = vadd.s32 %v2124, 1
    %v2129 = vsel %vm2127, %v2128, %v2124
    %v2130 = vadd.s32 %v2125, %v2129
    %v2131 = vadd.s32 %v2130, 536870912
    %v2132 = vshrl.u32 %v2131, 30
    %v2133 = vshll.u32 %v2132, 30
    %v2134 = vsub.s32 %v2130, %v2133
    %vm2135 = vcmp.lt.s32.totalorder %v2134, 0
    %v2136 = vsub.s32 0, %v2134
    %v2137 = vsel %vm2135, %v2136, %v2134
    %v2138 = vclz %v2137
    %v2139 = vsub.s32 %v2138, 2
    %vm2140 = vcmp.gt.s32.totalorder 0, %v2139
    %v2141 = vsel %vm2140, 0, %v2139
    %v2142 = vsub.s32 32, %v2141
    %v2143 = vshll.u32 %v2134, %v2141
    %v2144 = vshrl.u32 %v2126, %v2142
    %v2145 = vor.u32 %v2143, %v2144
    %v2146 = vsub.s32 4294967266, %v2141
    %v2147 = vadd.s32 %v2146, 127
    %v2148 = vshll.u32 %v2147, 23
    %v2149 = vor.u32 4788187, %v2148
    %v2150 = vand.u32 2147483647, %v2149
    %v2152 = vcvt.s32.f32 %v2145
    %v2153 = vmul.f32 %v2152, %v2150
    %v2154 = vxor.u32 %v2153, 2147483648
    %v2155 = vsel %vm2072, %v2154, %v2153
    %v2156 = vsub.s32 4, %v2132
    %v2157 = vsel %vm2072, %v2156, %v2132
    %v2158 = vsel %vm2071, %v209, %v2155
    %v2159 = vsel %vm2071, 0, %v2157
    %v2160 = vcosq.f32.pop %v2158
    %v2161 = vsinq.f32.pop %v2158
    %vm2162 = vweird.f32 %v209
    %v2163 = vand.u32 %v2159, 3
    %vm2164 = vcmp.lt.s32.totalorder %v2163, 2
    %vm2165 = vcmp.eq.s32.totalorder %v2163, 0
    %v2166 = vxor.u32 %v2161, 2147483648
    %v2167 = vsel %vm2165, %v2160, %v2166
    %vm2168 = vcmp.eq.s32.totalorder %v2163, 2
    %v2169 = vxor.u32 %v2160, 2147483648
    %v2170 = vsel %vm2168, %v2169, %v2161
    %v2171 = vsel %vm2164, %v2167, %v2170
    %v2172 = vsel %vm2162, nan, %v2171
    %v2173 = vand.u32 2147483647, %v210
    %vm2174 = vcmp.le.f32.partialorder %v2173, 0.7853982
    %vm2175 = vcmp.lt.s32.totalorder %v210, 0
    %v2176 = vand.u32 %v210, 2139095040
    %v2177 = vshrl.u32 %v2176, 23
    %v2178 = vsub.s32 %v2177, 127
    %v2179 = vand.u32 2147483647, %v210
    %v2180 = vand.u32 %v2179, 8388607
    %v2181 = vor.u32 %v2180, 8388608
    %v2182 = vsub.s32 0, %v2181
    %v2183 = vadd.s32 %v2178, 1
    %vm2184 = vcmp.gt.s32.totalorder %v2183, 0
    %v2185 = vsel %vm2184, %v2183, 0
    %v2186 = vshrl.u32 %v2185, 5
    %v2187 = vand.u32 %v2185, 31
    %v2188 = vsub.s32 32, %v2187
    %v2189 = vshrl.u32 683565275, %v2188
    %v2190 = vshll.u32 683565275, %v2187
    %v2191 = vshrl.u32 2475754826, %v2188
    %v2192 = vor.u32 %v2190, %v2191
    %v2193 = vshll.u32 2475754826, %v2187
    %v2194 = vshrl.u32 2131351028, %v2188
    %v2195 = vor.u32 %v2193, %v2194
    %v2196 = vshll.u32 2131351028, %v2187
    %v2197 = vshrl.u32 2102212464, %v2188
    %v2198 = vor.u32 %v2196, %v2197
    %v2199 = vshll.u32 2102212464, %v2187
    %v2200 = vshrl.u32 920167782, %v2188
    %v2201 = vor.u32 %v2199, %v2200
    %v2202 = vshll.u32 920167782, %v2187
    %v2203 = vshrl.u32 1326507024, %v2188
    %v2204 = vor.u32 %v2202, %v2203
    %vm2205 = vcmp.lt.s32.totalorder %v2186, 1
    %vm2206 = vcmp.lt.s32.totalorder %v2186, 2
    %vm2207 = vcmp.lt.s32.totalorder %v2186, 3
    %vm2208 = vcmp.lt.s32.totalorder %v2186, 4
    %v2209 = vsel %vm2205, %v2189, %v2192
    %v2210 = vsel %vm2208, %v2198, 2102212464
    %v2211 = vsel %vm2207, %v2195, %v2210
    %v2212 = vsel %vm2206, %v2209, %v2211
    %v2213 = vsel %vm2205, %v2192, %v2195
    %v2214 = vsel %vm2208, %v2201, 920167782
    %v2215 = vsel %vm2207, %v2198, %v2214
    %v2216 = vsel %vm2206, %v2213, %v2215
    %v2217 = vsel %vm2205, %v2195, %v2198
    %v2218 = vsel %vm2208, %v2204, 1326507024
    %v2219 = vsel %vm2207, %v2201, %v2218
    %v2220 = vsel %vm2206, %v2217, %v2219
    %v2221 = vshll.u32 %v2181, 8
    %v2222 = vmul.u32.u64.compose %v2221, %v2220
    %v2223 = vextract.low.u32 %v2222
    %v2224 = vextract.high.u32 %v2222
    %v2225 = vmul.u32.u64.compose %v2221, %v2216
    %v2226 = vextract.low.u32 %v2225
    %v2227 = vextract.high.u32 %v2225
    %v2228 = vmul.u32 %v2221, %v2212
    %v2229 = vadd.s32 %v2224, %v2226
    %vm2230 = vc.u32 %v2224, %v2226
    %v2231 = vadd.s32 %v2227, 1
    %v2232 = vsel %vm2230, %v2231, %v2227
    %v2233 = vadd.s32 %v2228, %v2232
    %v2234 = vadd.s32 %v2233, 536870912
    %v2235 = vshrl.u32 %v2234, 30
    %v2236 = vshll.u32 %v2235, 30
    %v2237 = vsub.s32 %v2233, %v2236
    %vm2238 = vcmp.lt.s32.totalorder %v2237, 0
    %v2239 = vsub.s32 0, %v2237
    %v2240 = vsel %vm2238, %v2239, %v2237
    %v2241 = vclz %v2240
    %v2242 = vsub.s32 %v2241, 2
    %vm2243 = vcmp.gt.s32.totalorder 0, %v2242
    %v2244 = vsel %vm2243, 0, %v2242
    %v2245 = vsub.s32 32, %v2244
    %v2246 = vshll.u32 %v2237, %v2244
    %v2247 = vshrl.u32 %v2229, %v2245
    %v2248 = vor.u32 %v2246, %v2247
    %v2249 = vsub.s32 4294967266, %v2244
    %v2250 = vadd.s32 %v2249, 127
    %v2251 = vshll.u32 %v2250, 23
    %v2252 = vor.u32 4788187, %v2251
    %v2253 = vand.u32 2147483647, %v2252
    %v2255 = vcvt.s32.f32 %v2248
    %v2256 = vmul.f32 %v2255, %v2253
    %v2257 = vxor.u32 %v2256, 2147483648
    %v2258 = vsel %vm2175, %v2257, %v2256
    %v2259 = vsub.s32 4, %v2235
    %v2260 = vsel %vm2175, %v2259, %v2235
    %v2261 = vsel %vm2174, %v210, %v2258
    %v2262 = vsel %vm2174, 0, %v2260
    %v2263 = vcosq.f32.pop %v2261
    %v2264 = vsinq.f32.pop %v2261
    %vm2265 = vweird.f32 %v210
    %v2266 = vand.u32 %v2262, 3
    %vm2267 = vcmp.lt.s32.totalorder %v2266, 2
    %vm2268 = vcmp.eq.s32.totalorder %v2266, 0
    %v2269 = vxor.u32 %v2264, 2147483648
    %v2270 = vsel %vm2268, %v2263, %v2269
    %vm2271 = vcmp.eq.s32.totalorder %v2266, 2
    %v2272 = vxor.u32 %v2263, 2147483648
    %v2273 = vsel %vm2271, %v2272, %v2264
    %v2274 = vsel %vm2267, %v2270, %v2273
    %v2275 = vsel %vm2265, nan, %v2274
    %v2276 = vand.u32 2147483647, %v211
    %vm2277 = vcmp.le.f32.partialorder %v2276, 0.7853982
    %vm2278 = vcmp.lt.s32.totalorder %v211, 0
    %v2279 = vand.u32 %v211, 2139095040
    %v2280 = vshrl.u32 %v2279, 23
    %v2281 = vsub.s32 %v2280, 127
    %v2282 = vand.u32 2147483647, %v211
    %v2283 = vand.u32 %v2282, 8388607
    %v2284 = vor.u32 %v2283, 8388608
    %v2285 = vsub.s32 0, %v2284
    %v2286 = vadd.s32 %v2281, 1
    %vm2287 = vcmp.gt.s32.totalorder %v2286, 0
    %v2288 = vsel %vm2287, %v2286, 0
    %v2289 = vshrl.u32 %v2288, 5
    %v2290 = vand.u32 %v2288, 31
    %v2291 = vsub.s32 32, %v2290
    %v2292 = vshrl.u32 683565275, %v2291
    %v2293 = vshll.u32 683565275, %v2290
    %v2294 = vshrl.u32 2475754826, %v2291
    %v2295 = vor.u32 %v2293, %v2294
    %v2296 = vshll.u32 2475754826, %v2290
    %v2297 = vshrl.u32 2131351028, %v2291
    %v2298 = vor.u32 %v2296, %v2297
    %v2299 = vshll.u32 2131351028, %v2290
    %v2300 = vshrl.u32 2102212464, %v2291
    %v2301 = vor.u32 %v2299, %v2300
    %v2302 = vshll.u32 2102212464, %v2290
    %v2303 = vshrl.u32 920167782, %v2291
    %v2304 = vor.u32 %v2302, %v2303
    %v2305 = vshll.u32 920167782, %v2290
    %v2306 = vshrl.u32 1326507024, %v2291
    %v2307 = vor.u32 %v2305, %v2306
    %vm2308 = vcmp.lt.s32.totalorder %v2289, 1
    %vm2309 = vcmp.lt.s32.totalorder %v2289, 2
    %vm2310 = vcmp.lt.s32.totalorder %v2289, 3
    %vm2311 = vcmp.lt.s32.totalorder %v2289, 4
    %v2312 = vsel %vm2308, %v2292, %v2295
    %v2313 = vsel %vm2311, %v2301, 2102212464
    %v2314 = vsel %vm2310, %v2298, %v2313
    %v2315 = vsel %vm2309, %v2312, %v2314
    %v2316 = vsel %vm2308, %v2295, %v2298
    %v2317 = vsel %vm2311, %v2304, 920167782
    %v2318 = vsel %vm2310, %v2301, %v2317
    %v2319 = vsel %vm2309, %v2316, %v2318
    %v2320 = vsel %vm2308, %v2298, %v2301
    %v2321 = vsel %vm2311, %v2307, 1326507024
    %v2322 = vsel %vm2310, %v2304, %v2321
    %v2323 = vsel %vm2309, %v2320, %v2322
    %v2324 = vshll.u32 %v2284, 8
    %v2325 = vmul.u32.u64.compose %v2324, %v2323
    %v2326 = vextract.low.u32 %v2325
    %v2327 = vextract.high.u32 %v2325
    %v2328 = vmul.u32.u64.compose %v2324, %v2319
    %v2329 = vextract.low.u32 %v2328
    %v2330 = vextract.high.u32 %v2328
    %v2331 = vmul.u32 %v2324, %v2315
    %v2332 = vadd.s32 %v2327, %v2329
    %vm2333 = vc.u32 %v2327, %v2329
    %v2334 = vadd.s32 %v2330, 1
    %v2335 = vsel %vm2333, %v2334, %v2330
    %v2336 = vadd.s32 %v2331, %v2335
    %v2337 = vadd.s32 %v2336, 536870912
    %v2338 = vshrl.u32 %v2337, 30
    %v2339 = vshll.u32 %v2338, 30
    %v2340 = vsub.s32 %v2336, %v2339
    %vm2341 = vcmp.lt.s32.totalorder %v2340, 0
    %v2342 = vsub.s32 0, %v2340
    %v2343 = vsel %vm2341, %v2342, %v2340
    %v2344 = vclz %v2343
    %v2345 = vsub.s32 %v2344, 2
    %vm2346 = vcmp.gt.s32.totalorder 0, %v2345
    %v2347 = vsel %vm2346, 0, %v2345
    %v2348 = vsub.s32 32, %v2347
    %v2349 = vshll.u32 %v2340, %v2347
    %v2350 = vshrl.u32 %v2332, %v2348
    %v2351 = vor.u32 %v2349, %v2350
    %v2352 = vsub.s32 4294967266, %v2347
    %v2353 = vadd.s32 %v2352, 127
    %v2354 = vshll.u32 %v2353, 23
    %v2355 = vor.u32 4788187, %v2354
    %v2356 = vand.u32 2147483647, %v2355
    %v2358 = vcvt.s32.f32 %v2351
    %v2359 = vmul.f32 %v2358, %v2356
    %v2360 = vxor.u32 %v2359, 2147483648
    %v2361 = vsel %vm2278, %v2360, %v2359
    %v2362 = vsub.s32 4, %v2338
    %v2363 = vsel %vm2278, %v2362, %v2338
    %v2364 = vsel %vm2277, %v211, %v2361
    %v2365 = vsel %vm2277, 0, %v2363
    %v2366 = vcosq.f32.pop %v2364
    %v2367 = vsinq.f32.pop %v2364
    %vm2368 = vweird.f32 %v211
    %v2369 = vand.u32 %v2365, 3
    %vm2370 = vcmp.lt.s32.totalorder %v2369, 2
    %vm2371 = vcmp.eq.s32.totalorder %v2369, 0
    %v2372 = vxor.u32 %v2367, 2147483648
    %v2373 = vsel %vm2371, %v2366, %v2372
    %vm2374 = vcmp.eq.s32.totalorder %v2369, 2
    %v2375 = vxor.u32 %v2366, 2147483648
    %v2376 = vsel %vm2374, %v2375, %v2367
    %v2377 = vsel %vm2370, %v2373, %v2376
    %v2378 = vsel %vm2368, nan, %v2377
    %v2379 = vand.u32 2147483647, %v212
    %vm2380 = vcmp.le.f32.partialorder %v2379, 0.7853982
    %vm2381 = vcmp.lt.s32.totalorder %v212, 0
    %v2382 = vand.u32 %v212, 2139095040
    %v2383 = vshrl.u32 %v2382, 23
    %v2384 = vsub.s32 %v2383, 127
    %v2385 = vand.u32 2147483647, %v212
    %v2386 = vand.u32 %v2385, 8388607
    %v2387 = vor.u32 %v2386, 8388608
    %v2388 = vsub.s32 0, %v2387
    %v2389 = vadd.s32 %v2384, 1
    %vm2390 = vcmp.gt.s32.totalorder %v2389, 0
    %v2391 = vsel %vm2390, %v2389, 0
    %v2392 = vshrl.u32 %v2391, 5
    %v2393 = vand.u32 %v2391, 31
    %v2394 = vsub.s32 32, %v2393
    %v2395 = vshrl.u32 683565275, %v2394
    %v2396 = vshll.u32 683565275, %v2393
    %v2397 = vshrl.u32 2475754826, %v2394
    %v2398 = vor.u32 %v2396, %v2397
    %v2399 = vshll.u32 2475754826, %v2393
    %v2400 = vshrl.u32 2131351028, %v2394
    %v2401 = vor.u32 %v2399, %v2400
    %v2402 = vshll.u32 2131351028, %v2393
    %v2403 = vshrl.u32 2102212464, %v2394
    %v2404 = vor.u32 %v2402, %v2403
    %v2405 = vshll.u32 2102212464, %v2393
    %v2406 = vshrl.u32 920167782, %v2394
    %v2407 = vor.u32 %v2405, %v2406
    %v2408 = vshll.u32 920167782, %v2393
    %v2409 = vshrl.u32 1326507024, %v2394
    %v2410 = vor.u32 %v2408, %v2409
    %vm2411 = vcmp.lt.s32.totalorder %v2392, 1
    %vm2412 = vcmp.lt.s32.totalorder %v2392, 2
    %vm2413 = vcmp.lt.s32.totalorder %v2392, 3
    %vm2414 = vcmp.lt.s32.totalorder %v2392, 4
    %v2415 = vsel %vm2411, %v2395, %v2398
    %v2416 = vsel %vm2414, %v2404, 2102212464
    %v2417 = vsel %vm2413, %v2401, %v2416
    %v2418 = vsel %vm2412, %v2415, %v2417
    %v2419 = vsel %vm2411, %v2398, %v2401
    %v2420 = vsel %vm2414, %v2407, 920167782
    %v2421 = vsel %vm2413, %v2404, %v2420
    %v2422 = vsel %vm2412, %v2419, %v2421
    %v2423 = vsel %vm2411, %v2401, %v2404
    %v2424 = vsel %vm2414, %v2410, 1326507024
    %v2425 = vsel %vm2413, %v2407, %v2424
    %v2426 = vsel %vm2412, %v2423, %v2425
    %v2427 = vshll.u32 %v2387, 8
    %v2428 = vmul.u32.u64.compose %v2427, %v2426
    %v2429 = vextract.low.u32 %v2428
    %v2430 = vextract.high.u32 %v2428
    %v2431 = vmul.u32.u64.compose %v2427, %v2422
    %v2432 = vextract.low.u32 %v2431
    %v2433 = vextract.high.u32 %v2431
    %v2434 = vmul.u32 %v2427, %v2418
    %v2435 = vadd.s32 %v2430, %v2432
    %vm2436 = vc.u32 %v2430, %v2432
    %v2437 = vadd.s32 %v2433, 1
    %v2438 = vsel %vm2436, %v2437, %v2433
    %v2439 = vadd.s32 %v2434, %v2438
    %v2440 = vadd.s32 %v2439, 536870912
    %v2441 = vshrl.u32 %v2440, 30
    %v2442 = vshll.u32 %v2441, 30
    %v2443 = vsub.s32 %v2439, %v2442
    %vm2444 = vcmp.lt.s32.totalorder %v2443, 0
    %v2445 = vsub.s32 0, %v2443
    %v2446 = vsel %vm2444, %v2445, %v2443
    %v2447 = vclz %v2446
    %v2448 = vsub.s32 %v2447, 2
    %vm2449 = vcmp.gt.s32.totalorder 0, %v2448
    %v2450 = vsel %vm2449, 0, %v2448
    %v2451 = vsub.s32 32, %v2450
    %v2452 = vshll.u32 %v2443, %v2450
    %v2453 = vshrl.u32 %v2435, %v2451
    %v2454 = vor.u32 %v2452, %v2453
    %v2455 = vsub.s32 4294967266, %v2450
    %v2456 = vadd.s32 %v2455, 127
    %v2457 = vshll.u32 %v2456, 23
    %v2458 = vor.u32 4788187, %v2457
    %v2459 = vand.u32 2147483647, %v2458
    %v2461 = vcvt.s32.f32 %v2454
    %v2462 = vmul.f32 %v2461, %v2459
    %v2463 = vxor.u32 %v2462, 2147483648
    %v2464 = vsel %vm2381, %v2463, %v2462
    %v2465 = vsub.s32 4, %v2441
    %v2466 = vsel %vm2381, %v2465, %v2441
    %v2467 = vsel %vm2380, %v212, %v2464
    %v2468 = vsel %vm2380, 0, %v2466
    %v2469 = vcosq.f32.pop %v2467
    %v2470 = vsinq.f32.pop %v2467
    %vm2471 = vweird.f32 %v212
    %v2472 = vand.u32 %v2468, 3
    %vm2473 = vcmp.lt.s32.totalorder %v2472, 2
    %vm2474 = vcmp.eq.s32.totalorder %v2472, 0
    %v2475 = vxor.u32 %v2470, 2147483648
    %v2476 = vsel %vm2474, %v2469, %v2475
    %vm2477 = vcmp.eq.s32.totalorder %v2472, 2
    %v2478 = vxor.u32 %v2469, 2147483648
    %v2479 = vsel %vm2477, %v2478, %v2470
    %v2480 = vsel %vm2473, %v2476, %v2479
    %v2481 = vsel %vm2471, nan, %v2480
    %v2482 = vand.u32 2147483647, %v213
    %vm2483 = vcmp.le.f32.partialorder %v2482, 0.7853982
    %vm2484 = vcmp.lt.s32.totalorder %v213, 0
    %v2485 = vand.u32 %v213, 2139095040
    %v2486 = vshrl.u32 %v2485, 23
    %v2487 = vsub.s32 %v2486, 127
    %v2488 = vand.u32 2147483647, %v213
    %v2489 = vand.u32 %v2488, 8388607
    %v2490 = vor.u32 %v2489, 8388608
    %v2491 = vsub.s32 0, %v2490
    %v2492 = vadd.s32 %v2487, 1
    %vm2493 = vcmp.gt.s32.totalorder %v2492, 0
    %v2494 = vsel %vm2493, %v2492, 0
    %v2495 = vshrl.u32 %v2494, 5
    %v2496 = vand.u32 %v2494, 31
    %v2497 = vsub.s32 32, %v2496
    %v2498 = vshrl.u32 683565275, %v2497
    %v2499 = vshll.u32 683565275, %v2496
    %v2500 = vshrl.u32 2475754826, %v2497
    %v2501 = vor.u32 %v2499, %v2500
    %v2502 = vshll.u32 2475754826, %v2496
    %v2503 = vshrl.u32 2131351028, %v2497
    %v2504 = vor.u32 %v2502, %v2503
    %v2505 = vshll.u32 2131351028, %v2496
    %v2506 = vshrl.u32 2102212464, %v2497
    %v2507 = vor.u32 %v2505, %v2506
    %v2508 = vshll.u32 2102212464, %v2496
    %v2509 = vshrl.u32 920167782, %v2497
    %v2510 = vor.u32 %v2508, %v2509
    %v2511 = vshll.u32 920167782, %v2496
    %v2512 = vshrl.u32 1326507024, %v2497
    %v2513 = vor.u32 %v2511, %v2512
    %vm2514 = vcmp.lt.s32.totalorder %v2495, 1
    %vm2515 = vcmp.lt.s32.totalorder %v2495, 2
    %vm2516 = vcmp.lt.s32.totalorder %v2495, 3
    %vm2517 = vcmp.lt.s32.totalorder %v2495, 4
    %v2518 = vsel %vm2514, %v2498, %v2501
    %v2519 = vsel %vm2517, %v2507, 2102212464
    %v2520 = vsel %vm2516, %v2504, %v2519
    %v2521 = vsel %vm2515, %v2518, %v2520
    %v2522 = vsel %vm2514, %v2501, %v2504
    %v2523 = vsel %vm2517, %v2510, 920167782
    %v2524 = vsel %vm2516, %v2507, %v2523
    %v2525 = vsel %vm2515, %v2522, %v2524
    %v2526 = vsel %vm2514, %v2504, %v2507
    %v2527 = vsel %vm2517, %v2513, 1326507024
    %v2528 = vsel %vm2516, %v2510, %v2527
    %v2529 = vsel %vm2515, %v2526, %v2528
    %v2530 = vshll.u32 %v2490, 8
    %v2531 = vmul.u32.u64.compose %v2530, %v2529
    %v2532 = vextract.low.u32 %v2531
    %v2533 = vextract.high.u32 %v2531
    %v2534 = vmul.u32.u64.compose %v2530, %v2525
    %v2535 = vextract.low.u32 %v2534
    %v2536 = vextract.high.u32 %v2534
    %v2537 = vmul.u32 %v2530, %v2521
    %v2538 = vadd.s32 %v2533, %v2535
    %vm2539 = vc.u32 %v2533, %v2535
    %v2540 = vadd.s32 %v2536, 1
    %v2541 = vsel %vm2539, %v2540, %v2536
    %v2542 = vadd.s32 %v2537, %v2541
    %v2543 = vadd.s32 %v2542, 536870912
    %v2544 = vshrl.u32 %v2543, 30
    %v2545 = vshll.u32 %v2544, 30
    %v2546 = vsub.s32 %v2542, %v2545
    %vm2547 = vcmp.lt.s32.totalorder %v2546, 0
    %v2548 = vsub.s32 0, %v2546
    %v2549 = vsel %vm2547, %v2548, %v2546
    %v2550 = vclz %v2549
    %v2551 = vsub.s32 %v2550, 2
    %vm2552 = vcmp.gt.s32.totalorder 0, %v2551
    %v2553 = vsel %vm2552, 0, %v2551
    %v2554 = vsub.s32 32, %v2553
    %v2555 = vshll.u32 %v2546, %v2553
    %v2556 = vshrl.u32 %v2538, %v2554
    %v2557 = vor.u32 %v2555, %v2556
    %v2558 = vsub.s32 4294967266, %v2553
    %v2559 = vadd.s32 %v2558, 127
    %v2560 = vshll.u32 %v2559, 23
    %v2561 = vor.u32 4788187, %v2560
    %v2562 = vand.u32 2147483647, %v2561
    %v2564 = vcvt.s32.f32 %v2557
    %v2565 = vmul.f32 %v2564, %v2562
    %v2566 = vxor.u32 %v2565, 2147483648
    %v2567 = vsel %vm2484, %v2566, %v2565
    %v2568 = vsub.s32 4, %v2544
    %v2569 = vsel %vm2484, %v2568, %v2544
    %v2570 = vsel %vm2483, %v213, %v2567
    %v2571 = vsel %vm2483, 0, %v2569
    %v2572 = vcosq.f32.pop %v2570
    %v2573 = vsinq.f32.pop %v2570
    %vm2574 = vweird.f32 %v213
    %v2575 = vand.u32 %v2571, 3
    %vm2576 = vcmp.lt.s32.totalorder %v2575, 2
    %vm2577 = vcmp.eq.s32.totalorder %v2575, 0
    %v2578 = vxor.u32 %v2573, 2147483648
    %v2579 = vsel %vm2577, %v2572, %v2578
    %vm2580 = vcmp.eq.s32.totalorder %v2575, 2
    %v2581 = vxor.u32 %v2572, 2147483648
    %v2582 = vsel %vm2580, %v2581, %v2573
    %v2583 = vsel %vm2576, %v2579, %v2582
    %v2584 = vsel %vm2574, nan, %v2583
    %v2585 = vand.u32 2147483647, %v214
    %vm2586 = vcmp.le.f32.partialorder %v2585, 0.7853982
    %vm2587 = vcmp.lt.s32.totalorder %v214, 0
    %v2588 = vand.u32 %v214, 2139095040
    %v2589 = vshrl.u32 %v2588, 23
    %v2590 = vsub.s32 %v2589, 127
    %v2591 = vand.u32 2147483647, %v214
    %v2592 = vand.u32 %v2591, 8388607
    %v2593 = vor.u32 %v2592, 8388608
    %v2594 = vsub.s32 0, %v2593
    %v2595 = vadd.s32 %v2590, 1
    %vm2596 = vcmp.gt.s32.totalorder %v2595, 0
    %v2597 = vsel %vm2596, %v2595, 0
    %v2598 = vshrl.u32 %v2597, 5
    %v2599 = vand.u32 %v2597, 31
    %v2600 = vsub.s32 32, %v2599
    %v2601 = vshrl.u32 683565275, %v2600
    %v2602 = vshll.u32 683565275, %v2599
    %v2603 = vshrl.u32 2475754826, %v2600
    %v2604 = vor.u32 %v2602, %v2603
    %v2605 = vshll.u32 2475754826, %v2599
    %v2606 = vshrl.u32 2131351028, %v2600
    %v2607 = vor.u32 %v2605, %v2606
    %v2608 = vshll.u32 2131351028, %v2599
    %v2609 = vshrl.u32 2102212464, %v2600
    %v2610 = vor.u32 %v2608, %v2609
    %v2611 = vshll.u32 2102212464, %v2599
    %v2612 = vshrl.u32 920167782, %v2600
    %v2613 = vor.u32 %v2611, %v2612
    %v2614 = vshll.u32 920167782, %v2599
    %v2615 = vshrl.u32 1326507024, %v2600
    %v2616 = vor.u32 %v2614, %v2615
    %vm2617 = vcmp.lt.s32.totalorder %v2598, 1
    %vm2618 = vcmp.lt.s32.totalorder %v2598, 2
    %vm2619 = vcmp.lt.s32.totalorder %v2598, 3
    %vm2620 = vcmp.lt.s32.totalorder %v2598, 4
    %v2621 = vsel %vm2617, %v2601, %v2604
    %v2622 = vsel %vm2620, %v2610, 2102212464
    %v2623 = vsel %vm2619, %v2607, %v2622
    %v2624 = vsel %vm2618, %v2621, %v2623
    %v2625 = vsel %vm2617, %v2604, %v2607
    %v2626 = vsel %vm2620, %v2613, 920167782
    %v2627 = vsel %vm2619, %v2610, %v2626
    %v2628 = vsel %vm2618, %v2625, %v2627
    %v2629 = vsel %vm2617, %v2607, %v2610
    %v2630 = vsel %vm2620, %v2616, 1326507024
    %v2631 = vsel %vm2619, %v2613, %v2630
    %v2632 = vsel %vm2618, %v2629, %v2631
    %v2633 = vshll.u32 %v2593, 8
    %v2634 = vmul.u32.u64.compose %v2633, %v2632
    %v2635 = vextract.low.u32 %v2634
    %v2636 = vextract.high.u32 %v2634
    %v2637 = vmul.u32.u64.compose %v2633, %v2628
    %v2638 = vextract.low.u32 %v2637
    %v2639 = vextract.high.u32 %v2637
    %v2640 = vmul.u32 %v2633, %v2624
    %v2641 = vadd.s32 %v2636, %v2638
    %vm2642 = vc.u32 %v2636, %v2638
    %v2643 = vadd.s32 %v2639, 1
    %v2644 = vsel %vm2642, %v2643, %v2639
    %v2645 = vadd.s32 %v2640, %v2644
    %v2646 = vadd.s32 %v2645, 536870912
    %v2647 = vshrl.u32 %v2646, 30
    %v2648 = vshll.u32 %v2647, 30
    %v2649 = vsub.s32 %v2645, %v2648
    %vm2650 = vcmp.lt.s32.totalorder %v2649, 0
    %v2651 = vsub.s32 0, %v2649
    %v2652 = vsel %vm2650, %v2651, %v2649
    %v2653 = vclz %v2652
    %v2654 = vsub.s32 %v2653, 2
    %vm2655 = vcmp.gt.s32.totalorder 0, %v2654
    %v2656 = vsel %vm2655, 0, %v2654
    %v2657 = vsub.s32 32, %v2656
    %v2658 = vshll.u32 %v2649, %v2656
    %v2659 = vshrl.u32 %v2641, %v2657
    %v2660 = vor.u32 %v2658, %v2659
    %v2661 = vsub.s32 4294967266, %v2656
    %v2662 = vadd.s32 %v2661, 127
    %v2663 = vshll.u32 %v2662, 23
    %v2664 = vor.u32 4788187, %v2663
    %v2665 = vand.u32 2147483647, %v2664
    %v2667 = vcvt.s32.f32 %v2660
    %v2668 = vmul.f32 %v2667, %v2665
    %v2669 = vxor.u32 %v2668, 2147483648
    %v2670 = vsel %vm2587, %v2669, %v2668
    %v2671 = vsub.s32 4, %v2647
    %v2672 = vsel %vm2587, %v2671, %v2647
    %v2673 = vsel %vm2586, %v214, %v2670
    %v2674 = vsel %vm2586, 0, %v2672
    %v2675 = vcosq.f32.pop %v2673
    %v2676 = vsinq.f32.pop %v2673
    %vm2677 = vweird.f32 %v214
    %v2678 = vand.u32 %v2674, 3
    %vm2679 = vcmp.lt.s32.totalorder %v2678, 2
    %vm2680 = vcmp.eq.s32.totalorder %v2678, 0
    %v2681 = vxor.u32 %v2676, 2147483648
    %v2682 = vsel %vm2680, %v2675, %v2681
    %vm2683 = vcmp.eq.s32.totalorder %v2678, 2
    %v2684 = vxor.u32 %v2675, 2147483648
    %v2685 = vsel %vm2683, %v2684, %v2676
    %v2686 = vsel %vm2679, %v2682, %v2685
    %v2687 = vsel %vm2677, nan, %v2686
    %v2688 = vand.u32 2147483647, %v215
    %vm2689 = vcmp.le.f32.partialorder %v2688, 0.7853982
    %vm2690 = vcmp.lt.s32.totalorder %v215, 0
    %v2691 = vand.u32 %v215, 2139095040
    %v2692 = vshrl.u32 %v2691, 23
    %v2693 = vsub.s32 %v2692, 127
    %v2694 = vand.u32 2147483647, %v215
    %v2695 = vand.u32 %v2694, 8388607
    %v2696 = vor.u32 %v2695, 8388608
    %v2697 = vsub.s32 0, %v2696
    %v2698 = vadd.s32 %v2693, 1
    %vm2699 = vcmp.gt.s32.totalorder %v2698, 0
    %v2700 = vsel %vm2699, %v2698, 0
    %v2701 = vshrl.u32 %v2700, 5
    %v2702 = vand.u32 %v2700, 31
    %v2703 = vsub.s32 32, %v2702
    %v2704 = vshrl.u32 683565275, %v2703
    %v2705 = vshll.u32 683565275, %v2702
    %v2706 = vshrl.u32 2475754826, %v2703
    %v2707 = vor.u32 %v2705, %v2706
    %v2708 = vshll.u32 2475754826, %v2702
    %v2709 = vshrl.u32 2131351028, %v2703
    %v2710 = vor.u32 %v2708, %v2709
    %v2711 = vshll.u32 2131351028, %v2702
    %v2712 = vshrl.u32 2102212464, %v2703
    %v2713 = vor.u32 %v2711, %v2712
    %v2714 = vshll.u32 2102212464, %v2702
    %v2715 = vshrl.u32 920167782, %v2703
    %v2716 = vor.u32 %v2714, %v2715
    %v2717 = vshll.u32 920167782, %v2702
    %v2718 = vshrl.u32 1326507024, %v2703
    %v2719 = vor.u32 %v2717, %v2718
    %vm2720 = vcmp.lt.s32.totalorder %v2701, 1
    %vm2721 = vcmp.lt.s32.totalorder %v2701, 2
    %vm2722 = vcmp.lt.s32.totalorder %v2701, 3
    %vm2723 = vcmp.lt.s32.totalorder %v2701, 4
    %v2724 = vsel %vm2720, %v2704, %v2707
    %v2725 = vsel %vm2723, %v2713, 2102212464
    %v2726 = vsel %vm2722, %v2710, %v2725
    %v2727 = vsel %vm2721, %v2724, %v2726
    %v2728 = vsel %vm2720, %v2707, %v2710
    %v2729 = vsel %vm2723, %v2716, 920167782
    %v2730 = vsel %vm2722, %v2713, %v2729
    %v2731 = vsel %vm2721, %v2728, %v2730
    %v2732 = vsel %vm2720, %v2710, %v2713
    %v2733 = vsel %vm2723, %v2719, 1326507024
    %v2734 = vsel %vm2722, %v2716, %v2733
    %v2735 = vsel %vm2721, %v2732, %v2734
    %v2736 = vshll.u32 %v2696, 8
    %v2737 = vmul.u32.u64.compose %v2736, %v2735
    %v2738 = vextract.low.u32 %v2737
    %v2739 = vextract.high.u32 %v2737
    %v2740 = vmul.u32.u64.compose %v2736, %v2731
    %v2741 = vextract.low.u32 %v2740
    %v2742 = vextract.high.u32 %v2740
    %v2743 = vmul.u32 %v2736, %v2727
    %v2744 = vadd.s32 %v2739, %v2741
    %vm2745 = vc.u32 %v2739, %v2741
    %v2746 = vadd.s32 %v2742, 1
    %v2747 = vsel %vm2745, %v2746, %v2742
    %v2748 = vadd.s32 %v2743, %v2747
    %v2749 = vadd.s32 %v2748, 536870912
    %v2750 = vshrl.u32 %v2749, 30
    %v2751 = vshll.u32 %v2750, 30
    %v2752 = vsub.s32 %v2748, %v2751
    %vm2753 = vcmp.lt.s32.totalorder %v2752, 0
    %v2754 = vsub.s32 0, %v2752
    %v2755 = vsel %vm2753, %v2754, %v2752
    %v2756 = vclz %v2755
    %v2757 = vsub.s32 %v2756, 2
    %vm2758 = vcmp.gt.s32.totalorder 0, %v2757
    %v2759 = vsel %vm2758, 0, %v2757
    %v2760 = vsub.s32 32, %v2759
    %v2761 = vshll.u32 %v2752, %v2759
    %v2762 = vshrl.u32 %v2744, %v2760
    %v2763 = vor.u32 %v2761, %v2762
    %v2764 = vsub.s32 4294967266, %v2759
    %v2765 = vadd.s32 %v2764, 127
    %v2766 = vshll.u32 %v2765, 23
    %v2767 = vor.u32 4788187, %v2766
    %v2768 = vand.u32 2147483647, %v2767
    %v2770 = vcvt.s32.f32 %v2763
    %v2771 = vmul.f32 %v2770, %v2768
    %v2772 = vxor.u32 %v2771, 2147483648
    %v2773 = vsel %vm2690, %v2772, %v2771
    %v2774 = vsub.s32 4, %v2750
    %v2775 = vsel %vm2690, %v2774, %v2750
    %v2776 = vsel %vm2689, %v215, %v2773
    %v2777 = vsel %vm2689, 0, %v2775
    %v2778 = vcosq.f32.pop %v2776
    %v2779 = vsinq.f32.pop %v2776
    %vm2780 = vweird.f32 %v215
    %v2781 = vand.u32 %v2777, 3
    %vm2782 = vcmp.lt.s32.totalorder %v2781, 2
    %vm2783 = vcmp.eq.s32.totalorder %v2781, 0
    %v2784 = vxor.u32 %v2779, 2147483648
    %v2785 = vsel %vm2783, %v2778, %v2784
    %vm2786 = vcmp.eq.s32.totalorder %v2781, 2
    %v2787 = vxor.u32 %v2778, 2147483648
    %v2788 = vsel %vm2786, %v2787, %v2779
    %v2789 = vsel %vm2782, %v2785, %v2788
    %v2790 = vsel %vm2780, nan, %v2789
    %2791 = vst [vmem:[#allocation2] sm:$0xff] %v318
    %2792 = vst [vmem:[#allocation2 + $0x10] sm:$0xff] %v421
    %2793 = vst [vmem:[#allocation2 + $0x20] sm:$0xff] %v524
    %2794 = vst [vmem:[#allocation2 + $0x30] sm:$0xff] %v627
    %2795 = vst [vmem:[#allocation2 + $0x40] sm:$0xff] %v730
    %2796 = vst [vmem:[#allocation2 + $0x50] sm:$0xff] %v833
    %2797 = vst [vmem:[#allocation2 + $0x60] sm:$0xff] %v936
    %2798 = vst [vmem:[#allocation2 + $0x70] sm:$0xff] %v1039
    %2799 = vst [vmem:[#allocation2 + $0x80] sm:$0xff] %v1142
    %2800 = vst [vmem:[#allocation2 + $0x90] sm:$0xff] %v1245
    %2801 = vst [vmem:[#allocation2 + $0xa0] sm:$0xff] %v1348
    %2802 = vst [vmem:[#allocation2 + $0xb0] sm:$0xff] %v1451
    %2803 = vst [vmem:[#allocation2 + $0xc0] sm:$0xff] %v1554
    %2804 = vst [vmem:[#allocation2 + $0xd0] sm:$0xff] %v1657
    %2805 = vst [vmem:[#allocation2 + $0xe0] sm:$0xff] %v1760
    %2806 = vst [vmem:[#allocation2 + $0xf0] sm:$0xff] %v1863
    %2807 = vst [vmem:[#allocation2 + $0x100] sm:$0xff] %v1966
    %2808 = vst [vmem:[#allocation2 + $0x110] sm:$0xff] %v2069
    %2809 = vst [vmem:[#allocation2 + $0x120] sm:$0xff] %v2172
    %2810 = vst [vmem:[#allocation2 + $0x130] sm:$0xff] %v2275
    %2811 = vst [vmem:[#allocation2 + $0x140] sm:$0xff] %v2378
    %2812 = vst [vmem:[#allocation2 + $0x150] sm:$0xff] %v2481
    %2813 = vst [vmem:[#allocation2 + $0x160] sm:$0xff] %v2584
    %2814 = vst [vmem:[#allocation2 + $0x170] sm:$0xff] %v2687
    %2815 = vst [vmem:[#allocation2 + $0x180] sm:$0xff] %v2790
    %v2816 = vand.u32 2147483647, %v191
    %vm2817 = vcmp.le.f32.partialorder %v2816, 0.7853982
    %vm2818 = vcmp.lt.s32.totalorder %v191, 0
    %v2819 = vand.u32 %v191, 2139095040
    %v2820 = vshrl.u32 %v2819, 23
    %v2821 = vsub.s32 %v2820, 127
    %v2822 = vand.u32 2147483647, %v191
    %v2823 = vand.u32 %v2822, 8388607
    %v2824 = vor.u32 %v2823, 8388608
    %v2825 = vsub.s32 0, %v2824
    %v2826 = vadd.s32 %v2821, 1
    %vm2827 = vcmp.gt.s32.totalorder %v2826, 0
    %v2828 = vsel %vm2827, %v2826, 0
    %v2829 = vshrl.u32 %v2828, 5
    %v2830 = vand.u32 %v2828, 31
    %v2831 = vsub.s32 32, %v2830
    %v2832 = vshrl.u32 683565275, %v2831
    %v2833 = vshll.u32 683565275, %v2830
    %v2834 = vshrl.u32 2475754826, %v2831
    %v2835 = vor.u32 %v2833, %v2834
    %v2836 = vshll.u32 2475754826, %v2830
    %v2837 = vshrl.u32 2131351028, %v2831
    %v2838 = vor.u32 %v2836, %v2837
    %v2839 = vshll.u32 2131351028, %v2830
    %v2840 = vshrl.u32 2102212464, %v2831
    %v2841 = vor.u32 %v2839, %v2840
    %v2842 = vshll.u32 2102212464, %v2830
    %v2843 = vshrl.u32 920167782, %v2831
    %v2844 = vor.u32 %v2842, %v2843
    %v2845 = vshll.u32 920167782, %v2830
    %v2846 = vshrl.u32 1326507024, %v2831
    %v2847 = vor.u32 %v2845, %v2846
    %vm2848 = vcmp.lt.s32.totalorder %v2829, 1
    %vm2849 = vcmp.lt.s32.totalorder %v2829, 2
    %vm2850 = vcmp.lt.s32.totalorder %v2829, 3
    %vm2851 = vcmp.lt.s32.totalorder %v2829, 4
    %v2852 = vsel %vm2848, %v2832, %v2835
    %v2853 = vsel %vm2851, %v2841, 2102212464
    %v2854 = vsel %vm2850, %v2838, %v2853
    %v2855 = vsel %vm2849, %v2852, %v2854
    %v2856 = vsel %vm2848, %v2835, %v2838
    %v2857 = vsel %vm2851, %v2844, 920167782
    %v2858 = vsel %vm2850, %v2841, %v2857
    %v2859 = vsel %vm2849, %v2856, %v2858
    %v2860 = vsel %vm2848, %v2838, %v2841
    %v2861 = vsel %vm2851, %v2847, 1326507024
    %v2862 = vsel %vm2850, %v2844, %v2861
    %v2863 = vsel %vm2849, %v2860, %v2862
    %v2864 = vshll.u32 %v2824, 8
    %v2865 = vmul.u32.u64.compose %v2864, %v2863
    %v2866 = vextract.low.u32 %v2865
    %v2867 = vextract.high.u32 %v2865
    %v2868 = vmul.u32.u64.compose %v2864, %v2859
    %v2869 = vextract.low.u32 %v2868
    %v2870 = vextract.high.u32 %v2868
    %v2871 = vmul.u32 %v2864, %v2855
    %v2872 = vadd.s32 %v2867, %v2869
    %vm2873 = vc.u32 %v2867, %v2869
    %v2874 = vadd.s32 %v2870, 1
    %v2875 = vsel %vm2873, %v2874, %v2870
    %v2876 = vadd.s32 %v2871, %v2875
    %v2877 = vadd.s32 %v2876, 536870912
    %v2878 = vshrl.u32 %v2877, 30
    %v2879 = vshll.u32 %v2878, 30
    %v2880 = vsub.s32 %v2876, %v2879
    %vm2881 = vcmp.lt.s32.totalorder %v2880, 0
    %v2882 = vsub.s32 0, %v2880
    %v2883 = vsel %vm2881, %v2882, %v2880
    %v2884 = vclz %v2883
    %v2885 = vsub.s32 %v2884, 2
    %vm2886 = vcmp.gt.s32.totalorder 0, %v2885
    %v2887 = vsel %vm2886, 0, %v2885
    %v2888 = vsub.s32 32, %v2887
    %v2889 = vshll.u32 %v2880, %v2887
    %v2890 = vshrl.u32 %v2872, %v2888
    %v2891 = vor.u32 %v2889, %v2890
    %v2892 = vsub.s32 4294967266, %v2887
    %v2893 = vadd.s32 %v2892, 127
    %v2894 = vshll.u32 %v2893, 23
    %v2895 = vor.u32 4788187, %v2894
    %v2896 = vand.u32 2147483647, %v2895
    %v2898 = vcvt.s32.f32 %v2891
    %v2899 = vmul.f32 %v2898, %v2896
    %v2900 = vxor.u32 %v2899, 2147483648
    %v2901 = vsel %vm2818, %v2900, %v2899
    %v2902 = vsub.s32 4, %v2878
    %v2903 = vsel %vm2818, %v2902, %v2878
    %v2904 = vsel %vm2817, %v191, %v2901
    %v2905 = vsel %vm2817, 0, %v2903
    %v2906 = vcosq.f32.pop %v2904
    %v2907 = vsinq.f32.pop %v2904
    %vm2908 = vweird.f32 %v191
    %v2909 = vadd.s32 %v2905, 3
    %v2910 = vand.u32 %v2909, 3
    %vm2911 = vcmp.lt.s32.totalorder %v2910, 2
    %vm2912 = vcmp.eq.s32.totalorder %v2910, 0
    %v2913 = vxor.u32 %v2907, 2147483648
    %v2914 = vsel %vm2912, %v2906, %v2913
    %vm2915 = vcmp.eq.s32.totalorder %v2910, 2
    %v2916 = vxor.u32 %v2906, 2147483648
    %v2917 = vsel %vm2915, %v2916, %v2907
    %v2918 = vsel %vm2911, %v2914, %v2917
    %v2919 = vsel %vm2908, nan, %v2918
    %v2920 = vand.u32 2147483647, %v192
    %vm2921 = vcmp.le.f32.partialorder %v2920, 0.7853982
    %vm2922 = vcmp.lt.s32.totalorder %v192, 0
    %v2923 = vand.u32 %v192, 2139095040
    %v2924 = vshrl.u32 %v2923, 23
    %v2925 = vsub.s32 %v2924, 127
    %v2926 = vand.u32 2147483647, %v192
    %v2927 = vand.u32 %v2926, 8388607
    %v2928 = vor.u32 %v2927, 8388608
    %v2929 = vsub.s32 0, %v2928
    %v2930 = vadd.s32 %v2925, 1
    %vm2931 = vcmp.gt.s32.totalorder %v2930, 0
    %v2932 = vsel %vm2931, %v2930, 0
    %v2933 = vshrl.u32 %v2932, 5
    %v2934 = vand.u32 %v2932, 31
    %v2935 = vsub.s32 32, %v2934
    %v2936 = vshrl.u32 683565275, %v2935
    %v2937 = vshll.u32 683565275, %v2934
    %v2938 = vshrl.u32 2475754826, %v2935
    %v2939 = vor.u32 %v2937, %v2938
    %v2940 = vshll.u32 2475754826, %v2934
    %v2941 = vshrl.u32 2131351028, %v2935
    %v2942 = vor.u32 %v2940, %v2941
    %v2943 = vshll.u32 2131351028, %v2934
    %v2944 = vshrl.u32 2102212464, %v2935
    %v2945 = vor.u32 %v2943, %v2944
    %v2946 = vshll.u32 2102212464, %v2934
    %v2947 = vshrl.u32 920167782, %v2935
    %v2948 = vor.u32 %v2946, %v2947
    %v2949 = vshll.u32 920167782, %v2934
    %v2950 = vshrl.u32 1326507024, %v2935
    %v2951 = vor.u32 %v2949, %v2950
    %vm2952 = vcmp.lt.s32.totalorder %v2933, 1
    %vm2953 = vcmp.lt.s32.totalorder %v2933, 2
    %vm2954 = vcmp.lt.s32.totalorder %v2933, 3
    %vm2955 = vcmp.lt.s32.totalorder %v2933, 4
    %v2956 = vsel %vm2952, %v2936, %v2939
    %v2957 = vsel %vm2955, %v2945, 2102212464
    %v2958 = vsel %vm2954, %v2942, %v2957
    %v2959 = vsel %vm2953, %v2956, %v2958
    %v2960 = vsel %vm2952, %v2939, %v2942
    %v2961 = vsel %vm2955, %v2948, 920167782
    %v2962 = vsel %vm2954, %v2945, %v2961
    %v2963 = vsel %vm2953, %v2960, %v2962
    %v2964 = vsel %vm2952, %v2942, %v2945
    %v2965 = vsel %vm2955, %v2951, 1326507024
    %v2966 = vsel %vm2954, %v2948, %v2965
    %v2967 = vsel %vm2953, %v2964, %v2966
    %v2968 = vshll.u32 %v2928, 8
    %v2969 = vmul.u32.u64.compose %v2968, %v2967
    %v2970 = vextract.low.u32 %v2969
    %v2971 = vextract.high.u32 %v2969
    %v2972 = vmul.u32.u64.compose %v2968, %v2963
    %v2973 = vextract.low.u32 %v2972
    %v2974 = vextract.high.u32 %v2972
    %v2975 = vmul.u32 %v2968, %v2959
    %v2976 = vadd.s32 %v2971, %v2973
    %vm2977 = vc.u32 %v2971, %v2973
    %v2978 = vadd.s32 %v2974, 1
    %v2979 = vsel %vm2977, %v2978, %v2974
    %v2980 = vadd.s32 %v2975, %v2979
    %v2981 = vadd.s32 %v2980, 536870912
    %v2982 = vshrl.u32 %v2981, 30
    %v2983 = vshll.u32 %v2982, 30
    %v2984 = vsub.s32 %v2980, %v2983
    %vm2985 = vcmp.lt.s32.totalorder %v2984, 0
    %v2986 = vsub.s32 0, %v2984
    %v2987 = vsel %vm2985, %v2986, %v2984
    %v2988 = vclz %v2987
    %v2989 = vsub.s32 %v2988, 2
    %vm2990 = vcmp.gt.s32.totalorder 0, %v2989
    %v2991 = vsel %vm2990, 0, %v2989
    %v2992 = vsub.s32 32, %v2991
    %v2993 = vshll.u32 %v2984, %v2991
    %v2994 = vshrl.u32 %v2976, %v2992
    %v2995 = vor.u32 %v2993, %v2994
    %v2996 = vsub.s32 4294967266, %v2991
    %v2997 = vadd.s32 %v2996, 127
    %v2998 = vshll.u32 %v2997, 23
    %v2999 = vor.u32 4788187, %v2998
    %v3000 = vand.u32 2147483647, %v2999
    %v3002 = vcvt.s32.f32 %v2995
    %v3003 = vmul.f32 %v3002, %v3000
    %v3004 = vxor.u32 %v3003, 2147483648
    %v3005 = vsel %vm2922, %v3004, %v3003
    %v3006 = vsub.s32 4, %v2982
    %v3007 = vsel %vm2922, %v3006, %v2982
    %v3008 = vsel %vm2921, %v192, %v3005
    %v3009 = vsel %vm2921, 0, %v3007
    %v3010 = vcosq.f32.pop %v3008
    %v3011 = vsinq.f32.pop %v3008
    %vm3012 = vweird.f32 %v192
    %v3013 = vadd.s32 %v3009, 3
    %v3014 = vand.u32 %v3013, 3
    %vm3015 = vcmp.lt.s32.totalorder %v3014, 2
    %vm3016 = vcmp.eq.s32.totalorder %v3014, 0
    %v3017 = vxor.u32 %v3011, 2147483648
    %v3018 = vsel %vm3016, %v3010, %v3017
    %vm3019 = vcmp.eq.s32.totalorder %v3014, 2
    %v3020 = vxor.u32 %v3010, 2147483648
    %v3021 = vsel %vm3019, %v3020, %v3011
    %v3022 = vsel %vm3015, %v3018, %v3021
    %v3023 = vsel %vm3012, nan, %v3022
    %v3024 = vand.u32 2147483647, %v193
    %vm3025 = vcmp.le.f32.partialorder %v3024, 0.7853982
    %vm3026 = vcmp.lt.s32.totalorder %v193, 0
    %v3027 = vand.u32 %v193, 2139095040
    %v3028 = vshrl.u32 %v3027, 23
    %v3029 = vsub.s32 %v3028, 127
    %v3030 = vand.u32 2147483647, %v193
    %v3031 = vand.u32 %v3030, 8388607
    %v3032 = vor.u32 %v3031, 8388608
    %v3033 = vsub.s32 0, %v3032
    %v3034 = vadd.s32 %v3029, 1
    %vm3035 = vcmp.gt.s32.totalorder %v3034, 0
    %v3036 = vsel %vm3035, %v3034, 0
    %v3037 = vshrl.u32 %v3036, 5
    %v3038 = vand.u32 %v3036, 31
    %v3039 = vsub.s32 32, %v3038
    %v3040 = vshrl.u32 683565275, %v3039
    %v3041 = vshll.u32 683565275, %v3038
    %v3042 = vshrl.u32 2475754826, %v3039
    %v3043 = vor.u32 %v3041, %v3042
    %v3044 = vshll.u32 2475754826, %v3038
    %v3045 = vshrl.u32 2131351028, %v3039
    %v3046 = vor.u32 %v3044, %v3045
    %v3047 = vshll.u32 2131351028, %v3038
    %v3048 = vshrl.u32 2102212464, %v3039
    %v3049 = vor.u32 %v3047, %v3048
    %v3050 = vshll.u32 2102212464, %v3038
    %v3051 = vshrl.u32 920167782, %v3039
    %v3052 = vor.u32 %v3050, %v3051
    %v3053 = vshll.u32 920167782, %v3038
    %v3054 = vshrl.u32 1326507024, %v3039
    %v3055 = vor.u32 %v3053, %v3054
    %vm3056 = vcmp.lt.s32.totalorder %v3037, 1
    %vm3057 = vcmp.lt.s32.totalorder %v3037, 2
    %vm3058 = vcmp.lt.s32.totalorder %v3037, 3
    %vm3059 = vcmp.lt.s32.totalorder %v3037, 4
    %v3060 = vsel %vm3056, %v3040, %v3043
    %v3061 = vsel %vm3059, %v3049, 2102212464
    %v3062 = vsel %vm3058, %v3046, %v3061
    %v3063 = vsel %vm3057, %v3060, %v3062
    %v3064 = vsel %vm3056, %v3043, %v3046
    %v3065 = vsel %vm3059, %v3052, 920167782
    %v3066 = vsel %vm3058, %v3049, %v3065
    %v3067 = vsel %vm3057, %v3064, %v3066
    %v3068 = vsel %vm3056, %v3046, %v3049
    %v3069 = vsel %vm3059, %v3055, 1326507024
    %v3070 = vsel %vm3058, %v3052, %v3069
    %v3071 = vsel %vm3057, %v3068, %v3070
    %v3072 = vshll.u32 %v3032, 8
    %v3073 = vmul.u32.u64.compose %v3072, %v3071
    %v3074 = vextract.low.u32 %v3073
    %v3075 = vextract.high.u32 %v3073
    %v3076 = vmul.u32.u64.compose %v3072, %v3067
    %v3077 = vextract.low.u32 %v3076
    %v3078 = vextract.high.u32 %v3076
    %v3079 = vmul.u32 %v3072, %v3063
    %v3080 = vadd.s32 %v3075, %v3077
    %vm3081 = vc.u32 %v3075, %v3077
    %v3082 = vadd.s32 %v3078, 1
    %v3083 = vsel %vm3081, %v3082, %v3078
    %v3084 = vadd.s32 %v3079, %v3083
    %v3085 = vadd.s32 %v3084, 536870912
    %v3086 = vshrl.u32 %v3085, 30
    %v3087 = vshll.u32 %v3086, 30
    %v3088 = vsub.s32 %v3084, %v3087
    %vm3089 = vcmp.lt.s32.totalorder %v3088, 0
    %v3090 = vsub.s32 0, %v3088
    %v3091 = vsel %vm3089, %v3090, %v3088
    %v3092 = vclz %v3091
    %v3093 = vsub.s32 %v3092, 2
    %vm3094 = vcmp.gt.s32.totalorder 0, %v3093
    %v3095 = vsel %vm3094, 0, %v3093
    %v3096 = vsub.s32 32, %v3095
    %v3097 = vshll.u32 %v3088, %v3095
    %v3098 = vshrl.u32 %v3080, %v3096
    %v3099 = vor.u32 %v3097, %v3098
    %v3100 = vsub.s32 4294967266, %v3095
    %v3101 = vadd.s32 %v3100, 127
    %v3102 = vshll.u32 %v3101, 23
    %v3103 = vor.u32 4788187, %v3102
    %v3104 = vand.u32 2147483647, %v3103
    %v3106 = vcvt.s32.f32 %v3099
    %v3107 = vmul.f32 %v3106, %v3104
    %v3108 = vxor.u32 %v3107, 2147483648
    %v3109 = vsel %vm3026, %v3108, %v3107
    %v3110 = vsub.s32 4, %v3086
    %v3111 = vsel %vm3026, %v3110, %v3086
    %v3112 = vsel %vm3025, %v193, %v3109
    %v3113 = vsel %vm3025, 0, %v3111
    %v3114 = vcosq.f32.pop %v3112
    %v3115 = vsinq.f32.pop %v3112
    %vm3116 = vweird.f32 %v193
    %v3117 = vadd.s32 %v3113, 3
    %v3118 = vand.u32 %v3117, 3
    %vm3119 = vcmp.lt.s32.totalorder %v3118, 2
    %vm3120 = vcmp.eq.s32.totalorder %v3118, 0
    %v3121 = vxor.u32 %v3115, 2147483648
    %v3122 = vsel %vm3120, %v3114, %v3121
    %vm3123 = vcmp.eq.s32.totalorder %v3118, 2
    %v3124 = vxor.u32 %v3114, 2147483648
    %v3125 = vsel %vm3123, %v3124, %v3115
    %v3126 = vsel %vm3119, %v3122, %v3125
    %v3127 = vsel %vm3116, nan, %v3126
    %v3128 = vand.u32 2147483647, %v194
    %vm3129 = vcmp.le.f32.partialorder %v3128, 0.7853982
    %vm3130 = vcmp.lt.s32.totalorder %v194, 0
    %v3131 = vand.u32 %v194, 2139095040
    %v3132 = vshrl.u32 %v3131, 23
    %v3133 = vsub.s32 %v3132, 127
    %v3134 = vand.u32 2147483647, %v194
    %v3135 = vand.u32 %v3134, 8388607
    %v3136 = vor.u32 %v3135, 8388608
    %v3137 = vsub.s32 0, %v3136
    %v3138 = vadd.s32 %v3133, 1
    %vm3139 = vcmp.gt.s32.totalorder %v3138, 0
    %v3140 = vsel %vm3139, %v3138, 0
    %v3141 = vshrl.u32 %v3140, 5
    %v3142 = vand.u32 %v3140, 31
    %v3143 = vsub.s32 32, %v3142
    %v3144 = vshrl.u32 683565275, %v3143
    %v3145 = vshll.u32 683565275, %v3142
    %v3146 = vshrl.u32 2475754826, %v3143
    %v3147 = vor.u32 %v3145, %v3146
    %v3148 = vshll.u32 2475754826, %v3142
    %v3149 = vshrl.u32 2131351028, %v3143
    %v3150 = vor.u32 %v3148, %v3149
    %v3151 = vshll.u32 2131351028, %v3142
    %v3152 = vshrl.u32 2102212464, %v3143
    %v3153 = vor.u32 %v3151, %v3152
    %v3154 = vshll.u32 2102212464, %v3142
    %v3155 = vshrl.u32 920167782, %v3143
    %v3156 = vor.u32 %v3154, %v3155
    %v3157 = vshll.u32 920167782, %v3142
    %v3158 = vshrl.u32 1326507024, %v3143
    %v3159 = vor.u32 %v3157, %v3158
    %vm3160 = vcmp.lt.s32.totalorder %v3141, 1
    %vm3161 = vcmp.lt.s32.totalorder %v3141, 2
    %vm3162 = vcmp.lt.s32.totalorder %v3141, 3
    %vm3163 = vcmp.lt.s32.totalorder %v3141, 4
    %v3164 = vsel %vm3160, %v3144, %v3147
    %v3165 = vsel %vm3163, %v3153, 2102212464
    %v3166 = vsel %vm3162, %v3150, %v3165
    %v3167 = vsel %vm3161, %v3164, %v3166
    %v3168 = vsel %vm3160, %v3147, %v3150
    %v3169 = vsel %vm3163, %v3156, 920167782
    %v3170 = vsel %vm3162, %v3153, %v3169
    %v3171 = vsel %vm3161, %v3168, %v3170
    %v3172 = vsel %vm3160, %v3150, %v3153
    %v3173 = vsel %vm3163, %v3159, 1326507024
    %v3174 = vsel %vm3162, %v3156, %v3173
    %v3175 = vsel %vm3161, %v3172, %v3174
    %v3176 = vshll.u32 %v3136, 8
    %v3177 = vmul.u32.u64.compose %v3176, %v3175
    %v3178 = vextract.low.u32 %v3177
    %v3179 = vextract.high.u32 %v3177
    %v3180 = vmul.u32.u64.compose %v3176, %v3171
    %v3181 = vextract.low.u32 %v3180
    %v3182 = vextract.high.u32 %v3180
    %v3183 = vmul.u32 %v3176, %v3167
    %v3184 = vadd.s32 %v3179, %v3181
    %vm3185 = vc.u32 %v3179, %v3181
    %v3186 = vadd.s32 %v3182, 1
    %v3187 = vsel %vm3185, %v3186, %v3182
    %v3188 = vadd.s32 %v3183, %v3187
    %v3189 = vadd.s32 %v3188, 536870912
    %v3190 = vshrl.u32 %v3189, 30
    %v3191 = vshll.u32 %v3190, 30
    %v3192 = vsub.s32 %v3188, %v3191
    %vm3193 = vcmp.lt.s32.totalorder %v3192, 0
    %v3194 = vsub.s32 0, %v3192
    %v3195 = vsel %vm3193, %v3194, %v3192
    %v3196 = vclz %v3195
    %v3197 = vsub.s32 %v3196, 2
    %vm3198 = vcmp.gt.s32.totalorder 0, %v3197
    %v3199 = vsel %vm3198, 0, %v3197
    %v3200 = vsub.s32 32, %v3199
    %v3201 = vshll.u32 %v3192, %v3199
    %v3202 = vshrl.u32 %v3184, %v3200
    %v3203 = vor.u32 %v3201, %v3202
    %v3204 = vsub.s32 4294967266, %v3199
    %v3205 = vadd.s32 %v3204, 127
    %v3206 = vshll.u32 %v3205, 23
    %v3207 = vor.u32 4788187, %v3206
    %v3208 = vand.u32 2147483647, %v3207
    %v3210 = vcvt.s32.f32 %v3203
    %v3211 = vmul.f32 %v3210, %v3208
    %v3212 = vxor.u32 %v3211, 2147483648
    %v3213 = vsel %vm3130, %v3212, %v3211
    %v3214 = vsub.s32 4, %v3190
    %v3215 = vsel %vm3130, %v3214, %v3190
    %v3216 = vsel %vm3129, %v194, %v3213
    %v3217 = vsel %vm3129, 0, %v3215
    %v3218 = vcosq.f32.pop %v3216
    %v3219 = vsinq.f32.pop %v3216
    %vm3220 = vweird.f32 %v194
    %v3221 = vadd.s32 %v3217, 3
    %v3222 = vand.u32 %v3221, 3
    %vm3223 = vcmp.lt.s32.totalorder %v3222, 2
    %vm3224 = vcmp.eq.s32.totalorder %v3222, 0
    %v3225 = vxor.u32 %v3219, 2147483648
    %v3226 = vsel %vm3224, %v3218, %v3225
    %vm3227 = vcmp.eq.s32.totalorder %v3222, 2
    %v3228 = vxor.u32 %v3218, 2147483648
    %v3229 = vsel %vm3227, %v3228, %v3219
    %v3230 = vsel %vm3223, %v3226, %v3229
    %v3231 = vsel %vm3220, nan, %v3230
    %v3232 = vand.u32 2147483647, %v195
    %vm3233 = vcmp.le.f32.partialorder %v3232, 0.7853982
    %vm3234 = vcmp.lt.s32.totalorder %v195, 0
    %v3235 = vand.u32 %v195, 2139095040
    %v3236 = vshrl.u32 %v3235, 23
    %v3237 = vsub.s32 %v3236, 127
    %v3238 = vand.u32 2147483647, %v195
    %v3239 = vand.u32 %v3238, 8388607
    %v3240 = vor.u32 %v3239, 8388608
    %v3241 = vsub.s32 0, %v3240
    %v3242 = vadd.s32 %v3237, 1
    %vm3243 = vcmp.gt.s32.totalorder %v3242, 0
    %v3244 = vsel %vm3243, %v3242, 0
    %v3245 = vshrl.u32 %v3244, 5
    %v3246 = vand.u32 %v3244, 31
    %v3247 = vsub.s32 32, %v3246
    %v3248 = vshrl.u32 683565275, %v3247
    %v3249 = vshll.u32 683565275, %v3246
    %v3250 = vshrl.u32 2475754826, %v3247
    %v3251 = vor.u32 %v3249, %v3250
    %v3252 = vshll.u32 2475754826, %v3246
    %v3253 = vshrl.u32 2131351028, %v3247
    %v3254 = vor.u32 %v3252, %v3253
    %v3255 = vshll.u32 2131351028, %v3246
    %v3256 = vshrl.u32 2102212464, %v3247
    %v3257 = vor.u32 %v3255, %v3256
    %v3258 = vshll.u32 2102212464, %v3246
    %v3259 = vshrl.u32 920167782, %v3247
    %v3260 = vor.u32 %v3258, %v3259
    %v3261 = vshll.u32 920167782, %v3246
    %v3262 = vshrl.u32 1326507024, %v3247
    %v3263 = vor.u32 %v3261, %v3262
    %vm3264 = vcmp.lt.s32.totalorder %v3245, 1
    %vm3265 = vcmp.lt.s32.totalorder %v3245, 2
    %vm3266 = vcmp.lt.s32.totalorder %v3245, 3
    %vm3267 = vcmp.lt.s32.totalorder %v3245, 4
    %v3268 = vsel %vm3264, %v3248, %v3251
    %v3269 = vsel %vm3267, %v3257, 2102212464
    %v3270 = vsel %vm3266, %v3254, %v3269
    %v3271 = vsel %vm3265, %v3268, %v3270
    %v3272 = vsel %vm3264, %v3251, %v3254
    %v3273 = vsel %vm3267, %v3260, 920167782
    %v3274 = vsel %vm3266, %v3257, %v3273
    %v3275 = vsel %vm3265, %v3272, %v3274
    %v3276 = vsel %vm3264, %v3254, %v3257
    %v3277 = vsel %vm3267, %v3263, 1326507024
    %v3278 = vsel %vm3266, %v3260, %v3277
    %v3279 = vsel %vm3265, %v3276, %v3278
    %v3280 = vshll.u32 %v3240, 8
    %v3281 = vmul.u32.u64.compose %v3280, %v3279
    %v3282 = vextract.low.u32 %v3281
    %v3283 = vextract.high.u32 %v3281
    %v3284 = vmul.u32.u64.compose %v3280, %v3275
    %v3285 = vextract.low.u32 %v3284
    %v3286 = vextract.high.u32 %v3284
    %v3287 = vmul.u32 %v3280, %v3271
    %v3288 = vadd.s32 %v3283, %v3285
    %vm3289 = vc.u32 %v3283, %v3285
    %v3290 = vadd.s32 %v3286, 1
    %v3291 = vsel %vm3289, %v3290, %v3286
    %v3292 = vadd.s32 %v3287, %v3291
    %v3293 = vadd.s32 %v3292, 536870912
    %v3294 = vshrl.u32 %v3293, 30
    %v3295 = vshll.u32 %v3294, 30
    %v3296 = vsub.s32 %v3292, %v3295
    %vm3297 = vcmp.lt.s32.totalorder %v3296, 0
    %v3298 = vsub.s32 0, %v3296
    %v3299 = vsel %vm3297, %v3298, %v3296
    %v3300 = vclz %v3299
    %v3301 = vsub.s32 %v3300, 2
    %vm3302 = vcmp.gt.s32.totalorder 0, %v3301
    %v3303 = vsel %vm3302, 0, %v3301
    %v3304 = vsub.s32 32, %v3303
    %v3305 = vshll.u32 %v3296, %v3303
    %v3306 = vshrl.u32 %v3288, %v3304
    %v3307 = vor.u32 %v3305, %v3306
    %v3308 = vsub.s32 4294967266, %v3303
    %v3309 = vadd.s32 %v3308, 127
    %v3310 = vshll.u32 %v3309, 23
    %v3311 = vor.u32 4788187, %v3310
    %v3312 = vand.u32 2147483647, %v3311
    %v3314 = vcvt.s32.f32 %v3307
    %v3315 = vmul.f32 %v3314, %v3312
    %v3316 = vxor.u32 %v3315, 2147483648
    %v3317 = vsel %vm3234, %v3316, %v3315
    %v3318 = vsub.s32 4, %v3294
    %v3319 = vsel %vm3234, %v3318, %v3294
    %v3320 = vsel %vm3233, %v195, %v3317
    %v3321 = vsel %vm3233, 0, %v3319
    %v3322 = vcosq.f32.pop %v3320
    %v3323 = vsinq.f32.pop %v3320
    %vm3324 = vweird.f32 %v195
    %v3325 = vadd.s32 %v3321, 3
    %v3326 = vand.u32 %v3325, 3
    %vm3327 = vcmp.lt.s32.totalorder %v3326, 2
    %vm3328 = vcmp.eq.s32.totalorder %v3326, 0
    %v3329 = vxor.u32 %v3323, 2147483648
    %v3330 = vsel %vm3328, %v3322, %v3329
    %vm3331 = vcmp.eq.s32.totalorder %v3326, 2
    %v3332 = vxor.u32 %v3322, 2147483648
    %v3333 = vsel %vm3331, %v3332, %v3323
    %v3334 = vsel %vm3327, %v3330, %v3333
    %v3335 = vsel %vm3324, nan, %v3334
    %v3336 = vand.u32 2147483647, %v196
    %vm3337 = vcmp.le.f32.partialorder %v3336, 0.7853982
    %vm3338 = vcmp.lt.s32.totalorder %v196, 0
    %v3339 = vand.u32 %v196, 2139095040
    %v3340 = vshrl.u32 %v3339, 23
    %v3341 = vsub.s32 %v3340, 127
    %v3342 = vand.u32 2147483647, %v196
    %v3343 = vand.u32 %v3342, 8388607
    %v3344 = vor.u32 %v3343, 8388608
    %v3345 = vsub.s32 0, %v3344
    %v3346 = vadd.s32 %v3341, 1
    %vm3347 = vcmp.gt.s32.totalorder %v3346, 0
    %v3348 = vsel %vm3347, %v3346, 0
    %v3349 = vshrl.u32 %v3348, 5
    %v3350 = vand.u32 %v3348, 31
    %v3351 = vsub.s32 32, %v3350
    %v3352 = vshrl.u32 683565275, %v3351
    %v3353 = vshll.u32 683565275, %v3350
    %v3354 = vshrl.u32 2475754826, %v3351
    %v3355 = vor.u32 %v3353, %v3354
    %v3356 = vshll.u32 2475754826, %v3350
    %v3357 = vshrl.u32 2131351028, %v3351
    %v3358 = vor.u32 %v3356, %v3357
    %v3359 = vshll.u32 2131351028, %v3350
    %v3360 = vshrl.u32 2102212464, %v3351
    %v3361 = vor.u32 %v3359, %v3360
    %v3362 = vshll.u32 2102212464, %v3350
    %v3363 = vshrl.u32 920167782, %v3351
    %v3364 = vor.u32 %v3362, %v3363
    %v3365 = vshll.u32 920167782, %v3350
    %v3366 = vshrl.u32 1326507024, %v3351
    %v3367 = vor.u32 %v3365, %v3366
    %vm3368 = vcmp.lt.s32.totalorder %v3349, 1
    %vm3369 = vcmp.lt.s32.totalorder %v3349, 2
    %vm3370 = vcmp.lt.s32.totalorder %v3349, 3
    %vm3371 = vcmp.lt.s32.totalorder %v3349, 4
    %v3372 = vsel %vm3368, %v3352, %v3355
    %v3373 = vsel %vm3371, %v3361, 2102212464
    %v3374 = vsel %vm3370, %v3358, %v3373
    %v3375 = vsel %vm3369, %v3372, %v3374
    %v3376 = vsel %vm3368, %v3355, %v3358
    %v3377 = vsel %vm3371, %v3364, 920167782
    %v3378 = vsel %vm3370, %v3361, %v3377
    %v3379 = vsel %vm3369, %v3376, %v3378
    %v3380 = vsel %vm3368, %v3358, %v3361
    %v3381 = vsel %vm3371, %v3367, 1326507024
    %v3382 = vsel %vm3370, %v3364, %v3381
    %v3383 = vsel %vm3369, %v3380, %v3382
    %v3384 = vshll.u32 %v3344, 8
    %v3385 = vmul.u32.u64.compose %v3384, %v3383
    %v3386 = vextract.low.u32 %v3385
    %v3387 = vextract.high.u32 %v3385
    %v3388 = vmul.u32.u64.compose %v3384, %v3379
    %v3389 = vextract.low.u32 %v3388
    %v3390 = vextract.high.u32 %v3388
    %v3391 = vmul.u32 %v3384, %v3375
    %v3392 = vadd.s32 %v3387, %v3389
    %vm3393 = vc.u32 %v3387, %v3389
    %v3394 = vadd.s32 %v3390, 1
    %v3395 = vsel %vm3393, %v3394, %v3390
    %v3396 = vadd.s32 %v3391, %v3395
    %v3397 = vadd.s32 %v3396, 536870912
    %v3398 = vshrl.u32 %v3397, 30
    %v3399 = vshll.u32 %v3398, 30
    %v3400 = vsub.s32 %v3396, %v3399
    %vm3401 = vcmp.lt.s32.totalorder %v3400, 0
    %v3402 = vsub.s32 0, %v3400
    %v3403 = vsel %vm3401, %v3402, %v3400
    %v3404 = vclz %v3403
    %v3405 = vsub.s32 %v3404, 2
    %vm3406 = vcmp.gt.s32.totalorder 0, %v3405
    %v3407 = vsel %vm3406, 0, %v3405
    %v3408 = vsub.s32 32, %v3407
    %v3409 = vshll.u32 %v3400, %v3407
    %v3410 = vshrl.u32 %v3392, %v3408
    %v3411 = vor.u32 %v3409, %v3410
    %v3412 = vsub.s32 4294967266, %v3407
    %v3413 = vadd.s32 %v3412, 127
    %v3414 = vshll.u32 %v3413, 23
    %v3415 = vor.u32 4788187, %v3414
    %v3416 = vand.u32 2147483647, %v3415
    %v3418 = vcvt.s32.f32 %v3411
    %v3419 = vmul.f32 %v3418, %v3416
    %v3420 = vxor.u32 %v3419, 2147483648
    %v3421 = vsel %vm3338, %v3420, %v3419
    %v3422 = vsub.s32 4, %v3398
    %v3423 = vsel %vm3338, %v3422, %v3398
    %v3424 = vsel %vm3337, %v196, %v3421
    %v3425 = vsel %vm3337, 0, %v3423
    %v3426 = vcosq.f32.pop %v3424
    %v3427 = vsinq.f32.pop %v3424
    %vm3428 = vweird.f32 %v196
    %v3429 = vadd.s32 %v3425, 3
    %v3430 = vand.u32 %v3429, 3
    %vm3431 = vcmp.lt.s32.totalorder %v3430, 2
    %vm3432 = vcmp.eq.s32.totalorder %v3430, 0
    %v3433 = vxor.u32 %v3427, 2147483648
    %v3434 = vsel %vm3432, %v3426, %v3433
    %vm3435 = vcmp.eq.s32.totalorder %v3430, 2
    %v3436 = vxor.u32 %v3426, 2147483648
    %v3437 = vsel %vm3435, %v3436, %v3427
    %v3438 = vsel %vm3431, %v3434, %v3437
    %v3439 = vsel %vm3428, nan, %v3438
    %v3440 = vand.u32 2147483647, %v197
    %vm3441 = vcmp.le.f32.partialorder %v3440, 0.7853982
    %vm3442 = vcmp.lt.s32.totalorder %v197, 0
    %v3443 = vand.u32 %v197, 2139095040
    %v3444 = vshrl.u32 %v3443, 23
    %v3445 = vsub.s32 %v3444, 127
    %v3446 = vand.u32 2147483647, %v197
    %v3447 = vand.u32 %v3446, 8388607
    %v3448 = vor.u32 %v3447, 8388608
    %v3449 = vsub.s32 0, %v3448
    %v3450 = vadd.s32 %v3445, 1
    %vm3451 = vcmp.gt.s32.totalorder %v3450, 0
    %v3452 = vsel %vm3451, %v3450, 0
    %v3453 = vshrl.u32 %v3452, 5
    %v3454 = vand.u32 %v3452, 31
    %v3455 = vsub.s32 32, %v3454
    %v3456 = vshrl.u32 683565275, %v3455
    %v3457 = vshll.u32 683565275, %v3454
    %v3458 = vshrl.u32 2475754826, %v3455
    %v3459 = vor.u32 %v3457, %v3458
    %v3460 = vshll.u32 2475754826, %v3454
    %v3461 = vshrl.u32 2131351028, %v3455
    %v3462 = vor.u32 %v3460, %v3461
    %v3463 = vshll.u32 2131351028, %v3454
    %v3464 = vshrl.u32 2102212464, %v3455
    %v3465 = vor.u32 %v3463, %v3464
    %v3466 = vshll.u32 2102212464, %v3454
    %v3467 = vshrl.u32 920167782, %v3455
    %v3468 = vor.u32 %v3466, %v3467
    %v3469 = vshll.u32 920167782, %v3454
    %v3470 = vshrl.u32 1326507024, %v3455
    %v3471 = vor.u32 %v3469, %v3470
    %vm3472 = vcmp.lt.s32.totalorder %v3453, 1
    %vm3473 = vcmp.lt.s32.totalorder %v3453, 2
    %vm3474 = vcmp.lt.s32.totalorder %v3453, 3
    %vm3475 = vcmp.lt.s32.totalorder %v3453, 4
    %v3476 = vsel %vm3472, %v3456, %v3459
    %v3477 = vsel %vm3475, %v3465, 2102212464
    %v3478 = vsel %vm3474, %v3462, %v3477
    %v3479 = vsel %vm3473, %v3476, %v3478
    %v3480 = vsel %vm3472, %v3459, %v3462
    %v3481 = vsel %vm3475, %v3468, 920167782
    %v3482 = vsel %vm3474, %v3465, %v3481
    %v3483 = vsel %vm3473, %v3480, %v3482
    %v3484 = vsel %vm3472, %v3462, %v3465
    %v3485 = vsel %vm3475, %v3471, 1326507024
    %v3486 = vsel %vm3474, %v3468, %v3485
    %v3487 = vsel %vm3473, %v3484, %v3486
    %v3488 = vshll.u32 %v3448, 8
    %v3489 = vmul.u32.u64.compose %v3488, %v3487
    %v3490 = vextract.low.u32 %v3489
    %v3491 = vextract.high.u32 %v3489
    %v3492 = vmul.u32.u64.compose %v3488, %v3483
    %v3493 = vextract.low.u32 %v3492
    %v3494 = vextract.high.u32 %v3492
    %v3495 = vmul.u32 %v3488, %v3479
    %v3496 = vadd.s32 %v3491, %v3493
    %vm3497 = vc.u32 %v3491, %v3493
    %v3498 = vadd.s32 %v3494, 1
    %v3499 = vsel %vm3497, %v3498, %v3494
    %v3500 = vadd.s32 %v3495, %v3499
    %v3501 = vadd.s32 %v3500, 536870912
    %v3502 = vshrl.u32 %v3501, 30
    %v3503 = vshll.u32 %v3502, 30
    %v3504 = vsub.s32 %v3500, %v3503
    %vm3505 = vcmp.lt.s32.totalorder %v3504, 0
    %v3506 = vsub.s32 0, %v3504
    %v3507 = vsel %vm3505, %v3506, %v3504
    %v3508 = vclz %v3507
    %v3509 = vsub.s32 %v3508, 2
    %vm3510 = vcmp.gt.s32.totalorder 0, %v3509
    %v3511 = vsel %vm3510, 0, %v3509
    %v3512 = vsub.s32 32, %v3511
    %v3513 = vshll.u32 %v3504, %v3511
    %v3514 = vshrl.u32 %v3496, %v3512
    %v3515 = vor.u32 %v3513, %v3514
    %v3516 = vsub.s32 4294967266, %v3511
    %v3517 = vadd.s32 %v3516, 127
    %v3518 = vshll.u32 %v3517, 23
    %v3519 = vor.u32 4788187, %v3518
    %v3520 = vand.u32 2147483647, %v3519
    %v3522 = vcvt.s32.f32 %v3515
    %v3523 = vmul.f32 %v3522, %v3520
    %v3524 = vxor.u32 %v3523, 2147483648
    %v3525 = vsel %vm3442, %v3524, %v3523
    %v3526 = vsub.s32 4, %v3502
    %v3527 = vsel %vm3442, %v3526, %v3502
    %v3528 = vsel %vm3441, %v197, %v3525
    %v3529 = vsel %vm3441, 0, %v3527
    %v3530 = vcosq.f32.pop %v3528
    %v3531 = vsinq.f32.pop %v3528
    %vm3532 = vweird.f32 %v197
    %v3533 = vadd.s32 %v3529, 3
    %v3534 = vand.u32 %v3533, 3
    %vm3535 = vcmp.lt.s32.totalorder %v3534, 2
    %vm3536 = vcmp.eq.s32.totalorder %v3534, 0
    %v3537 = vxor.u32 %v3531, 2147483648
    %v3538 = vsel %vm3536, %v3530, %v3537
    %vm3539 = vcmp.eq.s32.totalorder %v3534, 2
    %v3540 = vxor.u32 %v3530, 2147483648
    %v3541 = vsel %vm3539, %v3540, %v3531
    %v3542 = vsel %vm3535, %v3538, %v3541
    %v3543 = vsel %vm3532, nan, %v3542
    %v3544 = vand.u32 2147483647, %v198
    %vm3545 = vcmp.le.f32.partialorder %v3544, 0.7853982
    %vm3546 = vcmp.lt.s32.totalorder %v198, 0
    %v3547 = vand.u32 %v198, 2139095040
    %v3548 = vshrl.u32 %v3547, 23
    %v3549 = vsub.s32 %v3548, 127
    %v3550 = vand.u32 2147483647, %v198
    %v3551 = vand.u32 %v3550, 8388607
    %v3552 = vor.u32 %v3551, 8388608
    %v3553 = vsub.s32 0, %v3552
    %v3554 = vadd.s32 %v3549, 1
    %vm3555 = vcmp.gt.s32.totalorder %v3554, 0
    %v3556 = vsel %vm3555, %v3554, 0
    %v3557 = vshrl.u32 %v3556, 5
    %v3558 = vand.u32 %v3556, 31
    %v3559 = vsub.s32 32, %v3558
    %v3560 = vshrl.u32 683565275, %v3559
    %v3561 = vshll.u32 683565275, %v3558
    %v3562 = vshrl.u32 2475754826, %v3559
    %v3563 = vor.u32 %v3561, %v3562
    %v3564 = vshll.u32 2475754826, %v3558
    %v3565 = vshrl.u32 2131351028, %v3559
    %v3566 = vor.u32 %v3564, %v3565
    %v3567 = vshll.u32 2131351028, %v3558
    %v3568 = vshrl.u32 2102212464, %v3559
    %v3569 = vor.u32 %v3567, %v3568
    %v3570 = vshll.u32 2102212464, %v3558
    %v3571 = vshrl.u32 920167782, %v3559
    %v3572 = vor.u32 %v3570, %v3571
    %v3573 = vshll.u32 920167782, %v3558
    %v3574 = vshrl.u32 1326507024, %v3559
    %v3575 = vor.u32 %v3573, %v3574
    %vm3576 = vcmp.lt.s32.totalorder %v3557, 1
    %vm3577 = vcmp.lt.s32.totalorder %v3557, 2
    %vm3578 = vcmp.lt.s32.totalorder %v3557, 3
    %vm3579 = vcmp.lt.s32.totalorder %v3557, 4
    %v3580 = vsel %vm3576, %v3560, %v3563
    %v3581 = vsel %vm3579, %v3569, 2102212464
    %v3582 = vsel %vm3578, %v3566, %v3581
    %v3583 = vsel %vm3577, %v3580, %v3582
    %v3584 = vsel %vm3576, %v3563, %v3566
    %v3585 = vsel %vm3579, %v3572, 920167782
    %v3586 = vsel %vm3578, %v3569, %v3585
    %v3587 = vsel %vm3577, %v3584, %v3586
    %v3588 = vsel %vm3576, %v3566, %v3569
    %v3589 = vsel %vm3579, %v3575, 1326507024
    %v3590 = vsel %vm3578, %v3572, %v3589
    %v3591 = vsel %vm3577, %v3588, %v3590
    %v3592 = vshll.u32 %v3552, 8
    %v3593 = vmul.u32.u64.compose %v3592, %v3591
    %v3594 = vextract.low.u32 %v3593
    %v3595 = vextract.high.u32 %v3593
    %v3596 = vmul.u32.u64.compose %v3592, %v3587
    %v3597 = vextract.low.u32 %v3596
    %v3598 = vextract.high.u32 %v3596
    %v3599 = vmul.u32 %v3592, %v3583
    %v3600 = vadd.s32 %v3595, %v3597
    %vm3601 = vc.u32 %v3595, %v3597
    %v3602 = vadd.s32 %v3598, 1
    %v3603 = vsel %vm3601, %v3602, %v3598
    %v3604 = vadd.s32 %v3599, %v3603
    %v3605 = vadd.s32 %v3604, 536870912
    %v3606 = vshrl.u32 %v3605, 30
    %v3607 = vshll.u32 %v3606, 30
    %v3608 = vsub.s32 %v3604, %v3607
    %vm3609 = vcmp.lt.s32.totalorder %v3608, 0
    %v3610 = vsub.s32 0, %v3608
    %v3611 = vsel %vm3609, %v3610, %v3608
    %v3612 = vclz %v3611
    %v3613 = vsub.s32 %v3612, 2
    %vm3614 = vcmp.gt.s32.totalorder 0, %v3613
    %v3615 = vsel %vm3614, 0, %v3613
    %v3616 = vsub.s32 32, %v3615
    %v3617 = vshll.u32 %v3608, %v3615
    %v3618 = vshrl.u32 %v3600, %v3616
    %v3619 = vor.u32 %v3617, %v3618
    %v3620 = vsub.s32 4294967266, %v3615
    %v3621 = vadd.s32 %v3620, 127
    %v3622 = vshll.u32 %v3621, 23
    %v3623 = vor.u32 4788187, %v3622
    %v3624 = vand.u32 2147483647, %v3623
    %v3626 = vcvt.s32.f32 %v3619
    %v3627 = vmul.f32 %v3626, %v3624
    %v3628 = vxor.u32 %v3627, 2147483648
    %v3629 = vsel %vm3546, %v3628, %v3627
    %v3630 = vsub.s32 4, %v3606
    %v3631 = vsel %vm3546, %v3630, %v3606
    %v3632 = vsel %vm3545, %v198, %v3629
    %v3633 = vsel %vm3545, 0, %v3631
    %v3634 = vcosq.f32.pop %v3632
    %v3635 = vsinq.f32.pop %v3632
    %vm3636 = vweird.f32 %v198
    %v3637 = vadd.s32 %v3633, 3
    %v3638 = vand.u32 %v3637, 3
    %vm3639 = vcmp.lt.s32.totalorder %v3638, 2
    %vm3640 = vcmp.eq.s32.totalorder %v3638, 0
    %v3641 = vxor.u32 %v3635, 2147483648
    %v3642 = vsel %vm3640, %v3634, %v3641
    %vm3643 = vcmp.eq.s32.totalorder %v3638, 2
    %v3644 = vxor.u32 %v3634, 2147483648
    %v3645 = vsel %vm3643, %v3644, %v3635
    %v3646 = vsel %vm3639, %v3642, %v3645
    %v3647 = vsel %vm3636, nan, %v3646
    %v3648 = vand.u32 2147483647, %v199
    %vm3649 = vcmp.le.f32.partialorder %v3648, 0.7853982
    %vm3650 = vcmp.lt.s32.totalorder %v199, 0
    %v3651 = vand.u32 %v199, 2139095040
    %v3652 = vshrl.u32 %v3651, 23
    %v3653 = vsub.s32 %v3652, 127
    %v3654 = vand.u32 2147483647, %v199
    %v3655 = vand.u32 %v3654, 8388607
    %v3656 = vor.u32 %v3655, 8388608
    %v3657 = vsub.s32 0, %v3656
    %v3658 = vadd.s32 %v3653, 1
    %vm3659 = vcmp.gt.s32.totalorder %v3658, 0
    %v3660 = vsel %vm3659, %v3658, 0
    %v3661 = vshrl.u32 %v3660, 5
    %v3662 = vand.u32 %v3660, 31
    %v3663 = vsub.s32 32, %v3662
    %v3664 = vshrl.u32 683565275, %v3663
    %v3665 = vshll.u32 683565275, %v3662
    %v3666 = vshrl.u32 2475754826, %v3663
    %v3667 = vor.u32 %v3665, %v3666
    %v3668 = vshll.u32 2475754826, %v3662
    %v3669 = vshrl.u32 2131351028, %v3663
    %v3670 = vor.u32 %v3668, %v3669
    %v3671 = vshll.u32 2131351028, %v3662
    %v3672 = vshrl.u32 2102212464, %v3663
    %v3673 = vor.u32 %v3671, %v3672
    %v3674 = vshll.u32 2102212464, %v3662
    %v3675 = vshrl.u32 920167782, %v3663
    %v3676 = vor.u32 %v3674, %v3675
    %v3677 = vshll.u32 920167782, %v3662
    %v3678 = vshrl.u32 1326507024, %v3663
    %v3679 = vor.u32 %v3677, %v3678
    %vm3680 = vcmp.lt.s32.totalorder %v3661, 1
    %vm3681 = vcmp.lt.s32.totalorder %v3661, 2
    %vm3682 = vcmp.lt.s32.totalorder %v3661, 3
    %vm3683 = vcmp.lt.s32.totalorder %v3661, 4
    %v3684 = vsel %vm3680, %v3664, %v3667
    %v3685 = vsel %vm3683, %v3673, 2102212464
    %v3686 = vsel %vm3682, %v3670, %v3685
    %v3687 = vsel %vm3681, %v3684, %v3686
    %v3688 = vsel %vm3680, %v3667, %v3670
    %v3689 = vsel %vm3683, %v3676, 920167782
    %v3690 = vsel %vm3682, %v3673, %v3689
    %v3691 = vsel %vm3681, %v3688, %v3690
    %v3692 = vsel %vm3680, %v3670, %v3673
    %v3693 = vsel %vm3683, %v3679, 1326507024
    %v3694 = vsel %vm3682, %v3676, %v3693
    %v3695 = vsel %vm3681, %v3692, %v3694
    %v3696 = vshll.u32 %v3656, 8
    %v3697 = vmul.u32.u64.compose %v3696, %v3695
    %v3698 = vextract.low.u32 %v3697
    %v3699 = vextract.high.u32 %v3697
    %v3700 = vmul.u32.u64.compose %v3696, %v3691
    %v3701 = vextract.low.u32 %v3700
    %v3702 = vextract.high.u32 %v3700
    %v3703 = vmul.u32 %v3696, %v3687
    %v3704 = vadd.s32 %v3699, %v3701
    %vm3705 = vc.u32 %v3699, %v3701
    %v3706 = vadd.s32 %v3702, 1
    %v3707 = vsel %vm3705, %v3706, %v3702
    %v3708 = vadd.s32 %v3703, %v3707
    %v3709 = vadd.s32 %v3708, 536870912
    %v3710 = vshrl.u32 %v3709, 30
    %v3711 = vshll.u32 %v3710, 30
    %v3712 = vsub.s32 %v3708, %v3711
    %vm3713 = vcmp.lt.s32.totalorder %v3712, 0
    %v3714 = vsub.s32 0, %v3712
    %v3715 = vsel %vm3713, %v3714, %v3712
    %v3716 = vclz %v3715
    %v3717 = vsub.s32 %v3716, 2
    %vm3718 = vcmp.gt.s32.totalorder 0, %v3717
    %v3719 = vsel %vm3718, 0, %v3717
    %v3720 = vsub.s32 32, %v3719
    %v3721 = vshll.u32 %v3712, %v3719
    %v3722 = vshrl.u32 %v3704, %v3720
    %v3723 = vor.u32 %v3721, %v3722
    %v3724 = vsub.s32 4294967266, %v3719
    %v3725 = vadd.s32 %v3724, 127
    %v3726 = vshll.u32 %v3725, 23
    %v3727 = vor.u32 4788187, %v3726
    %v3728 = vand.u32 2147483647, %v3727
    %v3730 = vcvt.s32.f32 %v3723
    %v3731 = vmul.f32 %v3730, %v3728
    %v3732 = vxor.u32 %v3731, 2147483648
    %v3733 = vsel %vm3650, %v3732, %v3731
    %v3734 = vsub.s32 4, %v3710
    %v3735 = vsel %vm3650, %v3734, %v3710
    %v3736 = vsel %vm3649, %v199, %v3733
    %v3737 = vsel %vm3649, 0, %v3735
    %v3738 = vcosq.f32.pop %v3736
    %v3739 = vsinq.f32.pop %v3736
    %vm3740 = vweird.f32 %v199
    %v3741 = vadd.s32 %v3737, 3
    %v3742 = vand.u32 %v3741, 3
    %vm3743 = vcmp.lt.s32.totalorder %v3742, 2
    %vm3744 = vcmp.eq.s32.totalorder %v3742, 0
    %v3745 = vxor.u32 %v3739, 2147483648
    %v3746 = vsel %vm3744, %v3738, %v3745
    %vm3747 = vcmp.eq.s32.totalorder %v3742, 2
    %v3748 = vxor.u32 %v3738, 2147483648
    %v3749 = vsel %vm3747, %v3748, %v3739
    %v3750 = vsel %vm3743, %v3746, %v3749
    %v3751 = vsel %vm3740, nan, %v3750
    %v3752 = vand.u32 2147483647, %v200
    %vm3753 = vcmp.le.f32.partialorder %v3752, 0.7853982
    %vm3754 = vcmp.lt.s32.totalorder %v200, 0
    %v3755 = vand.u32 %v200, 2139095040
    %v3756 = vshrl.u32 %v3755, 23
    %v3757 = vsub.s32 %v3756, 127
    %v3758 = vand.u32 2147483647, %v200
    %v3759 = vand.u32 %v3758, 8388607
    %v3760 = vor.u32 %v3759, 8388608
    %v3761 = vsub.s32 0, %v3760
    %v3762 = vadd.s32 %v3757, 1
    %vm3763 = vcmp.gt.s32.totalorder %v3762, 0
    %v3764 = vsel %vm3763, %v3762, 0
    %v3765 = vshrl.u32 %v3764, 5
    %v3766 = vand.u32 %v3764, 31
    %v3767 = vsub.s32 32, %v3766
    %v3768 = vshrl.u32 683565275, %v3767
    %v3769 = vshll.u32 683565275, %v3766
    %v3770 = vshrl.u32 2475754826, %v3767
    %v3771 = vor.u32 %v3769, %v3770
    %v3772 = vshll.u32 2475754826, %v3766
    %v3773 = vshrl.u32 2131351028, %v3767
    %v3774 = vor.u32 %v3772, %v3773
    %v3775 = vshll.u32 2131351028, %v3766
    %v3776 = vshrl.u32 2102212464, %v3767
    %v3777 = vor.u32 %v3775, %v3776
    %v3778 = vshll.u32 2102212464, %v3766
    %v3779 = vshrl.u32 920167782, %v3767
    %v3780 = vor.u32 %v3778, %v3779
    %v3781 = vshll.u32 920167782, %v3766
    %v3782 = vshrl.u32 1326507024, %v3767
    %v3783 = vor.u32 %v3781, %v3782
    %vm3784 = vcmp.lt.s32.totalorder %v3765, 1
    %vm3785 = vcmp.lt.s32.totalorder %v3765, 2
    %vm3786 = vcmp.lt.s32.totalorder %v3765, 3
    %vm3787 = vcmp.lt.s32.totalorder %v3765, 4
    %v3788 = vsel %vm3784, %v3768, %v3771
    %v3789 = vsel %vm3787, %v3777, 2102212464
    %v3790 = vsel %vm3786, %v3774, %v3789
    %v3791 = vsel %vm3785, %v3788, %v3790
    %v3792 = vsel %vm3784, %v3771, %v3774
    %v3793 = vsel %vm3787, %v3780, 920167782
    %v3794 = vsel %vm3786, %v3777, %v3793
    %v3795 = vsel %vm3785, %v3792, %v3794
    %v3796 = vsel %vm3784, %v3774, %v3777
    %v3797 = vsel %vm3787, %v3783, 1326507024
    %v3798 = vsel %vm3786, %v3780, %v3797
    %v3799 = vsel %vm3785, %v3796, %v3798
    %v3800 = vshll.u32 %v3760, 8
    %v3801 = vmul.u32.u64.compose %v3800, %v3799
    %v3802 = vextract.low.u32 %v3801
    %v3803 = vextract.high.u32 %v3801
    %v3804 = vmul.u32.u64.compose %v3800, %v3795
    %v3805 = vextract.low.u32 %v3804
    %v3806 = vextract.high.u32 %v3804
    %v3807 = vmul.u32 %v3800, %v3791
    %v3808 = vadd.s32 %v3803, %v3805
    %vm3809 = vc.u32 %v3803, %v3805
    %v3810 = vadd.s32 %v3806, 1
    %v3811 = vsel %vm3809, %v3810, %v3806
    %v3812 = vadd.s32 %v3807, %v3811
    %v3813 = vadd.s32 %v3812, 536870912
    %v3814 = vshrl.u32 %v3813, 30
    %v3815 = vshll.u32 %v3814, 30
    %v3816 = vsub.s32 %v3812, %v3815
    %vm3817 = vcmp.lt.s32.totalorder %v3816, 0
    %v3818 = vsub.s32 0, %v3816
    %v3819 = vsel %vm3817, %v3818, %v3816
    %v3820 = vclz %v3819
    %v3821 = vsub.s32 %v3820, 2
    %vm3822 = vcmp.gt.s32.totalorder 0, %v3821
    %v3823 = vsel %vm3822, 0, %v3821
    %v3824 = vsub.s32 32, %v3823
    %v3825 = vshll.u32 %v3816, %v3823
    %v3826 = vshrl.u32 %v3808, %v3824
    %v3827 = vor.u32 %v3825, %v3826
    %v3828 = vsub.s32 4294967266, %v3823
    %v3829 = vadd.s32 %v3828, 127
    %v3830 = vshll.u32 %v3829, 23
    %v3831 = vor.u32 4788187, %v3830
    %v3832 = vand.u32 2147483647, %v3831
    %v3834 = vcvt.s32.f32 %v3827
    %v3835 = vmul.f32 %v3834, %v3832
    %v3836 = vxor.u32 %v3835, 2147483648
    %v3837 = vsel %vm3754, %v3836, %v3835
    %v3838 = vsub.s32 4, %v3814
    %v3839 = vsel %vm3754, %v3838, %v3814
    %v3840 = vsel %vm3753, %v200, %v3837
    %v3841 = vsel %vm3753, 0, %v3839
    %v3842 = vcosq.f32.pop %v3840
    %v3843 = vsinq.f32.pop %v3840
    %vm3844 = vweird.f32 %v200
    %v3845 = vadd.s32 %v3841, 3
    %v3846 = vand.u32 %v3845, 3
    %vm3847 = vcmp.lt.s32.totalorder %v3846, 2
    %vm3848 = vcmp.eq.s32.totalorder %v3846, 0
    %v3849 = vxor.u32 %v3843, 2147483648
    %v3850 = vsel %vm3848, %v3842, %v3849
    %vm3851 = vcmp.eq.s32.totalorder %v3846, 2
    %v3852 = vxor.u32 %v3842, 2147483648
    %v3853 = vsel %vm3851, %v3852, %v3843
    %v3854 = vsel %vm3847, %v3850, %v3853
    %v3855 = vsel %vm3844, nan, %v3854
    %v3856 = vand.u32 2147483647, %v201
    %vm3857 = vcmp.le.f32.partialorder %v3856, 0.7853982
    %vm3858 = vcmp.lt.s32.totalorder %v201, 0
    %v3859 = vand.u32 %v201, 2139095040
    %v3860 = vshrl.u32 %v3859, 23
    %v3861 = vsub.s32 %v3860, 127
    %v3862 = vand.u32 2147483647, %v201
    %v3863 = vand.u32 %v3862, 8388607
    %v3864 = vor.u32 %v3863, 8388608
    %v3865 = vsub.s32 0, %v3864
    %v3866 = vadd.s32 %v3861, 1
    %vm3867 = vcmp.gt.s32.totalorder %v3866, 0
    %v3868 = vsel %vm3867, %v3866, 0
    %v3869 = vshrl.u32 %v3868, 5
    %v3870 = vand.u32 %v3868, 31
    %v3871 = vsub.s32 32, %v3870
    %v3872 = vshrl.u32 683565275, %v3871
    %v3873 = vshll.u32 683565275, %v3870
    %v3874 = vshrl.u32 2475754826, %v3871
    %v3875 = vor.u32 %v3873, %v3874
    %v3876 = vshll.u32 2475754826, %v3870
    %v3877 = vshrl.u32 2131351028, %v3871
    %v3878 = vor.u32 %v3876, %v3877
    %v3879 = vshll.u32 2131351028, %v3870
    %v3880 = vshrl.u32 2102212464, %v3871
    %v3881 = vor.u32 %v3879, %v3880
    %v3882 = vshll.u32 2102212464, %v3870
    %v3883 = vshrl.u32 920167782, %v3871
    %v3884 = vor.u32 %v3882, %v3883
    %v3885 = vshll.u32 920167782, %v3870
    %v3886 = vshrl.u32 1326507024, %v3871
    %v3887 = vor.u32 %v3885, %v3886
    %vm3888 = vcmp.lt.s32.totalorder %v3869, 1
    %vm3889 = vcmp.lt.s32.totalorder %v3869, 2
    %vm3890 = vcmp.lt.s32.totalorder %v3869, 3
    %vm3891 = vcmp.lt.s32.totalorder %v3869, 4
    %v3892 = vsel %vm3888, %v3872, %v3875
    %v3893 = vsel %vm3891, %v3881, 2102212464
    %v3894 = vsel %vm3890, %v3878, %v3893
    %v3895 = vsel %vm3889, %v3892, %v3894
    %v3896 = vsel %vm3888, %v3875, %v3878
    %v3897 = vsel %vm3891, %v3884, 920167782
    %v3898 = vsel %vm3890, %v3881, %v3897
    %v3899 = vsel %vm3889, %v3896, %v3898
    %v3900 = vsel %vm3888, %v3878, %v3881
    %v3901 = vsel %vm3891, %v3887, 1326507024
    %v3902 = vsel %vm3890, %v3884, %v3901
    %v3903 = vsel %vm3889, %v3900, %v3902
    %v3904 = vshll.u32 %v3864, 8
    %v3905 = vmul.u32.u64.compose %v3904, %v3903
    %v3906 = vextract.low.u32 %v3905
    %v3907 = vextract.high.u32 %v3905
    %v3908 = vmul.u32.u64.compose %v3904, %v3899
    %v3909 = vextract.low.u32 %v3908
    %v3910 = vextract.high.u32 %v3908
    %v3911 = vmul.u32 %v3904, %v3895
    %v3912 = vadd.s32 %v3907, %v3909
    %vm3913 = vc.u32 %v3907, %v3909
    %v3914 = vadd.s32 %v3910, 1
    %v3915 = vsel %vm3913, %v3914, %v3910
    %v3916 = vadd.s32 %v3911, %v3915
    %v3917 = vadd.s32 %v3916, 536870912
    %v3918 = vshrl.u32 %v3917, 30
    %v3919 = vshll.u32 %v3918, 30
    %v3920 = vsub.s32 %v3916, %v3919
    %vm3921 = vcmp.lt.s32.totalorder %v3920, 0
    %v3922 = vsub.s32 0, %v3920
    %v3923 = vsel %vm3921, %v3922, %v3920
    %v3924 = vclz %v3923
    %v3925 = vsub.s32 %v3924, 2
    %vm3926 = vcmp.gt.s32.totalorder 0, %v3925
    %v3927 = vsel %vm3926, 0, %v3925
    %v3928 = vsub.s32 32, %v3927
    %v3929 = vshll.u32 %v3920, %v3927
    %v3930 = vshrl.u32 %v3912, %v3928
    %v3931 = vor.u32 %v3929, %v3930
    %v3932 = vsub.s32 4294967266, %v3927
    %v3933 = vadd.s32 %v3932, 127
    %v3934 = vshll.u32 %v3933, 23
    %v3935 = vor.u32 4788187, %v3934
    %v3936 = vand.u32 2147483647, %v3935
    %v3938 = vcvt.s32.f32 %v3931
    %v3939 = vmul.f32 %v3938, %v3936
    %v3940 = vxor.u32 %v3939, 2147483648
    %v3941 = vsel %vm3858, %v3940, %v3939
    %v3942 = vsub.s32 4, %v3918
    %v3943 = vsel %vm3858, %v3942, %v3918
    %v3944 = vsel %vm3857, %v201, %v3941
    %v3945 = vsel %vm3857, 0, %v3943
    %v3946 = vcosq.f32.pop %v3944
    %v3947 = vsinq.f32.pop %v3944
    %vm3948 = vweird.f32 %v201
    %v3949 = vadd.s32 %v3945, 3
    %v3950 = vand.u32 %v3949, 3
    %vm3951 = vcmp.lt.s32.totalorder %v3950, 2
    %vm3952 = vcmp.eq.s32.totalorder %v3950, 0
    %v3953 = vxor.u32 %v3947, 2147483648
    %v3954 = vsel %vm3952, %v3946, %v3953
    %vm3955 = vcmp.eq.s32.totalorder %v3950, 2
    %v3956 = vxor.u32 %v3946, 2147483648
    %v3957 = vsel %vm3955, %v3956, %v3947
    %v3958 = vsel %vm3951, %v3954, %v3957
    %v3959 = vsel %vm3948, nan, %v3958
    %v3960 = vand.u32 2147483647, %v202
    %vm3961 = vcmp.le.f32.partialorder %v3960, 0.7853982
    %vm3962 = vcmp.lt.s32.totalorder %v202, 0
    %v3963 = vand.u32 %v202, 2139095040
    %v3964 = vshrl.u32 %v3963, 23
    %v3965 = vsub.s32 %v3964, 127
    %v3966 = vand.u32 2147483647, %v202
    %v3967 = vand.u32 %v3966, 8388607
    %v3968 = vor.u32 %v3967, 8388608
    %v3969 = vsub.s32 0, %v3968
    %v3970 = vadd.s32 %v3965, 1
    %vm3971 = vcmp.gt.s32.totalorder %v3970, 0
    %v3972 = vsel %vm3971, %v3970, 0
    %v3973 = vshrl.u32 %v3972, 5
    %v3974 = vand.u32 %v3972, 31
    %v3975 = vsub.s32 32, %v3974
    %v3976 = vshrl.u32 683565275, %v3975
    %v3977 = vshll.u32 683565275, %v3974
    %v3978 = vshrl.u32 2475754826, %v3975
    %v3979 = vor.u32 %v3977, %v3978
    %v3980 = vshll.u32 2475754826, %v3974
    %v3981 = vshrl.u32 2131351028, %v3975
    %v3982 = vor.u32 %v3980, %v3981
    %v3983 = vshll.u32 2131351028, %v3974
    %v3984 = vshrl.u32 2102212464, %v3975
    %v3985 = vor.u32 %v3983, %v3984
    %v3986 = vshll.u32 2102212464, %v3974
    %v3987 = vshrl.u32 920167782, %v3975
    %v3988 = vor.u32 %v3986, %v3987
    %v3989 = vshll.u32 920167782, %v3974
    %v3990 = vshrl.u32 1326507024, %v3975
    %v3991 = vor.u32 %v3989, %v3990
    %vm3992 = vcmp.lt.s32.totalorder %v3973, 1
    %vm3993 = vcmp.lt.s32.totalorder %v3973, 2
    %vm3994 = vcmp.lt.s32.totalorder %v3973, 3
    %vm3995 = vcmp.lt.s32.totalorder %v3973, 4
    %v3996 = vsel %vm3992, %v3976, %v3979
    %v3997 = vsel %vm3995, %v3985, 2102212464
    %v3998 = vsel %vm3994, %v3982, %v3997
    %v3999 = vsel %vm3993, %v3996, %v3998
    %v4000 = vsel %vm3992, %v3979, %v3982
    %v4001 = vsel %vm3995, %v3988, 920167782
    %v4002 = vsel %vm3994, %v3985, %v4001
    %v4003 = vsel %vm3993, %v4000, %v4002
    %v4004 = vsel %vm3992, %v3982, %v3985
    %v4005 = vsel %vm3995, %v3991, 1326507024
    %v4006 = vsel %vm3994, %v3988, %v4005
    %v4007 = vsel %vm3993, %v4004, %v4006
    %v4008 = vshll.u32 %v3968, 8
    %v4009 = vmul.u32.u64.compose %v4008, %v4007
    %v4010 = vextract.low.u32 %v4009
    %v4011 = vextract.high.u32 %v4009
    %v4012 = vmul.u32.u64.compose %v4008, %v4003
    %v4013 = vextract.low.u32 %v4012
    %v4014 = vextract.high.u32 %v4012
    %v4015 = vmul.u32 %v4008, %v3999
    %v4016 = vadd.s32 %v4011, %v4013
    %vm4017 = vc.u32 %v4011, %v4013
    %v4018 = vadd.s32 %v4014, 1
    %v4019 = vsel %vm4017, %v4018, %v4014
    %v4020 = vadd.s32 %v4015, %v4019
    %v4021 = vadd.s32 %v4020, 536870912
    %v4022 = vshrl.u32 %v4021, 30
    %v4023 = vshll.u32 %v4022, 30
    %v4024 = vsub.s32 %v4020, %v4023
    %vm4025 = vcmp.lt.s32.totalorder %v4024, 0
    %v4026 = vsub.s32 0, %v4024
    %v4027 = vsel %vm4025, %v4026, %v4024
    %v4028 = vclz %v4027
    %v4029 = vsub.s32 %v4028, 2
    %vm4030 = vcmp.gt.s32.totalorder 0, %v4029
    %v4031 = vsel %vm4030, 0, %v4029
    %v4032 = vsub.s32 32, %v4031
    %v4033 = vshll.u32 %v4024, %v4031
    %v4034 = vshrl.u32 %v4016, %v4032
    %v4035 = vor.u32 %v4033, %v4034
    %v4036 = vsub.s32 4294967266, %v4031
    %v4037 = vadd.s32 %v4036, 127
    %v4038 = vshll.u32 %v4037, 23
    %v4039 = vor.u32 4788187, %v4038
    %v4040 = vand.u32 2147483647, %v4039
    %v4042 = vcvt.s32.f32 %v4035
    %v4043 = vmul.f32 %v4042, %v4040
    %v4044 = vxor.u32 %v4043, 2147483648
    %v4045 = vsel %vm3962, %v4044, %v4043
    %v4046 = vsub.s32 4, %v4022
    %v4047 = vsel %vm3962, %v4046, %v4022
    %v4048 = vsel %vm3961, %v202, %v4045
    %v4049 = vsel %vm3961, 0, %v4047
    %v4050 = vcosq.f32.pop %v4048
    %v4051 = vsinq.f32.pop %v4048
    %vm4052 = vweird.f32 %v202
    %v4053 = vadd.s32 %v4049, 3
    %v4054 = vand.u32 %v4053, 3
    %vm4055 = vcmp.lt.s32.totalorder %v4054, 2
    %vm4056 = vcmp.eq.s32.totalorder %v4054, 0
    %v4057 = vxor.u32 %v4051, 2147483648
    %v4058 = vsel %vm4056, %v4050, %v4057
    %vm4059 = vcmp.eq.s32.totalorder %v4054, 2
    %v4060 = vxor.u32 %v4050, 2147483648
    %v4061 = vsel %vm4059, %v4060, %v4051
    %v4062 = vsel %vm4055, %v4058, %v4061
    %v4063 = vsel %vm4052, nan, %v4062
    %v4064 = vand.u32 2147483647, %v203
    %vm4065 = vcmp.le.f32.partialorder %v4064, 0.7853982
    %vm4066 = vcmp.lt.s32.totalorder %v203, 0
    %v4067 = vand.u32 %v203, 2139095040
    %v4068 = vshrl.u32 %v4067, 23
    %v4069 = vsub.s32 %v4068, 127
    %v4070 = vand.u32 2147483647, %v203
    %v4071 = vand.u32 %v4070, 8388607
    %v4072 = vor.u32 %v4071, 8388608
    %v4073 = vsub.s32 0, %v4072
    %v4074 = vadd.s32 %v4069, 1
    %vm4075 = vcmp.gt.s32.totalorder %v4074, 0
    %v4076 = vsel %vm4075, %v4074, 0
    %v4077 = vshrl.u32 %v4076, 5
    %v4078 = vand.u32 %v4076, 31
    %v4079 = vsub.s32 32, %v4078
    %v4080 = vshrl.u32 683565275, %v4079
    %v4081 = vshll.u32 683565275, %v4078
    %v4082 = vshrl.u32 2475754826, %v4079
    %v4083 = vor.u32 %v4081, %v4082
    %v4084 = vshll.u32 2475754826, %v4078
    %v4085 = vshrl.u32 2131351028, %v4079
    %v4086 = vor.u32 %v4084, %v4085
    %v4087 = vshll.u32 2131351028, %v4078
    %v4088 = vshrl.u32 2102212464, %v4079
    %v4089 = vor.u32 %v4087, %v4088
    %v4090 = vshll.u32 2102212464, %v4078
    %v4091 = vshrl.u32 920167782, %v4079
    %v4092 = vor.u32 %v4090, %v4091
    %v4093 = vshll.u32 920167782, %v4078
    %v4094 = vshrl.u32 1326507024, %v4079
    %v4095 = vor.u32 %v4093, %v4094
    %vm4096 = vcmp.lt.s32.totalorder %v4077, 1
    %vm4097 = vcmp.lt.s32.totalorder %v4077, 2
    %vm4098 = vcmp.lt.s32.totalorder %v4077, 3
    %vm4099 = vcmp.lt.s32.totalorder %v4077, 4
    %v4100 = vsel %vm4096, %v4080, %v4083
    %v4101 = vsel %vm4099, %v4089, 2102212464
    %v4102 = vsel %vm4098, %v4086, %v4101
    %v4103 = vsel %vm4097, %v4100, %v4102
    %v4104 = vsel %vm4096, %v4083, %v4086
    %v4105 = vsel %vm4099, %v4092, 920167782
    %v4106 = vsel %vm4098, %v4089, %v4105
    %v4107 = vsel %vm4097, %v4104, %v4106
    %v4108 = vsel %vm4096, %v4086, %v4089
    %v4109 = vsel %vm4099, %v4095, 1326507024
    %v4110 = vsel %vm4098, %v4092, %v4109
    %v4111 = vsel %vm4097, %v4108, %v4110
    %v4112 = vshll.u32 %v4072, 8
    %v4113 = vmul.u32.u64.compose %v4112, %v4111
    %v4114 = vextract.low.u32 %v4113
    %v4115 = vextract.high.u32 %v4113
    %v4116 = vmul.u32.u64.compose %v4112, %v4107
    %v4117 = vextract.low.u32 %v4116
    %v4118 = vextract.high.u32 %v4116
    %v4119 = vmul.u32 %v4112, %v4103
    %v4120 = vadd.s32 %v4115, %v4117
    %vm4121 = vc.u32 %v4115, %v4117
    %v4122 = vadd.s32 %v4118, 1
    %v4123 = vsel %vm4121, %v4122, %v4118
    %v4124 = vadd.s32 %v4119, %v4123
    %v4125 = vadd.s32 %v4124, 536870912
    %v4126 = vshrl.u32 %v4125, 30
    %v4127 = vshll.u32 %v4126, 30
    %v4128 = vsub.s32 %v4124, %v4127
    %vm4129 = vcmp.lt.s32.totalorder %v4128, 0
    %v4130 = vsub.s32 0, %v4128
    %v4131 = vsel %vm4129, %v4130, %v4128
    %v4132 = vclz %v4131
    %v4133 = vsub.s32 %v4132, 2
    %vm4134 = vcmp.gt.s32.totalorder 0, %v4133
    %v4135 = vsel %vm4134, 0, %v4133
    %v4136 = vsub.s32 32, %v4135
    %v4137 = vshll.u32 %v4128, %v4135
    %v4138 = vshrl.u32 %v4120, %v4136
    %v4139 = vor.u32 %v4137, %v4138
    %v4140 = vsub.s32 4294967266, %v4135
    %v4141 = vadd.s32 %v4140, 127
    %v4142 = vshll.u32 %v4141, 23
    %v4143 = vor.u32 4788187, %v4142
    %v4144 = vand.u32 2147483647, %v4143
    %v4146 = vcvt.s32.f32 %v4139
    %v4147 = vmul.f32 %v4146, %v4144
    %v4148 = vxor.u32 %v4147, 2147483648
    %v4149 = vsel %vm4066, %v4148, %v4147
    %v4150 = vsub.s32 4, %v4126
    %v4151 = vsel %vm4066, %v4150, %v4126
    %v4152 = vsel %vm4065, %v203, %v4149
    %v4153 = vsel %vm4065, 0, %v4151
    %v4154 = vcosq.f32.pop %v4152
    %v4155 = vsinq.f32.pop %v4152
    %vm4156 = vweird.f32 %v203
    %v4157 = vadd.s32 %v4153, 3
    %v4158 = vand.u32 %v4157, 3
    %vm4159 = vcmp.lt.s32.totalorder %v4158, 2
    %vm4160 = vcmp.eq.s32.totalorder %v4158, 0
    %v4161 = vxor.u32 %v4155, 2147483648
    %v4162 = vsel %vm4160, %v4154, %v4161
    %vm4163 = vcmp.eq.s32.totalorder %v4158, 2
    %v4164 = vxor.u32 %v4154, 2147483648
    %v4165 = vsel %vm4163, %v4164, %v4155
    %v4166 = vsel %vm4159, %v4162, %v4165
    %v4167 = vsel %vm4156, nan, %v4166
    %v4168 = vand.u32 2147483647, %v204
    %vm4169 = vcmp.le.f32.partialorder %v4168, 0.7853982
    %vm4170 = vcmp.lt.s32.totalorder %v204, 0
    %v4171 = vand.u32 %v204, 2139095040
    %v4172 = vshrl.u32 %v4171, 23
    %v4173 = vsub.s32 %v4172, 127
    %v4174 = vand.u32 2147483647, %v204
    %v4175 = vand.u32 %v4174, 8388607
    %v4176 = vor.u32 %v4175, 8388608
    %v4177 = vsub.s32 0, %v4176
    %v4178 = vadd.s32 %v4173, 1
    %vm4179 = vcmp.gt.s32.totalorder %v4178, 0
    %v4180 = vsel %vm4179, %v4178, 0
    %v4181 = vshrl.u32 %v4180, 5
    %v4182 = vand.u32 %v4180, 31
    %v4183 = vsub.s32 32, %v4182
    %v4184 = vshrl.u32 683565275, %v4183
    %v4185 = vshll.u32 683565275, %v4182
    %v4186 = vshrl.u32 2475754826, %v4183
    %v4187 = vor.u32 %v4185, %v4186
    %v4188 = vshll.u32 2475754826, %v4182
    %v4189 = vshrl.u32 2131351028, %v4183
    %v4190 = vor.u32 %v4188, %v4189
    %v4191 = vshll.u32 2131351028, %v4182
    %v4192 = vshrl.u32 2102212464, %v4183
    %v4193 = vor.u32 %v4191, %v4192
    %v4194 = vshll.u32 2102212464, %v4182
    %v4195 = vshrl.u32 920167782, %v4183
    %v4196 = vor.u32 %v4194, %v4195
    %v4197 = vshll.u32 920167782, %v4182
    %v4198 = vshrl.u32 1326507024, %v4183
    %v4199 = vor.u32 %v4197, %v4198
    %vm4200 = vcmp.lt.s32.totalorder %v4181, 1
    %vm4201 = vcmp.lt.s32.totalorder %v4181, 2
    %vm4202 = vcmp.lt.s32.totalorder %v4181, 3
    %vm4203 = vcmp.lt.s32.totalorder %v4181, 4
    %v4204 = vsel %vm4200, %v4184, %v4187
    %v4205 = vsel %vm4203, %v4193, 2102212464
    %v4206 = vsel %vm4202, %v4190, %v4205
    %v4207 = vsel %vm4201, %v4204, %v4206
    %v4208 = vsel %vm4200, %v4187, %v4190
    %v4209 = vsel %vm4203, %v4196, 920167782
    %v4210 = vsel %vm4202, %v4193, %v4209
    %v4211 = vsel %vm4201, %v4208, %v4210
    %v4212 = vsel %vm4200, %v4190, %v4193
    %v4213 = vsel %vm4203, %v4199, 1326507024
    %v4214 = vsel %vm4202, %v4196, %v4213
    %v4215 = vsel %vm4201, %v4212, %v4214
    %v4216 = vshll.u32 %v4176, 8
    %v4217 = vmul.u32.u64.compose %v4216, %v4215
    %v4218 = vextract.low.u32 %v4217
    %v4219 = vextract.high.u32 %v4217
    %v4220 = vmul.u32.u64.compose %v4216, %v4211
    %v4221 = vextract.low.u32 %v4220
    %v4222 = vextract.high.u32 %v4220
    %v4223 = vmul.u32 %v4216, %v4207
    %v4224 = vadd.s32 %v4219, %v4221
    %vm4225 = vc.u32 %v4219, %v4221
    %v4226 = vadd.s32 %v4222, 1
    %v4227 = vsel %vm4225, %v4226, %v4222
    %v4228 = vadd.s32 %v4223, %v4227
    %v4229 = vadd.s32 %v4228, 536870912
    %v4230 = vshrl.u32 %v4229, 30
    %v4231 = vshll.u32 %v4230, 30
    %v4232 = vsub.s32 %v4228, %v4231
    %vm4233 = vcmp.lt.s32.totalorder %v4232, 0
    %v4234 = vsub.s32 0, %v4232
    %v4235 = vsel %vm4233, %v4234, %v4232
    %v4236 = vclz %v4235
    %v4237 = vsub.s32 %v4236, 2
    %vm4238 = vcmp.gt.s32.totalorder 0, %v4237
    %v4239 = vsel %vm4238, 0, %v4237
    %v4240 = vsub.s32 32, %v4239
    %v4241 = vshll.u32 %v4232, %v4239
    %v4242 = vshrl.u32 %v4224, %v4240
    %v4243 = vor.u32 %v4241, %v4242
    %v4244 = vsub.s32 4294967266, %v4239
    %v4245 = vadd.s32 %v4244, 127
    %v4246 = vshll.u32 %v4245, 23
    %v4247 = vor.u32 4788187, %v4246
    %v4248 = vand.u32 2147483647, %v4247
    %v4250 = vcvt.s32.f32 %v4243
    %v4251 = vmul.f32 %v4250, %v4248
    %v4252 = vxor.u32 %v4251, 2147483648
    %v4253 = vsel %vm4170, %v4252, %v4251
    %v4254 = vsub.s32 4, %v4230
    %v4255 = vsel %vm4170, %v4254, %v4230
    %v4256 = vsel %vm4169, %v204, %v4253
    %v4257 = vsel %vm4169, 0, %v4255
    %v4258 = vcosq.f32.pop %v4256
    %v4259 = vsinq.f32.pop %v4256
    %vm4260 = vweird.f32 %v204
    %v4261 = vadd.s32 %v4257, 3
    %v4262 = vand.u32 %v4261, 3
    %vm4263 = vcmp.lt.s32.totalorder %v4262, 2
    %vm4264 = vcmp.eq.s32.totalorder %v4262, 0
    %v4265 = vxor.u32 %v4259, 2147483648
    %v4266 = vsel %vm4264, %v4258, %v4265
    %vm4267 = vcmp.eq.s32.totalorder %v4262, 2
    %v4268 = vxor.u32 %v4258, 2147483648
    %v4269 = vsel %vm4267, %v4268, %v4259
    %v4270 = vsel %vm4263, %v4266, %v4269
    %v4271 = vsel %vm4260, nan, %v4270
    %v4272 = vand.u32 2147483647, %v205
    %vm4273 = vcmp.le.f32.partialorder %v4272, 0.7853982
    %vm4274 = vcmp.lt.s32.totalorder %v205, 0
    %v4275 = vand.u32 %v205, 2139095040
    %v4276 = vshrl.u32 %v4275, 23
    %v4277 = vsub.s32 %v4276, 127
    %v4278 = vand.u32 2147483647, %v205
    %v4279 = vand.u32 %v4278, 8388607
    %v4280 = vor.u32 %v4279, 8388608
    %v4281 = vsub.s32 0, %v4280
    %v4282 = vadd.s32 %v4277, 1
    %vm4283 = vcmp.gt.s32.totalorder %v4282, 0
    %v4284 = vsel %vm4283, %v4282, 0
    %v4285 = vshrl.u32 %v4284, 5
    %v4286 = vand.u32 %v4284, 31
    %v4287 = vsub.s32 32, %v4286
    %v4288 = vshrl.u32 683565275, %v4287
    %v4289 = vshll.u32 683565275, %v4286
    %v4290 = vshrl.u32 2475754826, %v4287
    %v4291 = vor.u32 %v4289, %v4290
    %v4292 = vshll.u32 2475754826, %v4286
    %v4293 = vshrl.u32 2131351028, %v4287
    %v4294 = vor.u32 %v4292, %v4293
    %v4295 = vshll.u32 2131351028, %v4286
    %v4296 = vshrl.u32 2102212464, %v4287
    %v4297 = vor.u32 %v4295, %v4296
    %v4298 = vshll.u32 2102212464, %v4286
    %v4299 = vshrl.u32 920167782, %v4287
    %v4300 = vor.u32 %v4298, %v4299
    %v4301 = vshll.u32 920167782, %v4286
    %v4302 = vshrl.u32 1326507024, %v4287
    %v4303 = vor.u32 %v4301, %v4302
    %vm4304 = vcmp.lt.s32.totalorder %v4285, 1
    %vm4305 = vcmp.lt.s32.totalorder %v4285, 2
    %vm4306 = vcmp.lt.s32.totalorder %v4285, 3
    %vm4307 = vcmp.lt.s32.totalorder %v4285, 4
    %v4308 = vsel %vm4304, %v4288, %v4291
    %v4309 = vsel %vm4307, %v4297, 2102212464
    %v4310 = vsel %vm4306, %v4294, %v4309
    %v4311 = vsel %vm4305, %v4308, %v4310
    %v4312 = vsel %vm4304, %v4291, %v4294
    %v4313 = vsel %vm4307, %v4300, 920167782
    %v4314 = vsel %vm4306, %v4297, %v4313
    %v4315 = vsel %vm4305, %v4312, %v4314
    %v4316 = vsel %vm4304, %v4294, %v4297
    %v4317 = vsel %vm4307, %v4303, 1326507024
    %v4318 = vsel %vm4306, %v4300, %v4317
    %v4319 = vsel %vm4305, %v4316, %v4318
    %v4320 = vshll.u32 %v4280, 8
    %v4321 = vmul.u32.u64.compose %v4320, %v4319
    %v4322 = vextract.low.u32 %v4321
    %v4323 = vextract.high.u32 %v4321
    %v4324 = vmul.u32.u64.compose %v4320, %v4315
    %v4325 = vextract.low.u32 %v4324
    %v4326 = vextract.high.u32 %v4324
    %v4327 = vmul.u32 %v4320, %v4311
    %v4328 = vadd.s32 %v4323, %v4325
    %vm4329 = vc.u32 %v4323, %v4325
    %v4330 = vadd.s32 %v4326, 1
    %v4331 = vsel %vm4329, %v4330, %v4326
    %v4332 = vadd.s32 %v4327, %v4331
    %v4333 = vadd.s32 %v4332, 536870912
    %v4334 = vshrl.u32 %v4333, 30
    %v4335 = vshll.u32 %v4334, 30
    %v4336 = vsub.s32 %v4332, %v4335
    %vm4337 = vcmp.lt.s32.totalorder %v4336, 0
    %v4338 = vsub.s32 0, %v4336
    %v4339 = vsel %vm4337, %v4338, %v4336
    %v4340 = vclz %v4339
    %v4341 = vsub.s32 %v4340, 2
    %vm4342 = vcmp.gt.s32.totalorder 0, %v4341
    %v4343 = vsel %vm4342, 0, %v4341
    %v4344 = vsub.s32 32, %v4343
    %v4345 = vshll.u32 %v4336, %v4343
    %v4346 = vshrl.u32 %v4328, %v4344
    %v4347 = vor.u32 %v4345, %v4346
    %v4348 = vsub.s32 4294967266, %v4343
    %v4349 = vadd.s32 %v4348, 127
    %v4350 = vshll.u32 %v4349, 23
    %v4351 = vor.u32 4788187, %v4350
    %v4352 = vand.u32 2147483647, %v4351
    %v4354 = vcvt.s32.f32 %v4347
    %v4355 = vmul.f32 %v4354, %v4352
    %v4356 = vxor.u32 %v4355, 2147483648
    %v4357 = vsel %vm4274, %v4356, %v4355
    %v4358 = vsub.s32 4, %v4334
    %v4359 = vsel %vm4274, %v4358, %v4334
    %v4360 = vsel %vm4273, %v205, %v4357
    %v4361 = vsel %vm4273, 0, %v4359
    %v4362 = vcosq.f32.pop %v4360
    %v4363 = vsinq.f32.pop %v4360
    %vm4364 = vweird.f32 %v205
    %v4365 = vadd.s32 %v4361, 3
    %v4366 = vand.u32 %v4365, 3
    %vm4367 = vcmp.lt.s32.totalorder %v4366, 2
    %vm4368 = vcmp.eq.s32.totalorder %v4366, 0
    %v4369 = vxor.u32 %v4363, 2147483648
    %v4370 = vsel %vm4368, %v4362, %v4369
    %vm4371 = vcmp.eq.s32.totalorder %v4366, 2
    %v4372 = vxor.u32 %v4362, 2147483648
    %v4373 = vsel %vm4371, %v4372, %v4363
    %v4374 = vsel %vm4367, %v4370, %v4373
    %v4375 = vsel %vm4364, nan, %v4374
    %v4376 = vand.u32 2147483647, %v206
    %vm4377 = vcmp.le.f32.partialorder %v4376, 0.7853982
    %vm4378 = vcmp.lt.s32.totalorder %v206, 0
    %v4379 = vand.u32 %v206, 2139095040
    %v4380 = vshrl.u32 %v4379, 23
    %v4381 = vsub.s32 %v4380, 127
    %v4382 = vand.u32 2147483647, %v206
    %v4383 = vand.u32 %v4382, 8388607
    %v4384 = vor.u32 %v4383, 8388608
    %v4385 = vsub.s32 0, %v4384
    %v4386 = vadd.s32 %v4381, 1
    %vm4387 = vcmp.gt.s32.totalorder %v4386, 0
    %v4388 = vsel %vm4387, %v4386, 0
    %v4389 = vshrl.u32 %v4388, 5
    %v4390 = vand.u32 %v4388, 31
    %v4391 = vsub.s32 32, %v4390
    %v4392 = vshrl.u32 683565275, %v4391
    %v4393 = vshll.u32 683565275, %v4390
    %v4394 = vshrl.u32 2475754826, %v4391
    %v4395 = vor.u32 %v4393, %v4394
    %v4396 = vshll.u32 2475754826, %v4390
    %v4397 = vshrl.u32 2131351028, %v4391
    %v4398 = vor.u32 %v4396, %v4397
    %v4399 = vshll.u32 2131351028, %v4390
    %v4400 = vshrl.u32 2102212464, %v4391
    %v4401 = vor.u32 %v4399, %v4400
    %v4402 = vshll.u32 2102212464, %v4390
    %v4403 = vshrl.u32 920167782, %v4391
    %v4404 = vor.u32 %v4402, %v4403
    %v4405 = vshll.u32 920167782, %v4390
    %v4406 = vshrl.u32 1326507024, %v4391
    %v4407 = vor.u32 %v4405, %v4406
    %vm4408 = vcmp.lt.s32.totalorder %v4389, 1
    %vm4409 = vcmp.lt.s32.totalorder %v4389, 2
    %vm4410 = vcmp.lt.s32.totalorder %v4389, 3
    %vm4411 = vcmp.lt.s32.totalorder %v4389, 4
    %v4412 = vsel %vm4408, %v4392, %v4395
    %v4413 = vsel %vm4411, %v4401, 2102212464
    %v4414 = vsel %vm4410, %v4398, %v4413
    %v4415 = vsel %vm4409, %v4412, %v4414
    %v4416 = vsel %vm4408, %v4395, %v4398
    %v4417 = vsel %vm4411, %v4404, 920167782
    %v4418 = vsel %vm4410, %v4401, %v4417
    %v4419 = vsel %vm4409, %v4416, %v4418
    %v4420 = vsel %vm4408, %v4398, %v4401
    %v4421 = vsel %vm4411, %v4407, 1326507024
    %v4422 = vsel %vm4410, %v4404, %v4421
    %v4423 = vsel %vm4409, %v4420, %v4422
    %v4424 = vshll.u32 %v4384, 8
    %v4425 = vmul.u32.u64.compose %v4424, %v4423
    %v4426 = vextract.low.u32 %v4425
    %v4427 = vextract.high.u32 %v4425
    %v4428 = vmul.u32.u64.compose %v4424, %v4419
    %v4429 = vextract.low.u32 %v4428
    %v4430 = vextract.high.u32 %v4428
    %v4431 = vmul.u32 %v4424, %v4415
    %v4432 = vadd.s32 %v4427, %v4429
    %vm4433 = vc.u32 %v4427, %v4429
    %v4434 = vadd.s32 %v4430, 1
    %v4435 = vsel %vm4433, %v4434, %v4430
    %v4436 = vadd.s32 %v4431, %v4435
    %v4437 = vadd.s32 %v4436, 536870912
    %v4438 = vshrl.u32 %v4437, 30
    %v4439 = vshll.u32 %v4438, 30
    %v4440 = vsub.s32 %v4436, %v4439
    %vm4441 = vcmp.lt.s32.totalorder %v4440, 0
    %v4442 = vsub.s32 0, %v4440
    %v4443 = vsel %vm4441, %v4442, %v4440
    %v4444 = vclz %v4443
    %v4445 = vsub.s32 %v4444, 2
    %vm4446 = vcmp.gt.s32.totalorder 0, %v4445
    %v4447 = vsel %vm4446, 0, %v4445
    %v4448 = vsub.s32 32, %v4447
    %v4449 = vshll.u32 %v4440, %v4447
    %v4450 = vshrl.u32 %v4432, %v4448
    %v4451 = vor.u32 %v4449, %v4450
    %v4452 = vsub.s32 4294967266, %v4447
    %v4453 = vadd.s32 %v4452, 127
    %v4454 = vshll.u32 %v4453, 23
    %v4455 = vor.u32 4788187, %v4454
    %v4456 = vand.u32 2147483647, %v4455
    %v4458 = vcvt.s32.f32 %v4451
    %v4459 = vmul.f32 %v4458, %v4456
    %v4460 = vxor.u32 %v4459, 2147483648
    %v4461 = vsel %vm4378, %v4460, %v4459
    %v4462 = vsub.s32 4, %v4438
    %v4463 = vsel %vm4378, %v4462, %v4438
    %v4464 = vsel %vm4377, %v206, %v4461
    %v4465 = vsel %vm4377, 0, %v4463
    %v4466 = vcosq.f32.pop %v4464
    %v4467 = vsinq.f32.pop %v4464
    %vm4468 = vweird.f32 %v206
    %v4469 = vadd.s32 %v4465, 3
    %v4470 = vand.u32 %v4469, 3
    %vm4471 = vcmp.lt.s32.totalorder %v4470, 2
    %vm4472 = vcmp.eq.s32.totalorder %v4470, 0
    %v4473 = vxor.u32 %v4467, 2147483648
    %v4474 = vsel %vm4472, %v4466, %v4473
    %vm4475 = vcmp.eq.s32.totalorder %v4470, 2
    %v4476 = vxor.u32 %v4466, 2147483648
    %v4477 = vsel %vm4475, %v4476, %v4467
    %v4478 = vsel %vm4471, %v4474, %v4477
    %v4479 = vsel %vm4468, nan, %v4478
    %v4480 = vand.u32 2147483647, %v207
    %vm4481 = vcmp.le.f32.partialorder %v4480, 0.7853982
    %vm4482 = vcmp.lt.s32.totalorder %v207, 0
    %v4483 = vand.u32 %v207, 2139095040
    %v4484 = vshrl.u32 %v4483, 23
    %v4485 = vsub.s32 %v4484, 127
    %v4486 = vand.u32 2147483647, %v207
    %v4487 = vand.u32 %v4486, 8388607
    %v4488 = vor.u32 %v4487, 8388608
    %v4489 = vsub.s32 0, %v4488
    %v4490 = vadd.s32 %v4485, 1
    %vm4491 = vcmp.gt.s32.totalorder %v4490, 0
    %v4492 = vsel %vm4491, %v4490, 0
    %v4493 = vshrl.u32 %v4492, 5
    %v4494 = vand.u32 %v4492, 31
    %v4495 = vsub.s32 32, %v4494
    %v4496 = vshrl.u32 683565275, %v4495
    %v4497 = vshll.u32 683565275, %v4494
    %v4498 = vshrl.u32 2475754826, %v4495
    %v4499 = vor.u32 %v4497, %v4498
    %v4500 = vshll.u32 2475754826, %v4494
    %v4501 = vshrl.u32 2131351028, %v4495
    %v4502 = vor.u32 %v4500, %v4501
    %v4503 = vshll.u32 2131351028, %v4494
    %v4504 = vshrl.u32 2102212464, %v4495
    %v4505 = vor.u32 %v4503, %v4504
    %v4506 = vshll.u32 2102212464, %v4494
    %v4507 = vshrl.u32 920167782, %v4495
    %v4508 = vor.u32 %v4506, %v4507
    %v4509 = vshll.u32 920167782, %v4494
    %v4510 = vshrl.u32 1326507024, %v4495
    %v4511 = vor.u32 %v4509, %v4510
    %vm4512 = vcmp.lt.s32.totalorder %v4493, 1
    %vm4513 = vcmp.lt.s32.totalorder %v4493, 2
    %vm4514 = vcmp.lt.s32.totalorder %v4493, 3
    %vm4515 = vcmp.lt.s32.totalorder %v4493, 4
    %v4516 = vsel %vm4512, %v4496, %v4499
    %v4517 = vsel %vm4515, %v4505, 2102212464
    %v4518 = vsel %vm4514, %v4502, %v4517
    %v4519 = vsel %vm4513, %v4516, %v4518
    %v4520 = vsel %vm4512, %v4499, %v4502
    %v4521 = vsel %vm4515, %v4508, 920167782
    %v4522 = vsel %vm4514, %v4505, %v4521
    %v4523 = vsel %vm4513, %v4520, %v4522
    %v4524 = vsel %vm4512, %v4502, %v4505
    %v4525 = vsel %vm4515, %v4511, 1326507024
    %v4526 = vsel %vm4514, %v4508, %v4525
    %v4527 = vsel %vm4513, %v4524, %v4526
    %v4528 = vshll.u32 %v4488, 8
    %v4529 = vmul.u32.u64.compose %v4528, %v4527
    %v4530 = vextract.low.u32 %v4529
    %v4531 = vextract.high.u32 %v4529
    %v4532 = vmul.u32.u64.compose %v4528, %v4523
    %v4533 = vextract.low.u32 %v4532
    %v4534 = vextract.high.u32 %v4532
    %v4535 = vmul.u32 %v4528, %v4519
    %v4536 = vadd.s32 %v4531, %v4533
    %vm4537 = vc.u32 %v4531, %v4533
    %v4538 = vadd.s32 %v4534, 1
    %v4539 = vsel %vm4537, %v4538, %v4534
    %v4540 = vadd.s32 %v4535, %v4539
    %v4541 = vadd.s32 %v4540, 536870912
    %v4542 = vshrl.u32 %v4541, 30
    %v4543 = vshll.u32 %v4542, 30
    %v4544 = vsub.s32 %v4540, %v4543
    %vm4545 = vcmp.lt.s32.totalorder %v4544, 0
    %v4546 = vsub.s32 0, %v4544
    %v4547 = vsel %vm4545, %v4546, %v4544
    %v4548 = vclz %v4547
    %v4549 = vsub.s32 %v4548, 2
    %vm4550 = vcmp.gt.s32.totalorder 0, %v4549
    %v4551 = vsel %vm4550, 0, %v4549
    %v4552 = vsub.s32 32, %v4551
    %v4553 = vshll.u32 %v4544, %v4551
    %v4554 = vshrl.u32 %v4536, %v4552
    %v4555 = vor.u32 %v4553, %v4554
    %v4556 = vsub.s32 4294967266, %v4551
    %v4557 = vadd.s32 %v4556, 127
    %v4558 = vshll.u32 %v4557, 23
    %v4559 = vor.u32 4788187, %v4558
    %v4560 = vand.u32 2147483647, %v4559
    %v4562 = vcvt.s32.f32 %v4555
    %v4563 = vmul.f32 %v4562, %v4560
    %v4564 = vxor.u32 %v4563, 2147483648
    %v4565 = vsel %vm4482, %v4564, %v4563
    %v4566 = vsub.s32 4, %v4542
    %v4567 = vsel %vm4482, %v4566, %v4542
    %v4568 = vsel %vm4481, %v207, %v4565
    %v4569 = vsel %vm4481, 0, %v4567
    %v4570 = vcosq.f32.pop %v4568
    %v4571 = vsinq.f32.pop %v4568
    %vm4572 = vweird.f32 %v207
    %v4573 = vadd.s32 %v4569, 3
    %v4574 = vand.u32 %v4573, 3
    %vm4575 = vcmp.lt.s32.totalorder %v4574, 2
    %vm4576 = vcmp.eq.s32.totalorder %v4574, 0
    %v4577 = vxor.u32 %v4571, 2147483648
    %v4578 = vsel %vm4576, %v4570, %v4577
    %vm4579 = vcmp.eq.s32.totalorder %v4574, 2
    %v4580 = vxor.u32 %v4570, 2147483648
    %v4581 = vsel %vm4579, %v4580, %v4571
    %v4582 = vsel %vm4575, %v4578, %v4581
    %v4583 = vsel %vm4572, nan, %v4582
    %v4584 = vand.u32 2147483647, %v208
    %vm4585 = vcmp.le.f32.partialorder %v4584, 0.7853982
    %vm4586 = vcmp.lt.s32.totalorder %v208, 0
    %v4587 = vand.u32 %v208, 2139095040
    %v4588 = vshrl.u32 %v4587, 23
    %v4589 = vsub.s32 %v4588, 127
    %v4590 = vand.u32 2147483647, %v208
    %v4591 = vand.u32 %v4590, 8388607
    %v4592 = vor.u32 %v4591, 8388608
    %v4593 = vsub.s32 0, %v4592
    %v4594 = vadd.s32 %v4589, 1
    %vm4595 = vcmp.gt.s32.totalorder %v4594, 0
    %v4596 = vsel %vm4595, %v4594, 0
    %v4597 = vshrl.u32 %v4596, 5
    %v4598 = vand.u32 %v4596, 31
    %v4599 = vsub.s32 32, %v4598
    %v4600 = vshrl.u32 683565275, %v4599
    %v4601 = vshll.u32 683565275, %v4598
    %v4602 = vshrl.u32 2475754826, %v4599
    %v4603 = vor.u32 %v4601, %v4602
    %v4604 = vshll.u32 2475754826, %v4598
    %v4605 = vshrl.u32 2131351028, %v4599
    %v4606 = vor.u32 %v4604, %v4605
    %v4607 = vshll.u32 2131351028, %v4598
    %v4608 = vshrl.u32 2102212464, %v4599
    %v4609 = vor.u32 %v4607, %v4608
    %v4610 = vshll.u32 2102212464, %v4598
    %v4611 = vshrl.u32 920167782, %v4599
    %v4612 = vor.u32 %v4610, %v4611
    %v4613 = vshll.u32 920167782, %v4598
    %v4614 = vshrl.u32 1326507024, %v4599
    %v4615 = vor.u32 %v4613, %v4614
    %vm4616 = vcmp.lt.s32.totalorder %v4597, 1
    %vm4617 = vcmp.lt.s32.totalorder %v4597, 2
    %vm4618 = vcmp.lt.s32.totalorder %v4597, 3
    %vm4619 = vcmp.lt.s32.totalorder %v4597, 4
    %v4620 = vsel %vm4616, %v4600, %v4603
    %v4621 = vsel %vm4619, %v4609, 2102212464
    %v4622 = vsel %vm4618, %v4606, %v4621
    %v4623 = vsel %vm4617, %v4620, %v4622
    %v4624 = vsel %vm4616, %v4603, %v4606
    %v4625 = vsel %vm4619, %v4612, 920167782
    %v4626 = vsel %vm4618, %v4609, %v4625
    %v4627 = vsel %vm4617, %v4624, %v4626
    %v4628 = vsel %vm4616, %v4606, %v4609
    %v4629 = vsel %vm4619, %v4615, 1326507024
    %v4630 = vsel %vm4618, %v4612, %v4629
    %v4631 = vsel %vm4617, %v4628, %v4630
    %v4632 = vshll.u32 %v4592, 8
    %v4633 = vmul.u32.u64.compose %v4632, %v4631
    %v4634 = vextract.low.u32 %v4633
    %v4635 = vextract.high.u32 %v4633
    %v4636 = vmul.u32.u64.compose %v4632, %v4627
    %v4637 = vextract.low.u32 %v4636
    %v4638 = vextract.high.u32 %v4636
    %v4639 = vmul.u32 %v4632, %v4623
    %v4640 = vadd.s32 %v4635, %v4637
    %vm4641 = vc.u32 %v4635, %v4637
    %v4642 = vadd.s32 %v4638, 1
    %v4643 = vsel %vm4641, %v4642, %v4638
    %v4644 = vadd.s32 %v4639, %v4643
    %v4645 = vadd.s32 %v4644, 536870912
    %v4646 = vshrl.u32 %v4645, 30
    %v4647 = vshll.u32 %v4646, 30
    %v4648 = vsub.s32 %v4644, %v4647
    %vm4649 = vcmp.lt.s32.totalorder %v4648, 0
    %v4650 = vsub.s32 0, %v4648
    %v4651 = vsel %vm4649, %v4650, %v4648
    %v4652 = vclz %v4651
    %v4653 = vsub.s32 %v4652, 2
    %vm4654 = vcmp.gt.s32.totalorder 0, %v4653
    %v4655 = vsel %vm4654, 0, %v4653
    %v4656 = vsub.s32 32, %v4655
    %v4657 = vshll.u32 %v4648, %v4655
    %v4658 = vshrl.u32 %v4640, %v4656
    %v4659 = vor.u32 %v4657, %v4658
    %v4660 = vsub.s32 4294967266, %v4655
    %v4661 = vadd.s32 %v4660, 127
    %v4662 = vshll.u32 %v4661, 23
    %v4663 = vor.u32 4788187, %v4662
    %v4664 = vand.u32 2147483647, %v4663
    %v4666 = vcvt.s32.f32 %v4659
    %v4667 = vmul.f32 %v4666, %v4664
    %v4668 = vxor.u32 %v4667, 2147483648
    %v4669 = vsel %vm4586, %v4668, %v4667
    %v4670 = vsub.s32 4, %v4646
    %v4671 = vsel %vm4586, %v4670, %v4646
    %v4672 = vsel %vm4585, %v208, %v4669
    %v4673 = vsel %vm4585, 0, %v4671
    %v4674 = vcosq.f32.pop %v4672
    %v4675 = vsinq.f32.pop %v4672
    %vm4676 = vweird.f32 %v208
    %v4677 = vadd.s32 %v4673, 3
    %v4678 = vand.u32 %v4677, 3
    %vm4679 = vcmp.lt.s32.totalorder %v4678, 2
    %vm4680 = vcmp.eq.s32.totalorder %v4678, 0
    %v4681 = vxor.u32 %v4675, 2147483648
    %v4682 = vsel %vm4680, %v4674, %v4681
    %vm4683 = vcmp.eq.s32.totalorder %v4678, 2
    %v4684 = vxor.u32 %v4674, 2147483648
    %v4685 = vsel %vm4683, %v4684, %v4675
    %v4686 = vsel %vm4679, %v4682, %v4685
    %v4687 = vsel %vm4676, nan, %v4686
    %v4688 = vand.u32 2147483647, %v209
    %vm4689 = vcmp.le.f32.partialorder %v4688, 0.7853982
    %vm4690 = vcmp.lt.s32.totalorder %v209, 0
    %v4691 = vand.u32 %v209, 2139095040
    %v4692 = vshrl.u32 %v4691, 23
    %v4693 = vsub.s32 %v4692, 127
    %v4694 = vand.u32 2147483647, %v209
    %v4695 = vand.u32 %v4694, 8388607
    %v4696 = vor.u32 %v4695, 8388608
    %v4697 = vsub.s32 0, %v4696
    %v4698 = vadd.s32 %v4693, 1
    %vm4699 = vcmp.gt.s32.totalorder %v4698, 0
    %v4700 = vsel %vm4699, %v4698, 0
    %v4701 = vshrl.u32 %v4700, 5
    %v4702 = vand.u32 %v4700, 31
    %v4703 = vsub.s32 32, %v4702
    %v4704 = vshrl.u32 683565275, %v4703
    %v4705 = vshll.u32 683565275, %v4702
    %v4706 = vshrl.u32 2475754826, %v4703
    %v4707 = vor.u32 %v4705, %v4706
    %v4708 = vshll.u32 2475754826, %v4702
    %v4709 = vshrl.u32 2131351028, %v4703
    %v4710 = vor.u32 %v4708, %v4709
    %v4711 = vshll.u32 2131351028, %v4702
    %v4712 = vshrl.u32 2102212464, %v4703
    %v4713 = vor.u32 %v4711, %v4712
    %v4714 = vshll.u32 2102212464, %v4702
    %v4715 = vshrl.u32 920167782, %v4703
    %v4716 = vor.u32 %v4714, %v4715
    %v4717 = vshll.u32 920167782, %v4702
    %v4718 = vshrl.u32 1326507024, %v4703
    %v4719 = vor.u32 %v4717, %v4718
    %vm4720 = vcmp.lt.s32.totalorder %v4701, 1
    %vm4721 = vcmp.lt.s32.totalorder %v4701, 2
    %vm4722 = vcmp.lt.s32.totalorder %v4701, 3
    %vm4723 = vcmp.lt.s32.totalorder %v4701, 4
    %v4724 = vsel %vm4720, %v4704, %v4707
    %v4725 = vsel %vm4723, %v4713, 2102212464
    %v4726 = vsel %vm4722, %v4710, %v4725
    %v4727 = vsel %vm4721, %v4724, %v4726
    %v4728 = vsel %vm4720, %v4707, %v4710
    %v4729 = vsel %vm4723, %v4716, 920167782
    %v4730 = vsel %vm4722, %v4713, %v4729
    %v4731 = vsel %vm4721, %v4728, %v4730
    %v4732 = vsel %vm4720, %v4710, %v4713
    %v4733 = vsel %vm4723, %v4719, 1326507024
    %v4734 = vsel %vm4722, %v4716, %v4733
    %v4735 = vsel %vm4721, %v4732, %v4734
    %v4736 = vshll.u32 %v4696, 8
    %v4737 = vmul.u32.u64.compose %v4736, %v4735
    %v4738 = vextract.low.u32 %v4737
    %v4739 = vextract.high.u32 %v4737
    %v4740 = vmul.u32.u64.compose %v4736, %v4731
    %v4741 = vextract.low.u32 %v4740
    %v4742 = vextract.high.u32 %v4740
    %v4743 = vmul.u32 %v4736, %v4727
    %v4744 = vadd.s32 %v4739, %v4741
    %vm4745 = vc.u32 %v4739, %v4741
    %v4746 = vadd.s32 %v4742, 1
    %v4747 = vsel %vm4745, %v4746, %v4742
    %v4748 = vadd.s32 %v4743, %v4747
    %v4749 = vadd.s32 %v4748, 536870912
    %v4750 = vshrl.u32 %v4749, 30
    %v4751 = vshll.u32 %v4750, 30
    %v4752 = vsub.s32 %v4748, %v4751
    %vm4753 = vcmp.lt.s32.totalorder %v4752, 0
    %v4754 = vsub.s32 0, %v4752
    %v4755 = vsel %vm4753, %v4754, %v4752
    %v4756 = vclz %v4755
    %v4757 = vsub.s32 %v4756, 2
    %vm4758 = vcmp.gt.s32.totalorder 0, %v4757
    %v4759 = vsel %vm4758, 0, %v4757
    %v4760 = vsub.s32 32, %v4759
    %v4761 = vshll.u32 %v4752, %v4759
    %v4762 = vshrl.u32 %v4744, %v4760
    %v4763 = vor.u32 %v4761, %v4762
    %v4764 = vsub.s32 4294967266, %v4759
    %v4765 = vadd.s32 %v4764, 127
    %v4766 = vshll.u32 %v4765, 23
    %v4767 = vor.u32 4788187, %v4766
    %v4768 = vand.u32 2147483647, %v4767
    %v4770 = vcvt.s32.f32 %v4763
    %v4771 = vmul.f32 %v4770, %v4768
    %v4772 = vxor.u32 %v4771, 2147483648
    %v4773 = vsel %vm4690, %v4772, %v4771
    %v4774 = vsub.s32 4, %v4750
    %v4775 = vsel %vm4690, %v4774, %v4750
    %v4776 = vsel %vm4689, %v209, %v4773
    %v4777 = vsel %vm4689, 0, %v4775
    %v4778 = vcosq.f32.pop %v4776
    %v4779 = vsinq.f32.pop %v4776
    %vm4780 = vweird.f32 %v209
    %v4781 = vadd.s32 %v4777, 3
    %v4782 = vand.u32 %v4781, 3
    %vm4783 = vcmp.lt.s32.totalorder %v4782, 2
    %vm4784 = vcmp.eq.s32.totalorder %v4782, 0
    %v4785 = vxor.u32 %v4779, 2147483648
    %v4786 = vsel %vm4784, %v4778, %v4785
    %vm4787 = vcmp.eq.s32.totalorder %v4782, 2
    %v4788 = vxor.u32 %v4778, 2147483648
    %v4789 = vsel %vm4787, %v4788, %v4779
    %v4790 = vsel %vm4783, %v4786, %v4789
    %v4791 = vsel %vm4780, nan, %v4790
    %v4792 = vand.u32 2147483647, %v210
    %vm4793 = vcmp.le.f32.partialorder %v4792, 0.7853982
    %vm4794 = vcmp.lt.s32.totalorder %v210, 0
    %v4795 = vand.u32 %v210, 2139095040
    %v4796 = vshrl.u32 %v4795, 23
    %v4797 = vsub.s32 %v4796, 127
    %v4798 = vand.u32 2147483647, %v210
    %v4799 = vand.u32 %v4798, 8388607
    %v4800 = vor.u32 %v4799, 8388608
    %v4801 = vsub.s32 0, %v4800
    %v4802 = vadd.s32 %v4797, 1
    %vm4803 = vcmp.gt.s32.totalorder %v4802, 0
    %v4804 = vsel %vm4803, %v4802, 0
    %v4805 = vshrl.u32 %v4804, 5
    %v4806 = vand.u32 %v4804, 31
    %v4807 = vsub.s32 32, %v4806
    %v4808 = vshrl.u32 683565275, %v4807
    %v4809 = vshll.u32 683565275, %v4806
    %v4810 = vshrl.u32 2475754826, %v4807
    %v4811 = vor.u32 %v4809, %v4810
    %v4812 = vshll.u32 2475754826, %v4806
    %v4813 = vshrl.u32 2131351028, %v4807
    %v4814 = vor.u32 %v4812, %v4813
    %v4815 = vshll.u32 2131351028, %v4806
    %v4816 = vshrl.u32 2102212464, %v4807
    %v4817 = vor.u32 %v4815, %v4816
    %v4818 = vshll.u32 2102212464, %v4806
    %v4819 = vshrl.u32 920167782, %v4807
    %v4820 = vor.u32 %v4818, %v4819
    %v4821 = vshll.u32 920167782, %v4806
    %v4822 = vshrl.u32 1326507024, %v4807
    %v4823 = vor.u32 %v4821, %v4822
    %vm4824 = vcmp.lt.s32.totalorder %v4805, 1
    %vm4825 = vcmp.lt.s32.totalorder %v4805, 2
    %vm4826 = vcmp.lt.s32.totalorder %v4805, 3
    %vm4827 = vcmp.lt.s32.totalorder %v4805, 4
    %v4828 = vsel %vm4824, %v4808, %v4811
    %v4829 = vsel %vm4827, %v4817, 2102212464
    %v4830 = vsel %vm4826, %v4814, %v4829
    %v4831 = vsel %vm4825, %v4828, %v4830
    %v4832 = vsel %vm4824, %v4811, %v4814
    %v4833 = vsel %vm4827, %v4820, 920167782
    %v4834 = vsel %vm4826, %v4817, %v4833
    %v4835 = vsel %vm4825, %v4832, %v4834
    %v4836 = vsel %vm4824, %v4814, %v4817
    %v4837 = vsel %vm4827, %v4823, 1326507024
    %v4838 = vsel %vm4826, %v4820, %v4837
    %v4839 = vsel %vm4825, %v4836, %v4838
    %v4840 = vshll.u32 %v4800, 8
    %v4841 = vmul.u32.u64.compose %v4840, %v4839
    %v4842 = vextract.low.u32 %v4841
    %v4843 = vextract.high.u32 %v4841
    %v4844 = vmul.u32.u64.compose %v4840, %v4835
    %v4845 = vextract.low.u32 %v4844
    %v4846 = vextract.high.u32 %v4844
    %v4847 = vmul.u32 %v4840, %v4831
    %v4848 = vadd.s32 %v4843, %v4845
    %vm4849 = vc.u32 %v4843, %v4845
    %v4850 = vadd.s32 %v4846, 1
    %v4851 = vsel %vm4849, %v4850, %v4846
    %v4852 = vadd.s32 %v4847, %v4851
    %v4853 = vadd.s32 %v4852, 536870912
    %v4854 = vshrl.u32 %v4853, 30
    %v4855 = vshll.u32 %v4854, 30
    %v4856 = vsub.s32 %v4852, %v4855
    %vm4857 = vcmp.lt.s32.totalorder %v4856, 0
    %v4858 = vsub.s32 0, %v4856
    %v4859 = vsel %vm4857, %v4858, %v4856
    %v4860 = vclz %v4859
    %v4861 = vsub.s32 %v4860, 2
    %vm4862 = vcmp.gt.s32.totalorder 0, %v4861
    %v4863 = vsel %vm4862, 0, %v4861
    %v4864 = vsub.s32 32, %v4863
    %v4865 = vshll.u32 %v4856, %v4863
    %v4866 = vshrl.u32 %v4848, %v4864
    %v4867 = vor.u32 %v4865, %v4866
    %v4868 = vsub.s32 4294967266, %v4863
    %v4869 = vadd.s32 %v4868, 127
    %v4870 = vshll.u32 %v4869, 23
    %v4871 = vor.u32 4788187, %v4870
    %v4872 = vand.u32 2147483647, %v4871
    %v4874 = vcvt.s32.f32 %v4867
    %v4875 = vmul.f32 %v4874, %v4872
    %v4876 = vxor.u32 %v4875, 2147483648
    %v4877 = vsel %vm4794, %v4876, %v4875
    %v4878 = vsub.s32 4, %v4854
    %v4879 = vsel %vm4794, %v4878, %v4854
    %v4880 = vsel %vm4793, %v210, %v4877
    %v4881 = vsel %vm4793, 0, %v4879
    %v4882 = vcosq.f32.pop %v4880
    %v4883 = vsinq.f32.pop %v4880
    %vm4884 = vweird.f32 %v210
    %v4885 = vadd.s32 %v4881, 3
    %v4886 = vand.u32 %v4885, 3
    %vm4887 = vcmp.lt.s32.totalorder %v4886, 2
    %vm4888 = vcmp.eq.s32.totalorder %v4886, 0
    %v4889 = vxor.u32 %v4883, 2147483648
    %v4890 = vsel %vm4888, %v4882, %v4889
    %vm4891 = vcmp.eq.s32.totalorder %v4886, 2
    %v4892 = vxor.u32 %v4882, 2147483648
    %v4893 = vsel %vm4891, %v4892, %v4883
    %v4894 = vsel %vm4887, %v4890, %v4893
    %v4895 = vsel %vm4884, nan, %v4894
    %v4896 = vand.u32 2147483647, %v211
    %vm4897 = vcmp.le.f32.partialorder %v4896, 0.7853982
    %vm4898 = vcmp.lt.s32.totalorder %v211, 0
    %v4899 = vand.u32 %v211, 2139095040
    %v4900 = vshrl.u32 %v4899, 23
    %v4901 = vsub.s32 %v4900, 127
    %v4902 = vand.u32 2147483647, %v211
    %v4903 = vand.u32 %v4902, 8388607
    %v4904 = vor.u32 %v4903, 8388608
    %v4905 = vsub.s32 0, %v4904
    %v4906 = vadd.s32 %v4901, 1
    %vm4907 = vcmp.gt.s32.totalorder %v4906, 0
    %v4908 = vsel %vm4907, %v4906, 0
    %v4909 = vshrl.u32 %v4908, 5
    %v4910 = vand.u32 %v4908, 31
    %v4911 = vsub.s32 32, %v4910
    %v4912 = vshrl.u32 683565275, %v4911
    %v4913 = vshll.u32 683565275, %v4910
    %v4914 = vshrl.u32 2475754826, %v4911
    %v4915 = vor.u32 %v4913, %v4914
    %v4916 = vshll.u32 2475754826, %v4910
    %v4917 = vshrl.u32 2131351028, %v4911
    %v4918 = vor.u32 %v4916, %v4917
    %v4919 = vshll.u32 2131351028, %v4910
    %v4920 = vshrl.u32 2102212464, %v4911
    %v4921 = vor.u32 %v4919, %v4920
    %v4922 = vshll.u32 2102212464, %v4910
    %v4923 = vshrl.u32 920167782, %v4911
    %v4924 = vor.u32 %v4922, %v4923
    %v4925 = vshll.u32 920167782, %v4910
    %v4926 = vshrl.u32 1326507024, %v4911
    %v4927 = vor.u32 %v4925, %v4926
    %vm4928 = vcmp.lt.s32.totalorder %v4909, 1
    %vm4929 = vcmp.lt.s32.totalorder %v4909, 2
    %vm4930 = vcmp.lt.s32.totalorder %v4909, 3
    %vm4931 = vcmp.lt.s32.totalorder %v4909, 4
    %v4932 = vsel %vm4928, %v4912, %v4915
    %v4933 = vsel %vm4931, %v4921, 2102212464
    %v4934 = vsel %vm4930, %v4918, %v4933
    %v4935 = vsel %vm4929, %v4932, %v4934
    %v4936 = vsel %vm4928, %v4915, %v4918
    %v4937 = vsel %vm4931, %v4924, 920167782
    %v4938 = vsel %vm4930, %v4921, %v4937
    %v4939 = vsel %vm4929, %v4936, %v4938
    %v4940 = vsel %vm4928, %v4918, %v4921
    %v4941 = vsel %vm4931, %v4927, 1326507024
    %v4942 = vsel %vm4930, %v4924, %v4941
    %v4943 = vsel %vm4929, %v4940, %v4942
    %v4944 = vshll.u32 %v4904, 8
    %v4945 = vmul.u32.u64.compose %v4944, %v4943
    %v4946 = vextract.low.u32 %v4945
    %v4947 = vextract.high.u32 %v4945
    %v4948 = vmul.u32.u64.compose %v4944, %v4939
    %v4949 = vextract.low.u32 %v4948
    %v4950 = vextract.high.u32 %v4948
    %v4951 = vmul.u32 %v4944, %v4935
    %v4952 = vadd.s32 %v4947, %v4949
    %vm4953 = vc.u32 %v4947, %v4949
    %v4954 = vadd.s32 %v4950, 1
    %v4955 = vsel %vm4953, %v4954, %v4950
    %v4956 = vadd.s32 %v4951, %v4955
    %v4957 = vadd.s32 %v4956, 536870912
    %v4958 = vshrl.u32 %v4957, 30
    %v4959 = vshll.u32 %v4958, 30
    %v4960 = vsub.s32 %v4956, %v4959
    %vm4961 = vcmp.lt.s32.totalorder %v4960, 0
    %v4962 = vsub.s32 0, %v4960
    %v4963 = vsel %vm4961, %v4962, %v4960
    %v4964 = vclz %v4963
    %v4965 = vsub.s32 %v4964, 2
    %vm4966 = vcmp.gt.s32.totalorder 0, %v4965
    %v4967 = vsel %vm4966, 0, %v4965
    %v4968 = vsub.s32 32, %v4967
    %v4969 = vshll.u32 %v4960, %v4967
    %v4970 = vshrl.u32 %v4952, %v4968
    %v4971 = vor.u32 %v4969, %v4970
    %v4972 = vsub.s32 4294967266, %v4967
    %v4973 = vadd.s32 %v4972, 127
    %v4974 = vshll.u32 %v4973, 23
    %v4975 = vor.u32 4788187, %v4974
    %v4976 = vand.u32 2147483647, %v4975
    %v4978 = vcvt.s32.f32 %v4971
    %v4979 = vmul.f32 %v4978, %v4976
    %v4980 = vxor.u32 %v4979, 2147483648
    %v4981 = vsel %vm4898, %v4980, %v4979
    %v4982 = vsub.s32 4, %v4958
    %v4983 = vsel %vm4898, %v4982, %v4958
    %v4984 = vsel %vm4897, %v211, %v4981
    %v4985 = vsel %vm4897, 0, %v4983
    %v4986 = vcosq.f32.pop %v4984
    %v4987 = vsinq.f32.pop %v4984
    %vm4988 = vweird.f32 %v211
    %v4989 = vadd.s32 %v4985, 3
    %v4990 = vand.u32 %v4989, 3
    %vm4991 = vcmp.lt.s32.totalorder %v4990, 2
    %vm4992 = vcmp.eq.s32.totalorder %v4990, 0
    %v4993 = vxor.u32 %v4987, 2147483648
    %v4994 = vsel %vm4992, %v4986, %v4993
    %vm4995 = vcmp.eq.s32.totalorder %v4990, 2
    %v4996 = vxor.u32 %v4986, 2147483648
    %v4997 = vsel %vm4995, %v4996, %v4987
    %v4998 = vsel %vm4991, %v4994, %v4997
    %v4999 = vsel %vm4988, nan, %v4998
    %v5000 = vand.u32 2147483647, %v212
    %vm5001 = vcmp.le.f32.partialorder %v5000, 0.7853982
    %vm5002 = vcmp.lt.s32.totalorder %v212, 0
    %v5003 = vand.u32 %v212, 2139095040
    %v5004 = vshrl.u32 %v5003, 23
    %v5005 = vsub.s32 %v5004, 127
    %v5006 = vand.u32 2147483647, %v212
    %v5007 = vand.u32 %v5006, 8388607
    %v5008 = vor.u32 %v5007, 8388608
    %v5009 = vsub.s32 0, %v5008
    %v5010 = vadd.s32 %v5005, 1
    %vm5011 = vcmp.gt.s32.totalorder %v5010, 0
    %v5012 = vsel %vm5011, %v5010, 0
    %v5013 = vshrl.u32 %v5012, 5
    %v5014 = vand.u32 %v5012, 31
    %v5015 = vsub.s32 32, %v5014
    %v5016 = vshrl.u32 683565275, %v5015
    %v5017 = vshll.u32 683565275, %v5014
    %v5018 = vshrl.u32 2475754826, %v5015
    %v5019 = vor.u32 %v5017, %v5018
    %v5020 = vshll.u32 2475754826, %v5014
    %v5021 = vshrl.u32 2131351028, %v5015
    %v5022 = vor.u32 %v5020, %v5021
    %v5023 = vshll.u32 2131351028, %v5014
    %v5024 = vshrl.u32 2102212464, %v5015
    %v5025 = vor.u32 %v5023, %v5024
    %v5026 = vshll.u32 2102212464, %v5014
    %v5027 = vshrl.u32 920167782, %v5015
    %v5028 = vor.u32 %v5026, %v5027
    %v5029 = vshll.u32 920167782, %v5014
    %v5030 = vshrl.u32 1326507024, %v5015
    %v5031 = vor.u32 %v5029, %v5030
    %vm5032 = vcmp.lt.s32.totalorder %v5013, 1
    %vm5033 = vcmp.lt.s32.totalorder %v5013, 2
    %vm5034 = vcmp.lt.s32.totalorder %v5013, 3
    %vm5035 = vcmp.lt.s32.totalorder %v5013, 4
    %v5036 = vsel %vm5032, %v5016, %v5019
    %v5037 = vsel %vm5035, %v5025, 2102212464
    %v5038 = vsel %vm5034, %v5022, %v5037
    %v5039 = vsel %vm5033, %v5036, %v5038
    %v5040 = vsel %vm5032, %v5019, %v5022
    %v5041 = vsel %vm5035, %v5028, 920167782
    %v5042 = vsel %vm5034, %v5025, %v5041
    %v5043 = vsel %vm5033, %v5040, %v5042
    %v5044 = vsel %vm5032, %v5022, %v5025
    %v5045 = vsel %vm5035, %v5031, 1326507024
    %v5046 = vsel %vm5034, %v5028, %v5045
    %v5047 = vsel %vm5033, %v5044, %v5046
    %v5048 = vshll.u32 %v5008, 8
    %v5049 = vmul.u32.u64.compose %v5048, %v5047
    %v5050 = vextract.low.u32 %v5049
    %v5051 = vextract.high.u32 %v5049
    %v5052 = vmul.u32.u64.compose %v5048, %v5043
    %v5053 = vextract.low.u32 %v5052
    %v5054 = vextract.high.u32 %v5052
    %v5055 = vmul.u32 %v5048, %v5039
    %v5056 = vadd.s32 %v5051, %v5053
    %vm5057 = vc.u32 %v5051, %v5053
    %v5058 = vadd.s32 %v5054, 1
    %v5059 = vsel %vm5057, %v5058, %v5054
    %v5060 = vadd.s32 %v5055, %v5059
    %v5061 = vadd.s32 %v5060, 536870912
    %v5062 = vshrl.u32 %v5061, 30
    %v5063 = vshll.u32 %v5062, 30
    %v5064 = vsub.s32 %v5060, %v5063
    %vm5065 = vcmp.lt.s32.totalorder %v5064, 0
    %v5066 = vsub.s32 0, %v5064
    %v5067 = vsel %vm5065, %v5066, %v5064
    %v5068 = vclz %v5067
    %v5069 = vsub.s32 %v5068, 2
    %vm5070 = vcmp.gt.s32.totalorder 0, %v5069
    %v5071 = vsel %vm5070, 0, %v5069
    %v5072 = vsub.s32 32, %v5071
    %v5073 = vshll.u32 %v5064, %v5071
    %v5074 = vshrl.u32 %v5056, %v5072
    %v5075 = vor.u32 %v5073, %v5074
    %v5076 = vsub.s32 4294967266, %v5071
    %v5077 = vadd.s32 %v5076, 127
    %v5078 = vshll.u32 %v5077, 23
    %v5079 = vor.u32 4788187, %v5078
    %v5080 = vand.u32 2147483647, %v5079
    %v5082 = vcvt.s32.f32 %v5075
    %v5083 = vmul.f32 %v5082, %v5080
    %v5084 = vxor.u32 %v5083, 2147483648
    %v5085 = vsel %vm5002, %v5084, %v5083
    %v5086 = vsub.s32 4, %v5062
    %v5087 = vsel %vm5002, %v5086, %v5062
    %v5088 = vsel %vm5001, %v212, %v5085
    %v5089 = vsel %vm5001, 0, %v5087
    %v5090 = vcosq.f32.pop %v5088
    %v5091 = vsinq.f32.pop %v5088
    %vm5092 = vweird.f32 %v212
    %v5093 = vadd.s32 %v5089, 3
    %v5094 = vand.u32 %v5093, 3
    %vm5095 = vcmp.lt.s32.totalorder %v5094, 2
    %vm5096 = vcmp.eq.s32.totalorder %v5094, 0
    %v5097 = vxor.u32 %v5091, 2147483648
    %v5098 = vsel %vm5096, %v5090, %v5097
    %vm5099 = vcmp.eq.s32.totalorder %v5094, 2
    %v5100 = vxor.u32 %v5090, 2147483648
    %v5101 = vsel %vm5099, %v5100, %v5091
    %v5102 = vsel %vm5095, %v5098, %v5101
    %v5103 = vsel %vm5092, nan, %v5102
    %v5104 = vand.u32 2147483647, %v213
    %vm5105 = vcmp.le.f32.partialorder %v5104, 0.7853982
    %vm5106 = vcmp.lt.s32.totalorder %v213, 0
    %v5107 = vand.u32 %v213, 2139095040
    %v5108 = vshrl.u32 %v5107, 23
    %v5109 = vsub.s32 %v5108, 127
    %v5110 = vand.u32 2147483647, %v213
    %v5111 = vand.u32 %v5110, 8388607
    %v5112 = vor.u32 %v5111, 8388608
    %v5113 = vsub.s32 0, %v5112
    %v5114 = vadd.s32 %v5109, 1
    %vm5115 = vcmp.gt.s32.totalorder %v5114, 0
    %v5116 = vsel %vm5115, %v5114, 0
    %v5117 = vshrl.u32 %v5116, 5
    %v5118 = vand.u32 %v5116, 31
    %v5119 = vsub.s32 32, %v5118
    %v5120 = vshrl.u32 683565275, %v5119
    %v5121 = vshll.u32 683565275, %v5118
    %v5122 = vshrl.u32 2475754826, %v5119
    %v5123 = vor.u32 %v5121, %v5122
    %v5124 = vshll.u32 2475754826, %v5118
    %v5125 = vshrl.u32 2131351028, %v5119
    %v5126 = vor.u32 %v5124, %v5125
    %v5127 = vshll.u32 2131351028, %v5118
    %v5128 = vshrl.u32 2102212464, %v5119
    %v5129 = vor.u32 %v5127, %v5128
    %v5130 = vshll.u32 2102212464, %v5118
    %v5131 = vshrl.u32 920167782, %v5119
    %v5132 = vor.u32 %v5130, %v5131
    %v5133 = vshll.u32 920167782, %v5118
    %v5134 = vshrl.u32 1326507024, %v5119
    %v5135 = vor.u32 %v5133, %v5134
    %vm5136 = vcmp.lt.s32.totalorder %v5117, 1
    %vm5137 = vcmp.lt.s32.totalorder %v5117, 2
    %vm5138 = vcmp.lt.s32.totalorder %v5117, 3
    %vm5139 = vcmp.lt.s32.totalorder %v5117, 4
    %v5140 = vsel %vm5136, %v5120, %v5123
    %v5141 = vsel %vm5139, %v5129, 2102212464
    %v5142 = vsel %vm5138, %v5126, %v5141
    %v5143 = vsel %vm5137, %v5140, %v5142
    %v5144 = vsel %vm5136, %v5123, %v5126
    %v5145 = vsel %vm5139, %v5132, 920167782
    %v5146 = vsel %vm5138, %v5129, %v5145
    %v5147 = vsel %vm5137, %v5144, %v5146
    %v5148 = vsel %vm5136, %v5126, %v5129
    %v5149 = vsel %vm5139, %v5135, 1326507024
    %v5150 = vsel %vm5138, %v5132, %v5149
    %v5151 = vsel %vm5137, %v5148, %v5150
    %v5152 = vshll.u32 %v5112, 8
    %v5153 = vmul.u32.u64.compose %v5152, %v5151
    %v5154 = vextract.low.u32 %v5153
    %v5155 = vextract.high.u32 %v5153
    %v5156 = vmul.u32.u64.compose %v5152, %v5147
    %v5157 = vextract.low.u32 %v5156
    %v5158 = vextract.high.u32 %v5156
    %v5159 = vmul.u32 %v5152, %v5143
    %v5160 = vadd.s32 %v5155, %v5157
    %vm5161 = vc.u32 %v5155, %v5157
    %v5162 = vadd.s32 %v5158, 1
    %v5163 = vsel %vm5161, %v5162, %v5158
    %v5164 = vadd.s32 %v5159, %v5163
    %v5165 = vadd.s32 %v5164, 536870912
    %v5166 = vshrl.u32 %v5165, 30
    %v5167 = vshll.u32 %v5166, 30
    %v5168 = vsub.s32 %v5164, %v5167
    %vm5169 = vcmp.lt.s32.totalorder %v5168, 0
    %v5170 = vsub.s32 0, %v5168
    %v5171 = vsel %vm5169, %v5170, %v5168
    %v5172 = vclz %v5171
    %v5173 = vsub.s32 %v5172, 2
    %vm5174 = vcmp.gt.s32.totalorder 0, %v5173
    %v5175 = vsel %vm5174, 0, %v5173
    %v5176 = vsub.s32 32, %v5175
    %v5177 = vshll.u32 %v5168, %v5175
    %v5178 = vshrl.u32 %v5160, %v5176
    %v5179 = vor.u32 %v5177, %v5178
    %v5180 = vsub.s32 4294967266, %v5175
    %v5181 = vadd.s32 %v5180, 127
    %v5182 = vshll.u32 %v5181, 23
    %v5183 = vor.u32 4788187, %v5182
    %v5184 = vand.u32 2147483647, %v5183
    %v5186 = vcvt.s32.f32 %v5179
    %v5187 = vmul.f32 %v5186, %v5184
    %v5188 = vxor.u32 %v5187, 2147483648
    %v5189 = vsel %vm5106, %v5188, %v5187
    %v5190 = vsub.s32 4, %v5166
    %v5191 = vsel %vm5106, %v5190, %v5166
    %v5192 = vsel %vm5105, %v213, %v5189
    %v5193 = vsel %vm5105, 0, %v5191
    %v5194 = vcosq.f32.pop %v5192
    %v5195 = vsinq.f32.pop %v5192
    %vm5196 = vweird.f32 %v213
    %v5197 = vadd.s32 %v5193, 3
    %v5198 = vand.u32 %v5197, 3
    %vm5199 = vcmp.lt.s32.totalorder %v5198, 2
    %vm5200 = vcmp.eq.s32.totalorder %v5198, 0
    %v5201 = vxor.u32 %v5195, 2147483648
    %v5202 = vsel %vm5200, %v5194, %v5201
    %vm5203 = vcmp.eq.s32.totalorder %v5198, 2
    %v5204 = vxor.u32 %v5194, 2147483648
    %v5205 = vsel %vm5203, %v5204, %v5195
    %v5206 = vsel %vm5199, %v5202, %v5205
    %v5207 = vsel %vm5196, nan, %v5206
    %v5208 = vand.u32 2147483647, %v214
    %vm5209 = vcmp.le.f32.partialorder %v5208, 0.7853982
    %vm5210 = vcmp.lt.s32.totalorder %v214, 0
    %v5211 = vand.u32 %v214, 2139095040
    %v5212 = vshrl.u32 %v5211, 23
    %v5213 = vsub.s32 %v5212, 127
    %v5214 = vand.u32 2147483647, %v214
    %v5215 = vand.u32 %v5214, 8388607
    %v5216 = vor.u32 %v5215, 8388608
    %v5217 = vsub.s32 0, %v5216
    %v5218 = vadd.s32 %v5213, 1
    %vm5219 = vcmp.gt.s32.totalorder %v5218, 0
    %v5220 = vsel %vm5219, %v5218, 0
    %v5221 = vshrl.u32 %v5220, 5
    %v5222 = vand.u32 %v5220, 31
    %v5223 = vsub.s32 32, %v5222
    %v5224 = vshrl.u32 683565275, %v5223
    %v5225 = vshll.u32 683565275, %v5222
    %v5226 = vshrl.u32 2475754826, %v5223
    %v5227 = vor.u32 %v5225, %v5226
    %v5228 = vshll.u32 2475754826, %v5222
    %v5229 = vshrl.u32 2131351028, %v5223
    %v5230 = vor.u32 %v5228, %v5229
    %v5231 = vshll.u32 2131351028, %v5222
    %v5232 = vshrl.u32 2102212464, %v5223
    %v5233 = vor.u32 %v5231, %v5232
    %v5234 = vshll.u32 2102212464, %v5222
    %v5235 = vshrl.u32 920167782, %v5223
    %v5236 = vor.u32 %v5234, %v5235
    %v5237 = vshll.u32 920167782, %v5222
    %v5238 = vshrl.u32 1326507024, %v5223
    %v5239 = vor.u32 %v5237, %v5238
    %vm5240 = vcmp.lt.s32.totalorder %v5221, 1
    %vm5241 = vcmp.lt.s32.totalorder %v5221, 2
    %vm5242 = vcmp.lt.s32.totalorder %v5221, 3
    %vm5243 = vcmp.lt.s32.totalorder %v5221, 4
    %v5244 = vsel %vm5240, %v5224, %v5227
    %v5245 = vsel %vm5243, %v5233, 2102212464
    %v5246 = vsel %vm5242, %v5230, %v5245
    %v5247 = vsel %vm5241, %v5244, %v5246
    %v5248 = vsel %vm5240, %v5227, %v5230
    %v5249 = vsel %vm5243, %v5236, 920167782
    %v5250 = vsel %vm5242, %v5233, %v5249
    %v5251 = vsel %vm5241, %v5248, %v5250
    %v5252 = vsel %vm5240, %v5230, %v5233
    %v5253 = vsel %vm5243, %v5239, 1326507024
    %v5254 = vsel %vm5242, %v5236, %v5253
    %v5255 = vsel %vm5241, %v5252, %v5254
    %v5256 = vshll.u32 %v5216, 8
    %v5257 = vmul.u32.u64.compose %v5256, %v5255
    %v5258 = vextract.low.u32 %v5257
    %v5259 = vextract.high.u32 %v5257
    %v5260 = vmul.u32.u64.compose %v5256, %v5251
    %v5261 = vextract.low.u32 %v5260
    %v5262 = vextract.high.u32 %v5260
    %v5263 = vmul.u32 %v5256, %v5247
    %v5264 = vadd.s32 %v5259, %v5261
    %vm5265 = vc.u32 %v5259, %v5261
    %v5266 = vadd.s32 %v5262, 1
    %v5267 = vsel %vm5265, %v5266, %v5262
    %v5268 = vadd.s32 %v5263, %v5267
    %v5269 = vadd.s32 %v5268, 536870912
    %v5270 = vshrl.u32 %v5269, 30
    %v5271 = vshll.u32 %v5270, 30
    %v5272 = vsub.s32 %v5268, %v5271
    %vm5273 = vcmp.lt.s32.totalorder %v5272, 0
    %v5274 = vsub.s32 0, %v5272
    %v5275 = vsel %vm5273, %v5274, %v5272
    %v5276 = vclz %v5275
    %v5277 = vsub.s32 %v5276, 2
    %vm5278 = vcmp.gt.s32.totalorder 0, %v5277
    %v5279 = vsel %vm5278, 0, %v5277
    %v5280 = vsub.s32 32, %v5279
    %v5281 = vshll.u32 %v5272, %v5279
    %v5282 = vshrl.u32 %v5264, %v5280
    %v5283 = vor.u32 %v5281, %v5282
    %v5284 = vsub.s32 4294967266, %v5279
    %v5285 = vadd.s32 %v5284, 127
    %v5286 = vshll.u32 %v5285, 23
    %v5287 = vor.u32 4788187, %v5286
    %v5288 = vand.u32 2147483647, %v5287
    %v5290 = vcvt.s32.f32 %v5283
    %v5291 = vmul.f32 %v5290, %v5288
    %v5292 = vxor.u32 %v5291, 2147483648
    %v5293 = vsel %vm5210, %v5292, %v5291
    %v5294 = vsub.s32 4, %v5270
    %v5295 = vsel %vm5210, %v5294, %v5270
    %v5296 = vsel %vm5209, %v214, %v5293
    %v5297 = vsel %vm5209, 0, %v5295
    %v5298 = vcosq.f32.pop %v5296
    %v5299 = vsinq.f32.pop %v5296
    %vm5300 = vweird.f32 %v214
    %v5301 = vadd.s32 %v5297, 3
    %v5302 = vand.u32 %v5301, 3
    %vm5303 = vcmp.lt.s32.totalorder %v5302, 2
    %vm5304 = vcmp.eq.s32.totalorder %v5302, 0
    %v5305 = vxor.u32 %v5299, 2147483648
    %v5306 = vsel %vm5304, %v5298, %v5305
    %vm5307 = vcmp.eq.s32.totalorder %v5302, 2
    %v5308 = vxor.u32 %v5298, 2147483648
    %v5309 = vsel %vm5307, %v5308, %v5299
    %v5310 = vsel %vm5303, %v5306, %v5309
    %v5311 = vsel %vm5300, nan, %v5310
    %v5312 = vand.u32 2147483647, %v215
    %vm5313 = vcmp.le.f32.partialorder %v5312, 0.7853982
    %vm5314 = vcmp.lt.s32.totalorder %v215, 0
    %v5315 = vand.u32 %v215, 2139095040
    %v5316 = vshrl.u32 %v5315, 23
    %v5317 = vsub.s32 %v5316, 127
    %v5318 = vand.u32 2147483647, %v215
    %v5319 = vand.u32 %v5318, 8388607
    %v5320 = vor.u32 %v5319, 8388608
    %v5321 = vsub.s32 0, %v5320
    %v5322 = vadd.s32 %v5317, 1
    %vm5323 = vcmp.gt.s32.totalorder %v5322, 0
    %v5324 = vsel %vm5323, %v5322, 0
    %v5325 = vshrl.u32 %v5324, 5
    %v5326 = vand.u32 %v5324, 31
    %v5327 = vsub.s32 32, %v5326
    %v5328 = vshrl.u32 683565275, %v5327
    %v5329 = vshll.u32 683565275, %v5326
    %v5330 = vshrl.u32 2475754826, %v5327
    %v5331 = vor.u32 %v5329, %v5330
    %v5332 = vshll.u32 2475754826, %v5326
    %v5333 = vshrl.u32 2131351028, %v5327
    %v5334 = vor.u32 %v5332, %v5333
    %v5335 = vshll.u32 2131351028, %v5326
    %v5336 = vshrl.u32 2102212464, %v5327
    %v5337 = vor.u32 %v5335, %v5336
    %v5338 = vshll.u32 2102212464, %v5326
    %v5339 = vshrl.u32 920167782, %v5327
    %v5340 = vor.u32 %v5338, %v5339
    %v5341 = vshll.u32 920167782, %v5326
    %v5342 = vshrl.u32 1326507024, %v5327
    %v5343 = vor.u32 %v5341, %v5342
    %vm5344 = vcmp.lt.s32.totalorder %v5325, 1
    %vm5345 = vcmp.lt.s32.totalorder %v5325, 2
    %vm5346 = vcmp.lt.s32.totalorder %v5325, 3
    %vm5347 = vcmp.lt.s32.totalorder %v5325, 4
    %v5348 = vsel %vm5344, %v5328, %v5331
    %v5349 = vsel %vm5347, %v5337, 2102212464
    %v5350 = vsel %vm5346, %v5334, %v5349
    %v5351 = vsel %vm5345, %v5348, %v5350
    %v5352 = vsel %vm5344, %v5331, %v5334
    %v5353 = vsel %vm5347, %v5340, 920167782
    %v5354 = vsel %vm5346, %v5337, %v5353
    %v5355 = vsel %vm5345, %v5352, %v5354
    %v5356 = vsel %vm5344, %v5334, %v5337
    %v5357 = vsel %vm5347, %v5343, 1326507024
    %v5358 = vsel %vm5346, %v5340, %v5357
    %v5359 = vsel %vm5345, %v5356, %v5358
    %v5360 = vshll.u32 %v5320, 8
    %v5361 = vmul.u32.u64.compose %v5360, %v5359
    %v5362 = vextract.low.u32 %v5361
    %v5363 = vextract.high.u32 %v5361
    %v5364 = vmul.u32.u64.compose %v5360, %v5355
    %v5365 = vextract.low.u32 %v5364
    %v5366 = vextract.high.u32 %v5364
    %v5367 = vmul.u32 %v5360, %v5351
    %v5368 = vadd.s32 %v5363, %v5365
    %vm5369 = vc.u32 %v5363, %v5365
    %v5370 = vadd.s32 %v5366, 1
    %v5371 = vsel %vm5369, %v5370, %v5366
    %v5372 = vadd.s32 %v5367, %v5371
    %v5373 = vadd.s32 %v5372, 536870912
    %v5374 = vshrl.u32 %v5373, 30
    %v5375 = vshll.u32 %v5374, 30
    %v5376 = vsub.s32 %v5372, %v5375
    %vm5377 = vcmp.lt.s32.totalorder %v5376, 0
    %v5378 = vsub.s32 0, %v5376
    %v5379 = vsel %vm5377, %v5378, %v5376
    %v5380 = vclz %v5379
    %v5381 = vsub.s32 %v5380, 2
    %vm5382 = vcmp.gt.s32.totalorder 0, %v5381
    %v5383 = vsel %vm5382, 0, %v5381
    %v5384 = vsub.s32 32, %v5383
    %v5385 = vshll.u32 %v5376, %v5383
    %v5386 = vshrl.u32 %v5368, %v5384
    %v5387 = vor.u32 %v5385, %v5386
    %v5388 = vsub.s32 4294967266, %v5383
    %v5389 = vadd.s32 %v5388, 127
    %v5390 = vshll.u32 %v5389, 23
    %v5391 = vor.u32 4788187, %v5390
    %v5392 = vand.u32 2147483647, %v5391
    %v5394 = vcvt.s32.f32 %v5387
    %v5395 = vmul.f32 %v5394, %v5392
    %v5396 = vxor.u32 %v5395, 2147483648
    %v5397 = vsel %vm5314, %v5396, %v5395
    %v5398 = vsub.s32 4, %v5374
    %v5399 = vsel %vm5314, %v5398, %v5374
    %v5400 = vsel %vm5313, %v215, %v5397
    %v5401 = vsel %vm5313, 0, %v5399
    %v5402 = vcosq.f32.pop %v5400
    %v5403 = vsinq.f32.pop %v5400
    %vm5404 = vweird.f32 %v215
    %v5405 = vadd.s32 %v5401, 3
    %v5406 = vand.u32 %v5405, 3
    %vm5407 = vcmp.lt.s32.totalorder %v5406, 2
    %vm5408 = vcmp.eq.s32.totalorder %v5406, 0
    %v5409 = vxor.u32 %v5403, 2147483648
    %v5410 = vsel %vm5408, %v5402, %v5409
    %vm5411 = vcmp.eq.s32.totalorder %v5406, 2
    %v5412 = vxor.u32 %v5402, 2147483648
    %v5413 = vsel %vm5411, %v5412, %v5403
    %v5414 = vsel %vm5407, %v5410, %v5413
    %v5415 = vsel %vm5404, nan, %v5414
    %5416 = vst [vmem:[#allocation2 + $0x8] sm:$0xff] %v2919
    %5417 = vst [vmem:[#allocation2 + $0x18] sm:$0xff] %v3023
    %5418 = vst [vmem:[#allocation2 + $0x28] sm:$0xff] %v3127
    %5419 = vst [vmem:[#allocation2 + $0x38] sm:$0xff] %v3231
    %5420 = vst [vmem:[#allocation2 + $0x48] sm:$0xff] %v3335
    %5421 = vst [vmem:[#allocation2 + $0x58] sm:$0xff] %v3439
    %5422 = vst [vmem:[#allocation2 + $0x68] sm:$0xff] %v3543
    %5423 = vst [vmem:[#allocation2 + $0x78] sm:$0xff] %v3647
    %5424 = vst [vmem:[#allocation2 + $0x88] sm:$0xff] %v3751
    %5425 = vst [vmem:[#allocation2 + $0x98] sm:$0xff] %v3855
    %5426 = vst [vmem:[#allocation2 + $0xa8] sm:$0xff] %v3959
    %5427 = vst [vmem:[#allocation2 + $0xb8] sm:$0xff] %v4063
    %5428 = vst [vmem:[#allocation2 + $0xc8] sm:$0xff] %v4167
    %5429 = vst [vmem:[#allocation2 + $0xd8] sm:$0xff] %v4271
    %5430 = vst [vmem:[#allocation2 + $0xe8] sm:$0xff] %v4375
    %5431 = vst [vmem:[#allocation2 + $0xf8] sm:$0xff] %v4479
    %5432 = vst [vmem:[#allocation2 + $0x108] sm:$0xff] %v4583
    %5433 = vst [vmem:[#allocation2 + $0x118] sm:$0xff] %v4687
    %5434 = vst [vmem:[#allocation2 + $0x128] sm:$0xff] %v4791
    %5435 = vst [vmem:[#allocation2 + $0x138] sm:$0xff] %v4895
    %5436 = vst [vmem:[#allocation2 + $0x148] sm:$0xff] %v4999
    %5437 = vst [vmem:[#allocation2 + $0x158] sm:$0xff] %v5103
    %5438 = vst [vmem:[#allocation2 + $0x168] sm:$0xff] %v5207
    %5439 = vst [vmem:[#allocation2 + $0x178] sm:$0xff] %v5311
    %5440 = vst [vmem:[#allocation2 + $0x188] sm:$0xff] %v5415
    %v5441 = vld [vmem:[#allocation2] sm:$0xff]
    %v5442 = vld [vmem:[#allocation2 + $0x8] sm:$0xff]
    %v5443 = vld [vmem:[#allocation2 + $0x10] sm:$0xff]
    %v5444 = vld [vmem:[#allocation2 + $0x18] sm:$0xff]
    %v5445 = vld [vmem:[#allocation2 + $0x20] sm:$0xff]
    %v5446 = vld [vmem:[#allocation2 + $0x28] sm:$0xff]
    %v5447 = vld [vmem:[#allocation2 + $0x30] sm:$0xff]
    %v5448 = vld [vmem:[#allocation2 + $0x38] sm:$0xff]
    %v5449 = vld [vmem:[#allocation2 + $0x40] sm:$0xff]
    %v5450 = vld [vmem:[#allocation2 + $0x48] sm:$0xff]
    %v5451 = vld [vmem:[#allocation2 + $0x50] sm:$0xff]
    %v5452 = vld [vmem:[#allocation2 + $0x58] sm:$0xff]
    %v5453 = vld [vmem:[#allocation2 + $0x60] sm:$0xff]
    %v5454 = vld [vmem:[#allocation2 + $0x68] sm:$0xff]
    %v5455 = vld [vmem:[#allocation2 + $0x70] sm:$0xff]
    %v5456 = vld [vmem:[#allocation2 + $0x78] sm:$0xff]
    %v5457 = vld [vmem:[#allocation2 + $0x80] sm:$0xff]
    %v5458 = vld [vmem:[#allocation2 + $0x88] sm:$0xff]
    %v5459 = vld [vmem:[#allocation2 + $0x90] sm:$0xff]
    %v5460 = vld [vmem:[#allocation2 + $0x98] sm:$0xff]
    %v5461 = vld [vmem:[#allocation2 + $0xa0] sm:$0xff]
    %v5462 = vld [vmem:[#allocation2 + $0xa8] sm:$0xff]
    %v5463 = vld [vmem:[#allocation2 + $0xb0] sm:$0xff]
    %v5464 = vld [vmem:[#allocation2 + $0xb8] sm:$0xff]
    %v5465 = vld [vmem:[#allocation2 + $0xc0] sm:$0xff]
    %v5466 = vld [vmem:[#allocation2 + $0xc8] sm:$0xff]
    %v5467 = vld [vmem:[#allocation2 + $0xd0] sm:$0xff]
    %v5468 = vld [vmem:[#allocation2 + $0xd8] sm:$0xff]
    %v5469 = vld [vmem:[#allocation2 + $0xe0] sm:$0xff]
    %v5470 = vld [vmem:[#allocation2 + $0xe8] sm:$0xff]
    %v5471 = vld [vmem:[#allocation2 + $0xf0] sm:$0xff]
    %v5472 = vld [vmem:[#allocation2 + $0xf8] sm:$0xff]
    %v5473 = vld [vmem:[#allocation2 + $0x100] sm:$0xff]
    %v5474 = vld [vmem:[#allocation2 + $0x108] sm:$0xff]
    %v5475 = vld [vmem:[#allocation2 + $0x110] sm:$0xff]
    %v5476 = vld [vmem:[#allocation2 + $0x118] sm:$0xff]
    %v5477 = vld [vmem:[#allocation2 + $0x120] sm:$0xff]
    %v5478 = vld [vmem:[#allocation2 + $0x128] sm:$0xff]
    %v5479 = vld [vmem:[#allocation2 + $0x130] sm:$0xff]
    %v5480 = vld [vmem:[#allocation2 + $0x138] sm:$0xff]
    %v5481 = vld [vmem:[#allocation2 + $0x140] sm:$0xff]
    %v5482 = vld [vmem:[#allocation2 + $0x148] sm:$0xff]
    %v5483 = vld [vmem:[#allocation2 + $0x150] sm:$0xff]
    %v5484 = vld [vmem:[#allocation2 + $0x158] sm:$0xff]
    %v5485 = vld [vmem:[#allocation2 + $0x160] sm:$0xff]
    %v5486 = vld [vmem:[#allocation2 + $0x168] sm:$0xff]
    %v5487 = vld [vmem:[#allocation2 + $0x170] sm:$0xff]
    %v5488 = vld [vmem:[#allocation2 + $0x178] sm:$0xff]
    %v5489 = vld [vmem:[#allocation2 + $0x180] sm:$0xff]
    %v5490 = vld [vmem:[#allocation2 + $0x188] sm:$0xff]
    %v5491 = vld [vmem:[#allocation3] sm:$0xff]
    %v5492 = vld [vmem:[#allocation3 + $0x8] sm:$0xff]
    %v5493 = vld [vmem:[#allocation3 + $0x10] sm:$0xff]
    %v5494 = vld [vmem:[#allocation3 + $0x18] sm:$0xff]
    %v5495 = vld [vmem:[#allocation3 + $0x20] sm:$0xff]
    %v5496 = vld [vmem:[#allocation3 + $0x28] sm:$0xff]
    %v5497 = vld [vmem:[#allocation3 + $0x30] sm:$0xff]
    %v5498 = vld [vmem:[#allocation3 + $0x38] sm:$0xff]
    %v5499 = vld [vmem:[#allocation3 + $0x40] sm:$0xff]
    %v5500 = vld [vmem:[#allocation3 + $0x48] sm:$0xff]
    %v5501 = vld [vmem:[#allocation3 + $0x50] sm:$0xff]
    %v5502 = vld [vmem:[#allocation3 + $0x58] sm:$0xff]
    %v5503 = vld [vmem:[#allocation3 + $0x60] sm:$0xff]
    %v5504 = vld [vmem:[#allocation3 + $0x68] sm:$0xff]
    %v5505 = vld [vmem:[#allocation3 + $0x70] sm:$0xff]
    %v5506 = vld [vmem:[#allocation3 + $0x78] sm:$0xff]
    %v5507 = vld [vmem:[#allocation3 + $0x80] sm:$0xff]
    %v5508 = vld [vmem:[#allocation3 + $0x88] sm:$0xff]
    %v5509 = vld [vmem:[#allocation3 + $0x90] sm:$0xff]
    %v5510 = vld [vmem:[#allocation3 + $0x98] sm:$0xff]
    %v5511 = vld [vmem:[#allocation3 + $0xa0] sm:$0xff]
    %v5512 = vld [vmem:[#allocation3 + $0xa8] sm:$0xff]
    %v5513 = vld [vmem:[#allocation3 + $0xb0] sm:$0xff]
    %v5514 = vld [vmem:[#allocation3 + $0xb8] sm:$0xff]
    %v5515 = vld [vmem:[#allocation3 + $0xc0] sm:$0xff]
    %v5516 = vld [vmem:[#allocation3 + $0xc8] sm:$0xff]
    %v5517 = vld [vmem:[#allocation3 + $0xd0] sm:$0xff]
    %v5518 = vld [vmem:[#allocation3 + $0xd8] sm:$0xff]
    %v5519 = vld [vmem:[#allocation3 + $0xe0] sm:$0xff]
    %v5520 = vld [vmem:[#allocation3 + $0xe8] sm:$0xff]
    %v5521 = vld [vmem:[#allocation3 + $0xf0] sm:$0xff]
    %v5522 = vld [vmem:[#allocation3 + $0xf8] sm:$0xff]
    %v5523 = vld [vmem:[%s2] sm:$0x1]
    %v5525 = vlaneseq
    %v5526 = vshrl.u32 %v5525, 7
    %v5527 = vsub.s32 0, %v5526
    %v5528 = vrot.slane %v5523, %v5527
    %5530 = vmatprep.subr.mxu0 0.0
    %5531 = vmatpush1.msra.mxu0 %v5491
    %5532 = vmatprep.subr.mxu0 0.0
    %5533 = vmatpush1.msra.mxu0 %v5492
    %5534 = vmatprep.subr.mxu0 0.0
    %5535 = vmatpush1.msra.mxu0 %v5493
    %5536 = vmatprep.subr.mxu0 0.0
    %5537 = vmatpush1.msra.mxu0 %v5494
    %5538 = vmatprep.subr.mxu0 0.0
    %5539 = vmatpush1.msra.mxu0 %v5495
    %5540 = vmatprep.subr.mxu0 0.0
    %5541 = vmatpush1.msra.mxu0 %v5496
    %5542 = vmatprep.subr.mxu0 0.0
    %5543 = vmatpush1.msra.mxu0 %v5497
    %5544 = vmatprep.subr.mxu0 0.0
    %5545 = vmatpush1.msra.mxu0 %v5498
    %5546 = vmatprep.subr.mxu0 0.0
    %5547 = vmatpush1.msra.mxu0 %v5499
    %5548 = vmatprep.subr.mxu0 0.0
    %5549 = vmatpush1.msra.mxu0 %v5500
    %5550 = vmatprep.subr.mxu0 0.0
    %5551 = vmatpush1.msra.mxu0 %v5501
    %5552 = vmatprep.subr.mxu0 0.0
    %5553 = vmatpush1.msra.mxu0 %v5502
    %5554 = vmatprep.subr.mxu0 0.0
    %5555 = vmatpush1.msra.mxu0 %v5503
    %5556 = vmatprep.subr.mxu0 0.0
    %5557 = vmatpush1.msra.mxu0 %v5504
    %5558 = vmatprep.subr.mxu0 0.0
    %5559 = vmatpush1.msra.mxu0 %v5505
    %5560 = vmatprep.subr.mxu0 0.0
    %5561 = vmatpush1.msra.mxu0 %v5506
    %5562 = vmatprep.subr.mxu0 0.0
    %5563 = vmatpush1.msra.mxu0 %v5507
    %5564 = vmatprep.subr.mxu0 0.0
    %5565 = vmatpush1.msra.mxu0 %v5508
    %5566 = vmatprep.subr.mxu0 0.0
    %5567 = vmatpush1.msra.mxu0 %v5509
    %5568 = vmatprep.subr.mxu0 0.0
    %5569 = vmatpush1.msra.mxu0 %v5510
    %5570 = vmatprep.subr.mxu0 0.0
    %5571 = vmatpush1.msra.mxu0 %v5511
    %5572 = vmatprep.subr.mxu0 0.0
    %5573 = vmatpush1.msra.mxu0 %v5512
    %5574 = vmatprep.subr.mxu0 0.0
    %5575 = vmatpush1.msra.mxu0 %v5513
    %5576 = vmatprep.subr.mxu0 0.0
    %5577 = vmatpush1.msra.mxu0 %v5514
    %5578 = vmatprep.subr.mxu0 0.0
    %5579 = vmatpush1.msra.mxu0 %v5515
    %5580 = vmatprep.subr.mxu0 0.0
    %5581 = vmatpush1.msra.mxu0 %v5516
    %5582 = vmatprep.subr.mxu0 0.0
    %5583 = vmatpush1.msra.mxu0 %v5517
    %5584 = vmatprep.subr.mxu0 0.0
    %5585 = vmatpush1.msra.mxu0 %v5518
    %5586 = vmatprep.subr.mxu0 0.0
    %5587 = vmatpush1.msra.mxu0 %v5519
    %5588 = vmatprep.subr.mxu0 0.0
    %5589 = vmatpush1.msra.mxu0 %v5520
    %5590 = vmatprep.subr.mxu0 0.0
    %5591 = vmatpush1.msra.mxu0 %v5521
    %5592 = vmatprep.subr.mxu0 0.0
    %5593 = vmatpush1.msra.mxu0 %v5522
    %5594 = vmatprep.mubr.f32.mxu0 %v5442
    %5595 = vmatmul.mubr.f32.gmra.mrb[0].mxu0 %v5441
    %v5596 = vpop.f32.mrb[0].mxu0
    %v5597 = vadd.f32 %v5528, %v5596
    %v5598 = vpop.f32.mrb[0].mxu0
    %5599 = vmatprep.mubr.f32.mxu0 %v5444
    %5600 = vmatmul.mubr.f32.gmra.mrb[0].mxu0 %v5443
    %v5601 = vpop.f32.mrb[0].mxu0
    %v5602 = vadd.f32 %v5528, %v5601
    %v5603 = vpop.f32.mrb[0].mxu0
    %5604 = vmatprep.mubr.f32.mxu0 %v5446
    %5605 = vmatmul.mubr.f32.gmra.mrb[0].mxu0 %v5445
    %v5606 = vpop.f32.mrb[0].mxu0
    %v5607 = vadd.f32 %v5528, %v5606
    %v5608 = vpop.f32.mrb[0].mxu0
    %5609 = vmatprep.mubr.f32.mxu0 %v5448
    %5610 = vmatmul.mubr.f32.gmra.mrb[0].mxu0 %v5447
    %v5611 = vpop.f32.mrb[0].mxu0
    %v5612 = vadd.f32 %v5528, %v5611
    %v5613 = vpop.f32.mrb[0].mxu0
    %5614 = vmatprep.mubr.f32.mxu0 %v5450
    %5615 = vmatmul.mubr.f32.gmra.mrb[0].mxu0 %v5449
    %v5616 = vpop.f32.mrb[0].mxu0
    %v5617 = vadd.f32 %v5528, %v5616
    %v5618 = vpop.f32.mrb[0].mxu0
    %5619 = vmatprep.mubr.f32.mxu0 %v5452
    %5620 = vmatmul.mubr.f32.gmra.mrb[0].mxu0 %v5451
    %v5621 = vpop.f32.mrb[0].mxu0
    %v5622 = vadd.f32 %v5528, %v5621
    %v5623 = vpop.f32.mrb[0].mxu0
    %5624 = vmatprep.mubr.f32.mxu0 %v5454
    %5625 = vmatmul.mubr.f32.gmra.mrb[0].mxu0 %v5453
    %v5626 = vpop.f32.mrb[0].mxu0
    %v5627 = vadd.f32 %v5528, %v5626
    %v5628 = vpop.f32.mrb[0].mxu0
    %5629 = vmatprep.mubr.f32.mxu0 %v5456
    %5630 = vmatmul.mubr.f32.gmra.mrb[0].mxu0 %v5455
    %v5631 = vpop.f32.mrb[0].mxu0
    %v5632 = vadd.f32 %v5528, %v5631
    %v5633 = vpop.f32.mrb[0].mxu0
    %5634 = vmatprep.mubr.f32.mxu0 %v5458
    %5635 = vmatmul.mubr.f32.gmra.mrb[0].mxu0 %v5457
    %v5636 = vpop.f32.mrb[0].mxu0
    %v5637 = vadd.f32 %v5528, %v5636
    %v5638 = vpop.f32.mrb[0].mxu0
    %5639 = vmatprep.mubr.f32.mxu0 %v5460
    %5640 = vmatmul.mubr.f32.gmra.mrb[0].mxu0 %v5459
    %v5641 = vpop.f32.mrb[0].mxu0
    %v5642 = vadd.f32 %v5528, %v5641
    %v5643 = vpop.f32.mrb[0].mxu0
    %5644 = vmatprep.mubr.f32.mxu0 %v5462
    %5645 = vmatmul.mubr.f32.gmra.mrb[0].mxu0 %v5461
    %v5646 = vpop.f32.mrb[0].mxu0
    %v5647 = vadd.f32 %v5528, %v5646
    %v5648 = vpop.f32.mrb[0].mxu0
    %5649 = vmatprep.mubr.f32.mxu0 %v5464
    %5650 = vmatmul.mubr.f32.gmra.mrb[0].mxu0 %v5463
    %v5651 = vpop.f32.mrb[0].mxu0
    %v5652 = vadd.f32 %v5528, %v5651
    %v5653 = vpop.f32.mrb[0].mxu0
    %5654 = vmatprep.mubr.f32.mxu0 %v5466
    %5655 = vmatmul.mubr.f32.gmra.mrb[0].mxu0 %v5465
    %v5656 = vpop.f32.mrb[0].mxu0
    %v5657 = vadd.f32 %v5528, %v5656
    %v5658 = vpop.f32.mrb[0].mxu0
    %5659 = vmatprep.mubr.f32.mxu0 %v5468
    %5660 = vmatmul.mubr.f32.gmra.mrb[0].mxu0 %v5467
    %v5661 = vpop.f32.mrb[0].mxu0
    %v5662 = vadd.f32 %v5528, %v5661
    %v5663 = vpop.f32.mrb[0].mxu0
    %5664 = vmatprep.mubr.f32.mxu0 %v5470
    %5665 = vmatmul.mubr.f32.gmra.mrb[0].mxu0 %v5469
    %v5666 = vpop.f32.mrb[0].mxu0
    %v5667 = vadd.f32 %v5528, %v5666
    %v5668 = vpop.f32.mrb[0].mxu0
    %5669 = vmatprep.mubr.f32.mxu0 %v5472
    %5670 = vmatmul.mubr.f32.gmra.mrb[0].mxu0 %v5471
    %v5671 = vpop.f32.mrb[0].mxu0
    %v5672 = vadd.f32 %v5528, %v5671
    %v5673 = vpop.f32.mrb[0].mxu0
    %5674 = vmatprep.mubr.f32.mxu0 %v5474
    %5675 = vmatmul.mubr.f32.gmra.mrb[0].mxu0 %v5473
    %v5676 = vpop.f32.mrb[0].mxu0
    %v5677 = vadd.f32 %v5528, %v5676
    %v5678 = vpop.f32.mrb[0].mxu0
    %5679 = vmatprep.mubr.f32.mxu0 %v5476
    %5680 = vmatmul.mubr.f32.gmra.mrb[0].mxu0 %v5475
    %v5681 = vpop.f32.mrb[0].mxu0
    %v5682 = vadd.f32 %v5528, %v5681
    %v5683 = vpop.f32.mrb[0].mxu0
    %5684 = vmatprep.mubr.f32.mxu0 %v5478
    %5685 = vmatmul.mubr.f32.gmra.mrb[0].mxu0 %v5477
    %v5686 = vpop.f32.mrb[0].mxu0
    %v5687 = vadd.f32 %v5528, %v5686
    %v5688 = vpop.f32.mrb[0].mxu0
    %5689 = vmatprep.mubr.f32.mxu0 %v5480
    %5690 = vmatmul.mubr.f32.gmra.mrb[0].mxu0 %v5479
    %v5691 = vpop.f32.mrb[0].mxu0
    %v5692 = vadd.f32 %v5528, %v5691
    %v5693 = vpop.f32.mrb[0].mxu0
    %5694 = vmatprep.mubr.f32.mxu0 %v5482
    %5695 = vmatmul.mubr.f32.gmra.mrb[0].mxu0 %v5481
    %v5696 = vpop.f32.mrb[0].mxu0
    %v5697 = vadd.f32 %v5528, %v5696
    %v5698 = vpop.f32.mrb[0].mxu0
    %5699 = vmatprep.mubr.f32.mxu0 %v5484
    %5700 = vmatmul.mubr.f32.gmra.mrb[0].mxu0 %v5483
    %v5701 = vpop.f32.mrb[0].mxu0
    %v5702 = vadd.f32 %v5528, %v5701
    %v5703 = vpop.f32.mrb[0].mxu0
    %5704 = vmatprep.mubr.f32.mxu0 %v5486
    %5705 = vmatmul.mubr.f32.gmra.mrb[0].mxu0 %v5485
    %v5706 = vpop.f32.mrb[0].mxu0
    %v5707 = vadd.f32 %v5528, %v5706
    %v5708 = vpop.f32.mrb[0].mxu0
    %5709 = vmatprep.mubr.f32.mxu0 %v5488
    %5710 = vmatmul.mubr.f32.gmra.mrb[0].mxu0 %v5487
    %v5711 = vpop.f32.mrb[0].mxu0
    %v5712 = vadd.f32 %v5528, %v5711
    %v5713 = vpop.f32.mrb[0].mxu0
    %5714 = vmatprep.mubr.f32.mxu0 %v5490
    %5715 = vmatmul.mubr.f32.gmra.mrb[0].mxu0 %v5489
    %v5716 = vpop.f32.mrb[0].mxu0
    %v5717 = vadd.f32 %v5528, %v5716
    %v5718 = vpop.f32.mrb[0].mxu0
    %5719 = vdwg.mxu0
    %v5720 = vxor.u32 %v5597, 2147483648
    %v5721 = vxor.u32 %v5602, 2147483648
    %v5722 = vxor.u32 %v5607, 2147483648
    %v5723 = vxor.u32 %v5612, 2147483648
    %v5724 = vxor.u32 %v5617, 2147483648
    %v5725 = vxor.u32 %v5622, 2147483648
    %v5726 = vxor.u32 %v5627, 2147483648
    %v5727 = vxor.u32 %v5632, 2147483648
    %v5728 = vxor.u32 %v5637, 2147483648
    %v5729 = vxor.u32 %v5642, 2147483648
    %v5730 = vxor.u32 %v5647, 2147483648
    %v5731 = vxor.u32 %v5652, 2147483648
    %v5732 = vxor.u32 %v5657, 2147483648
    %v5733 = vxor.u32 %v5662, 2147483648
    %v5734 = vxor.u32 %v5667, 2147483648
    %v5735 = vxor.u32 %v5672, 2147483648
    %v5736 = vxor.u32 %v5677, 2147483648
    %v5737 = vxor.u32 %v5682, 2147483648
    %v5738 = vxor.u32 %v5687, 2147483648
    %v5739 = vxor.u32 %v5692, 2147483648
    %v5740 = vxor.u32 %v5697, 2147483648
    %v5741 = vxor.u32 %v5702, 2147483648
    %v5742 = vxor.u32 %v5707, 2147483648
    %v5743 = vxor.u32 %v5712, 2147483648
    %v5744 = vxor.u32 %v5717, 2147483648
    %v5745 = vmul.f32 %v5720, 1.442695
    %v5746 = vpow.pop %v5745
    %v5747 = vmul.f32 %v5721, 1.442695
    %v5748 = vpow.pop %v5747
    %v5749 = vmul.f32 %v5722, 1.442695
    %v5750 = vpow.pop %v5749
    %v5751 = vmul.f32 %v5723, 1.442695
    %v5752 = vpow.pop %v5751
    %v5753 = vmul.f32 %v5724, 1.442695
    %v5754 = vpow.pop %v5753
    %v5755 = vmul.f32 %v5725, 1.442695
    %v5756 = vpow.pop %v5755
    %v5757 = vmul.f32 %v5726, 1.442695
    %v5758 = vpow.pop %v5757
    %v5759 = vmul.f32 %v5727, 1.442695
    %v5760 = vpow.pop %v5759
    %v5761 = vmul.f32 %v5728, 1.442695
    %v5762 = vpow.pop %v5761
    %v5763 = vmul.f32 %v5729, 1.442695
    %v5764 = vpow.pop %v5763
    %v5765 = vmul.f32 %v5730, 1.442695
    %v5766 = vpow.pop %v5765
    %v5767 = vmul.f32 %v5731, 1.442695
    %v5768 = vpow.pop %v5767
    %v5769 = vmul.f32 %v5732, 1.442695
    %v5770 = vpow.pop %v5769
    %v5771 = vmul.f32 %v5733, 1.442695
    %v5772 = vpow.pop %v5771
    %v5773 = vmul.f32 %v5734, 1.442695
    %v5774 = vpow.pop %v5773
    %v5775 = vmul.f32 %v5735, 1.442695
    %v5776 = vpow.pop %v5775
    %v5777 = vmul.f32 %v5736, 1.442695
    %v5778 = vpow.pop %v5777
    %v5779 = vmul.f32 %v5737, 1.442695
    %v5780 = vpow.pop %v5779
    %v5781 = vmul.f32 %v5738, 1.442695
    %v5782 = vpow.pop %v5781
    %v5783 = vmul.f32 %v5739, 1.442695
    %v5784 = vpow.pop %v5783
    %v5785 = vmul.f32 %v5740, 1.442695
    %v5786 = vpow.pop %v5785
    %v5787 = vmul.f32 %v5741, 1.442695
    %v5788 = vpow.pop %v5787
    %v5789 = vmul.f32 %v5742, 1.442695
    %v5790 = vpow.pop %v5789
    %v5791 = vmul.f32 %v5743, 1.442695
    %v5792 = vpow.pop %v5791
    %v5793 = vmul.f32 %v5744, 1.442695
    %v5794 = vpow.pop %v5793
    %v5795 = vadd.f32 %v5746, 1.0
    %v5796 = vadd.f32 %v5748, 1.0
    %v5797 = vadd.f32 %v5750, 1.0
    %v5798 = vadd.f32 %v5752, 1.0
    %v5799 = vadd.f32 %v5754, 1.0
    %v5800 = vadd.f32 %v5756, 1.0
    %v5801 = vadd.f32 %v5758, 1.0
    %v5802 = vadd.f32 %v5760, 1.0
    %v5803 = vadd.f32 %v5762, 1.0
    %v5804 = vadd.f32 %v5764, 1.0
    %v5805 = vadd.f32 %v5766, 1.0
    %v5806 = vadd.f32 %v5768, 1.0
    %v5807 = vadd.f32 %v5770, 1.0
    %v5808 = vadd.f32 %v5772, 1.0
    %v5809 = vadd.f32 %v5774, 1.0
    %v5810 = vadd.f32 %v5776, 1.0
    %v5811 = vadd.f32 %v5778, 1.0
    %v5812 = vadd.f32 %v5780, 1.0
    %v5813 = vadd.f32 %v5782, 1.0
    %v5814 = vadd.f32 %v5784, 1.0
    %v5815 = vadd.f32 %v5786, 1.0
    %v5816 = vadd.f32 %v5788, 1.0
    %v5817 = vadd.f32 %v5790, 1.0
    %v5818 = vadd.f32 %v5792, 1.0
    %v5819 = vadd.f32 %v5794, 1.0
    %v5820 = vrcp.pop %v5795
    %v5821 = vmul.f32 1.0, %v5820
    %v5822 = vrcp.pop %v5796
    %v5823 = vmul.f32 1.0, %v5822
    %v5824 = vrcp.pop %v5797
    %v5825 = vmul.f32 1.0, %v5824
    %v5826 = vrcp.pop %v5798
    %v5827 = vmul.f32 1.0, %v5826
    %v5828 = vrcp.pop %v5799
    %v5829 = vmul.f32 1.0, %v5828
    %v5830 = vrcp.pop %v5800
    %v5831 = vmul.f32 1.0, %v5830
    %v5832 = vrcp.pop %v5801
    %v5833 = vmul.f32 1.0, %v5832
    %v5834 = vrcp.pop %v5802
    %v5835 = vmul.f32 1.0, %v5834
    %v5836 = vrcp.pop %v5803
    %v5837 = vmul.f32 1.0, %v5836
    %v5838 = vrcp.pop %v5804
    %v5839 = vmul.f32 1.0, %v5838
    %v5840 = vrcp.pop %v5805
    %v5841 = vmul.f32 1.0, %v5840
    %v5842 = vrcp.pop %v5806
    %v5843 = vmul.f32 1.0, %v5842
    %v5844 = vrcp.pop %v5807
    %v5845 = vmul.f32 1.0, %v5844
    %v5846 = vrcp.pop %v5808
    %v5847 = vmul.f32 1.0, %v5846
    %v5848 = vrcp.pop %v5809
    %v5849 = vmul.f32 1.0, %v5848
    %v5850 = vrcp.pop %v5810
    %v5851 = vmul.f32 1.0, %v5850
    %v5852 = vrcp.pop %v5811
    %v5853 = vmul.f32 1.0, %v5852
    %v5854 = vrcp.pop %v5812
    %v5855 = vmul.f32 1.0, %v5854
    %v5856 = vrcp.pop %v5813
    %v5857 = vmul.f32 1.0, %v5856
    %v5858 = vrcp.pop %v5814
    %v5859 = vmul.f32 1.0, %v5858
    %v5860 = vrcp.pop %v5815
    %v5861 = vmul.f32 1.0, %v5860
    %v5862 = vrcp.pop %v5816
    %v5863 = vmul.f32 1.0, %v5862
    %v5864 = vrcp.pop %v5817
    %v5865 = vmul.f32 1.0, %v5864
    %v5866 = vrcp.pop %v5818
    %v5867 = vmul.f32 1.0, %v5866
    %v5868 = vrcp.pop %v5819
    %v5869 = vmul.f32 1.0, %v5868
    %v5870 = vmul.f32 %v5597, %v5821
    %v5871 = vmul.f32 %v5602, %v5823
    %v5872 = vmul.f32 %v5607, %v5825
    %v5873 = vmul.f32 %v5612, %v5827
    %v5874 = vmul.f32 %v5617, %v5829
    %v5875 = vmul.f32 %v5622, %v5831
    %v5876 = vmul.f32 %v5627, %v5833
    %v5877 = vmul.f32 %v5632, %v5835
    %v5878 = vmul.f32 %v5637, %v5837
    %v5879 = vmul.f32 %v5642, %v5839
    %v5880 = vmul.f32 %v5647, %v5841
    %v5881 = vmul.f32 %v5652, %v5843
    %v5882 = vmul.f32 %v5657, %v5845
    %v5883 = vmul.f32 %v5662, %v5847
    %v5884 = vmul.f32 %v5667, %v5849
    %v5885 = vmul.f32 %v5672, %v5851
    %v5886 = vmul.f32 %v5677, %v5853
    %v5887 = vmul.f32 %v5682, %v5855
    %v5888 = vmul.f32 %v5687, %v5857
    %v5889 = vmul.f32 %v5692, %v5859
    %v5890 = vmul.f32 %v5697, %v5861
    %v5891 = vmul.f32 %v5702, %v5863
    %v5892 = vmul.f32 %v5707, %v5865
    %v5893 = vmul.f32 %v5712, %v5867
    %v5894 = vmul.f32 %v5717, %v5869
    %v5895 = vld [vmem:[%s3] sm:$0xff]
    %v5896 = vld [vmem:[%s3 + $0x8] sm:$0xff]
    %v5897 = vld [vmem:[%s3 + $0x10] sm:$0xff]
    %v5898 = vld [vmem:[%s3 + $0x18] sm:$0xff]
    %v5899 = vld [vmem:[%s3 + $0x20] sm:$0xff]
    %v5900 = vld [vmem:[%s3 + $0x28] sm:$0xff]
    %v5901 = vld [vmem:[%s3 + $0x30] sm:$0xff]
    %v5902 = vld [vmem:[%s3 + $0x38] sm:$0xff]
    %v5903 = vld [vmem:[%s3 + $0x40] sm:$0xff]
    %v5904 = vld [vmem:[%s3 + $0x48] sm:$0xff]
    %v5905 = vld [vmem:[%s3 + $0x50] sm:$0xff]
    %v5906 = vld [vmem:[%s3 + $0x58] sm:$0xff]
    %v5907 = vld [vmem:[%s3 + $0x60] sm:$0xff]
    %v5908 = vld [vmem:[%s3 + $0x68] sm:$0xff]
    %v5909 = vld [vmem:[%s3 + $0x70] sm:$0xff]
    %v5910 = vld [vmem:[%s3 + $0x78] sm:$0xff]
    %v5911 = vld [vmem:[%s4] sm:$0x1]
    %v5913 = vlaneseq
    %v5914 = vshrl.u32 %v5913, 7
    %v5915 = vsub.s32 0, %v5914
    %v5916 = vrot.slane %v5911, %v5915
    %5918 = vmatprep.subr.mxu0 0.0
    %5919 = vmatpush1.msra.mxu0 %v5895
    %5920 = vmatprep.subr.mxu0 0.0
    %5921 = vmatpush1.msra.mxu0 %v5896
    %5922 = vmatprep.subr.mxu0 0.0
    %5923 = vmatpush1.msra.mxu0 %v5897
    %5924 = vmatprep.subr.mxu0 0.0
    %5925 = vmatpush1.msra.mxu0 %v5898
    %5926 = vmatprep.subr.mxu0 0.0
    %5927 = vmatpush1.msra.mxu0 %v5899
    %5928 = vmatprep.subr.mxu0 0.0
    %5929 = vmatpush1.msra.mxu0 %v5900
    %5930 = vmatprep.subr.mxu0 0.0
    %5931 = vmatpush1.msra.mxu0 %v5901
    %5932 = vmatprep.subr.mxu0 0.0
    %5933 = vmatpush1.msra.mxu0 %v5902
    %5934 = vmatprep.subr.mxu0 0.0
    %5935 = vmatpush1.msra.mxu0 %v5903
    %5936 = vmatprep.subr.mxu0 0.0
    %5937 = vmatpush1.msra.mxu0 %v5904
    %5938 = vmatprep.subr.mxu0 0.0
    %5939 = vmatpush1.msra.mxu0 %v5905
    %5940 = vmatprep.subr.mxu0 0.0
    %5941 = vmatpush1.msra.mxu0 %v5906
    %5942 = vmatprep.subr.mxu0 0.0
    %5943 = vmatpush1.msra.mxu0 %v5907
    %5944 = vmatprep.subr.mxu0 0.0
    %5945 = vmatpush1.msra.mxu0 %v5908
    %5946 = vmatprep.subr.mxu0 0.0
    %5947 = vmatpush1.msra.mxu0 %v5909
    %5948 = vmatprep.subr.mxu0 0.0
    %5949 = vmatpush1.msra.mxu0 %v5910
    %5950 = vmatprep.subr.mxu0 0.0
    %5951 = vmatpush1.msra.mxu0 0.0
    %5952 = vmatprep.subr.mxu0 0.0
    %5953 = vmatpush1.msra.mxu0 0.0
    %5954 = vmatprep.subr.mxu0 0.0
    %5955 = vmatpush1.msra.mxu0 0.0
    %5956 = vmatprep.subr.mxu0 0.0
    %5957 = vmatpush1.msra.mxu0 0.0
    %5958 = vmatprep.subr.mxu0 0.0
    %5959 = vmatpush1.msra.mxu0 0.0
    %5960 = vmatprep.subr.mxu0 0.0
    %5961 = vmatpush1.msra.mxu0 0.0
    %5962 = vmatprep.subr.mxu0 0.0
    %5963 = vmatpush1.msra.mxu0 0.0
    %5964 = vmatprep.subr.mxu0 0.0
    %5965 = vmatpush1.msra.mxu0 0.0
    %5966 = vmatprep.subr.mxu0 0.0
    %5967 = vmatpush1.msra.mxu0 0.0
    %5968 = vmatprep.subr.mxu0 0.0
    %5969 = vmatpush1.msra.mxu0 0.0
    %5970 = vmatprep.subr.mxu0 0.0
    %5971 = vmatpush1.msra.mxu0 0.0
    %5972 = vmatprep.subr.mxu0 0.0
    %5973 = vmatpush1.msra.mxu0 0.0
    %5974 = vmatprep.subr.mxu0 0.0
    %5975 = vmatpush1.msra.mxu0 0.0
    %5976 = vmatprep.subr.mxu0 0.0
    %5977 = vmatpush1.msra.mxu0 0.0
    %5978 = vmatprep.subr.mxu0 0.0
    %5979 = vmatpush1.msra.mxu0 0.0
    %5980 = vmatprep.subr.mxu0 0.0
    %5981 = vmatpush1.msra.mxu0 0.0
    %5982 = vmatprep.mubr.f32.mxu0 0.0
    %5983 = vmatmul.mubr.f32.gmra.mrb[0].mxu0 %v5870
    %v5984 = vpop.f32.mrb[0].mxu0
    %v5985 = vadd.f32 %v5916, %v5984
    %v5986 = vpop.f32.mrb[0].mxu0
    %5987 = vmatprep.mubr.f32.mxu0 0.0
    %5988 = vmatmul.mubr.f32.gmra.mrb[0].mxu0 %v5871
    %v5989 = vpop.f32.mrb[0].mxu0
    %v5990 = vadd.f32 %v5916, %v5989
    %v5991 = vpop.f32.mrb[0].mxu0
    %5992 = vmatprep.mubr.f32.mxu0 0.0
    %5993 = vmatmul.mubr.f32.gmra.mrb[0].mxu0 %v5872
    %v5994 = vpop.f32.mrb[0].mxu0
    %v5995 = vadd.f32 %v5916, %v5994
    %v5996 = vpop.f32.mrb[0].mxu0
    %5997 = vmatprep.mubr.f32.mxu0 0.0
    %5998 = vmatmul.mubr.f32.gmra.mrb[0].mxu0 %v5873
    %v5999 = vpop.f32.mrb[0].mxu0
    %v6000 = vadd.f32 %v5916, %v5999
    %v6001 = vpop.f32.mrb[0].mxu0
    %6002 = vmatprep.mubr.f32.mxu0 0.0
    %6003 = vmatmul.mubr.f32.gmra.mrb[0].mxu0 %v5874
    %v6004 = vpop.f32.mrb[0].mxu0
    %v6005 = vadd.f32 %v5916, %v6004
    %v6006 = vpop.f32.mrb[0].mxu0
    %6007 = vmatprep.mubr.f32.mxu0 0.0
    %6008 = vmatmul.mubr.f32.gmra.mrb[0].mxu0 %v5875
    %v6009 = vpop.f32.mrb[0].mxu0
    %v6010 = vadd.f32 %v5916, %v6009
    %v6011 = vpop.f32.mrb[0].mxu0
    %6012 = vmatprep.mubr.f32.mxu0 0.0
    %6013 = vmatmul.mubr.f32.gmra.mrb[0].mxu0 %v5876
    %v6014 = vpop.f32.mrb[0].mxu0
    %v6015 = vadd.f32 %v5916, %v6014
    %v6016 = vpop.f32.mrb[0].mxu0
    %6017 = vmatprep.mubr.f32.mxu0 0.0
    %6018 = vmatmul.mubr.f32.gmra.mrb[0].mxu0 %v5877
    %v6019 = vpop.f32.mrb[0].mxu0
    %v6020 = vadd.f32 %v5916, %v6019
    %v6021 = vpop.f32.mrb[0].mxu0
    %6022 = vmatprep.mubr.f32.mxu0 0.0
    %6023 = vmatmul.mubr.f32.gmra.mrb[0].mxu0 %v5878
    %v6024 = vpop.f32.mrb[0].mxu0
    %v6025 = vadd.f32 %v5916, %v6024
    %v6026 = vpop.f32.mrb[0].mxu0
    %6027 = vmatprep.mubr.f32.mxu0 0.0
    %6028 = vmatmul.mubr.f32.gmra.mrb[0].mxu0 %v5879
    %v6029 = vpop.f32.mrb[0].mxu0
    %v6030 = vadd.f32 %v5916, %v6029
    %v6031 = vpop.f32.mrb[0].mxu0
    %6032 = vmatprep.mubr.f32.mxu0 0.0
    %6033 = vmatmul.mubr.f32.gmra.mrb[0].mxu0 %v5880
    %v6034 = vpop.f32.mrb[0].mxu0
    %v6035 = vadd.f32 %v5916, %v6034
    %v6036 = vpop.f32.mrb[0].mxu0
    %6037 = vmatprep.mubr.f32.mxu0 0.0
    %6038 = vmatmul.mubr.f32.gmra.mrb[0].mxu0 %v5881
    %v6039 = vpop.f32.mrb[0].mxu0
    %v6040 = vadd.f32 %v5916, %v6039
    %v6041 = vpop.f32.mrb[0].mxu0
    %6042 = vmatprep.mubr.f32.mxu0 0.0
    %6043 = vmatmul.mubr.f32.gmra.mrb[0].mxu0 %v5882
    %v6044 = vpop.f32.mrb[0].mxu0
    %v6045 = vadd.f32 %v5916, %v6044
    %v6046 = vpop.f32.mrb[0].mxu0
    %6047 = vmatprep.mubr.f32.mxu0 0.0
    %6048 = vmatmul.mubr.f32.gmra.mrb[0].mxu0 %v5883
    %v6049 = vpop.f32.mrb[0].mxu0
    %v6050 = vadd.f32 %v5916, %v6049
    %v6051 = vpop.f32.mrb[0].mxu0
    %6052 = vmatprep.mubr.f32.mxu0 0.0
    %6053 = vmatmul.mubr.f32.gmra.mrb[0].mxu0 %v5884
    %v6054 = vpop.f32.mrb[0].mxu0
    %v6055 = vadd.f32 %v5916, %v6054
    %v6056 = vpop.f32.mrb[0].mxu0
    %6057 = vmatprep.mubr.f32.mxu0 0.0
    %6058 = vmatmul.mubr.f32.gmra.mrb[0].mxu0 %v5885
    %v6059 = vpop.f32.mrb[0].mxu0
    %v6060 = vadd.f32 %v5916, %v6059
    %v6061 = vpop.f32.mrb[0].mxu0
    %6062 = vmatprep.mubr.f32.mxu0 0.0
    %6063 = vmatmul.mubr.f32.gmra.mrb[0].mxu0 %v5886
    %v6064 = vpop.f32.mrb[0].mxu0
    %v6065 = vadd.f32 %v5916, %v6064
    %v6066 = vpop.f32.mrb[0].mxu0
    %6067 = vmatprep.mubr.f32.mxu0 0.0
    %6068 = vmatmul.mubr.f32.gmra.mrb[0].mxu0 %v5887
    %v6069 = vpop.f32.mrb[0].mxu0
    %v6070 = vadd.f32 %v5916, %v6069
    %v6071 = vpop.f32.mrb[0].mxu0
    %6072 = vmatprep.mubr.f32.mxu0 0.0
    %6073 = vmatmul.mubr.f32.gmra.mrb[0].mxu0 %v5888
    %v6074 = vpop.f32.mrb[0].mxu0
    %v6075 = vadd.f32 %v5916, %v6074
    %v6076 = vpop.f32.mrb[0].mxu0
    %6077 = vmatprep.mubr.f32.mxu0 0.0
    %6078 = vmatmul.mubr.f32.gmra.mrb[0].mxu0 %v5889
    %v6079 = vpop.f32.mrb[0].mxu0
    %v6080 = vadd.f32 %v5916, %v6079
    %v6081 = vpop.f32.mrb[0].mxu0
    %6082 = vmatprep.mubr.f32.mxu0 0.0
    %6083 = vmatmul.mubr.f32.gmra.mrb[0].mxu0 %v5890
    %v6084 = vpop.f32.mrb[0].mxu0
    %v6085 = vadd.f32 %v5916, %v6084
    %v6086 = vpop.f32.mrb[0].mxu0
    %6087 = vmatprep.mubr.f32.mxu0 0.0
    %6088 = vmatmul.mubr.f32.gmra.mrb[0].mxu0 %v5891
    %v6089 = vpop.f32.mrb[0].mxu0
    %v6090 = vadd.f32 %v5916, %v6089
    %v6091 = vpop.f32.mrb[0].mxu0
    %6092 = vmatprep.mubr.f32.mxu0 0.0
    %6093 = vmatmul.mubr.f32.gmra.mrb[0].mxu0 %v5892
    %v6094 = vpop.f32.mrb[0].mxu0
    %v6095 = vadd.f32 %v5916, %v6094
    %v6096 = vpop.f32.mrb[0].mxu0
    %6097 = vmatprep.mubr.f32.mxu0 0.0
    %6098 = vmatmul.mubr.f32.gmra.mrb[0].mxu0 %v5893
    %v6099 = vpop.f32.mrb[0].mxu0
    %v6100 = vadd.f32 %v5916, %v6099
    %v6101 = vpop.f32.mrb[0].mxu0
    %6102 = vmatprep.mubr.f32.mxu0 0.0
    %6103 = vmatmul.mubr.f32.gmra.mrb[0].mxu0 %v5894
    %v6104 = vpop.f32.mrb[0].mxu0
    %v6105 = vadd.f32 %v5916, %v6104
    %v6106 = vpop.f32.mrb[0].mxu0
    %6107 = vdwg.mxu0
    %6108 = vst [vmem:[#allocation6] sm:$0xff] %v5985
    %6109 = vst [vmem:[#allocation6 + $0x8] sm:$0xff] %v5990
    %6110 = vst [vmem:[#allocation6 + $0x10] sm:$0xff] %v5995
    %6111 = vst [vmem:[#allocation6 + $0x18] sm:$0xff] %v6000
    %6112 = vst [vmem:[#allocation6 + $0x20] sm:$0xff] %v6005
    %6113 = vst [vmem:[#allocation6 + $0x28] sm:$0xff] %v6010
    %6114 = vst [vmem:[#allocation6 + $0x30] sm:$0xff] %v6015
    %6115 = vst [vmem:[#allocation6 + $0x38] sm:$0xff] %v6020
    %6116 = vst [vmem:[#allocation6 + $0x40] sm:$0xff] %v6025
    %6117 = vst [vmem:[#allocation6 + $0x48] sm:$0xff] %v6030
    %6118 = vst [vmem:[#allocation6 + $0x50] sm:$0xff] %v6035
    %6119 = vst [vmem:[#allocation6 + $0x58] sm:$0xff] %v6040
    %6120 = vst [vmem:[#allocation6 + $0x60] sm:$0xff] %v6045
    %6121 = vst [vmem:[#allocation6 + $0x68] sm:$0xff] %v6050
    %6122 = vst [vmem:[#allocation6 + $0x70] sm:$0xff] %v6055
    %6123 = vst [vmem:[#allocation6 + $0x78] sm:$0xff] %v6060
    %6124 = vst [vmem:[#allocation6 + $0x80] sm:$0xff] %v6065
    %6125 = vst [vmem:[#allocation6 + $0x88] sm:$0xff] %v6070
    %6126 = vst [vmem:[#allocation6 + $0x90] sm:$0xff] %v6075
    %6127 = vst [vmem:[#allocation6 + $0x98] sm:$0xff] %v6080
    %6128 = vst [vmem:[#allocation6 + $0xa0] sm:$0xff] %v6085
    %6129 = vst [vmem:[#allocation6 + $0xa8] sm:$0xff] %v6090
    %6130 = vst [vmem:[#allocation6 + $0xb0] sm:$0xff] %v6095
    %6131 = vst [vmem:[#allocation6 + $0xb8] sm:$0xff] %v6100
    %6132 = vst [vmem:[#allocation6 + $0xc0] sm:$0xff] %v6105
    // Predicated region
    $region26: #{tpu_custom_call.1} parent=1 // pred_check
      _
    $region27: #{tpu_custom_call.1} parent=1 // pred_check_branch
      %6134 = sbr.rel (0) target = $region29
    $region28: #{tpu_custom_call.1} parent=1 // pred_region
      %s6136 = ssub.s32 3200, 3200
      %6137 = vsyncadd [#allocation5], %s6136
      %s6138 = sshll.u32 [#allocation6], 4
      %s6139 = int_to_ptr.vmem [resolvable:$true] %s6138
      %6144 = dma.vmem_to_hbm [thread:$0]  %s6139, 3200, %s5, [#allocation5], 128, 128, 8
    $region29: #{tpu_custom_call.1} parent=1 // pred_fallthru
      _
    // Predicated region
    $region30: #{tpu_custom_call.1} parent=1 // pred_check
      _
    $region31: #{tpu_custom_call.1} parent=1 // pred_check_branch
      %6146 = sbr.rel (0) target = $region33
    $region32: #{tpu_custom_call.1} parent=1 // pred_region
      %6147 = dma.done [#allocation5], 3200
    $region33: #{tpu_custom_call.1} parent=1 // pred_fallthru
      _
    %6148 = vsyncpa [#allocation4], 1
    %6149 = vsyncpa [#allocation5], 1

</llo_original>
